<compile_context>
chip_gen: v7x
topology: tpu7x:2x2x1
jax: 0.10.0
libtpu: 0.0.40
codegen_flags: <defaults>
</compile_context>

<pallas_src>
import numpy as np
import jax
import jax.numpy as jnp
from jax.experimental import pallas as pl
from jax.experimental.pallas import tpu as pltpu

# Canvas geometry: every activation lives on a 20x20 grid (flat length 400)
# whose valid 16x16 / 17x17 data starts at offset (2, 2); the frame is zero so
# shifted taps read correct zero padding. The flat scratch adds 32 spare lanes
# on each side so every shifted window is an in-bounds static slice.
_HP = 20
_WP = 20
_L = _HP * _WP            # 400 lanes per canvas row-major image
_OFF = 2                  # where valid data starts inside the canvas
_MARGIN = 32              # spare lanes on each side of the flat scratch
_H = 16
_W = 16
_CIN = 10
_SIZ = 16


def _net_kernel(x_ref, w1_ref, b1_ref, w2_ref, b2_ref, w3_ref, b3_ref,
                w4_ref, b4_ref, mask_ref, o_ref, canvas_ref):
    # canvas_ref: (16, 2*_MARGIN + 400) f32 scratch holding the current layer's
    # activation canvas at lane offset _MARGIN.

    def conv_on_canvas(cin, w_ref, b_ref, ksize, pad, mask=None):
        acc = None
        for kh in range(ksize):
            for kw in range(ksize):
                shift = (kh - pad) * _WP + (kw - pad)
                start = _MARGIN + shift
                win = canvas_ref[0:cin, start:start + _L]        # (cin, 400)
                wk = w_ref[kh * ksize + kw]                      # (cout, cin)
                term = jnp.dot(wk, win, preferred_element_type=jnp.float32)
                acc = term if acc is None else acc + term
        acc = jnp.maximum(acc + b_ref[...], 0.0)                 # bias + ReLU
        if mask is not None:
            acc = acc * mask                                     # zero the frame
        return acc

    # Layer-0 canvas: input (10, 400), valid data in rows/cols [2, 18).
    canvas_ref[0:_CIN, _MARGIN:_MARGIN + _L] = x_ref[0]

    # conv1: 10->16, k=2, pad=1 -> 17x17 valid at [2,19)^2, ReLU.
    a1 = conv_on_canvas(_CIN, w1_ref, b1_ref, ksize=2, pad=1)
    canvas_ref[:, _MARGIN:_MARGIN + _L] = a1

    # conv2: 16->16, k=2, pad=0 -> 16x16 valid at [2,18)^2, ReLU.
    # conv3 reads a one-pixel halo around this region, so mask the frame to 0.
    a2 = conv_on_canvas(_SIZ, w2_ref, b2_ref, ksize=2, pad=0, mask=mask_ref[...])
    canvas_ref[:, _MARGIN:_MARGIN + _L] = a2

    # conv3: 16->16, k=3, pad=1 -> 16x16 valid at [2,18)^2, ReLU.
    a3 = conv_on_canvas(_SIZ, w3_ref, b3_ref, ksize=3, pad=1)

    # Dropout2d(p=0.1): identity in eval/inference mode.
    # TODO(synk): training-mode channel dropout (RNG mask) is not implemented.

    # conv4: 1x1, 16->10, no ReLU: pointwise matmul over the whole canvas,
    # then extract the valid 16x16 region into the lane-dense NCHW output.
    y = jnp.dot(w4_ref[...], a3, preferred_element_type=jnp.float32) + b4_ref[...]
    for ho in range(_H):
        src = (_OFF + ho) * _WP + _OFF
        o_ref[0, :, ho * _W:(ho + 1) * _W] = y[:, src:src + _W]


def _stack_weight(w):
    # (Cout, Cin, KH, KW) -> (KH*KW, Cout, Cin) so w_stack[kh*KW+kw] is the
    # per-tap (Cout, Cin) matrix.
    cout, cin, kh, kw = w.shape
    return jnp.transpose(w, (2, 3, 0, 1)).reshape(kh * kw, cout, cin).astype(jnp.float32)


def _make_mask():
    r = np.arange(_HP)
    ok = (r >= _OFF) & (r < _OFF + _H)
    m = (ok[:, None] & ok[None, :]).astype(np.float32)      # (20, 20)
    return jnp.asarray(m.reshape(1, _L))


def task368_forward(params, x_nchw):
    B = x_nchw.shape[0]
    x = x_nchw.astype(jnp.float32)
    # Place the input on the zero-framed 20x20 canvas and flatten spatial.
    xc = jnp.pad(x, ((0, 0), (0, 0), (_OFF, _OFF), (_OFF, _OFF)))
    xc = xc.reshape(B, _CIN, _L)

    w1, b1 = params["conv1"]
    w2, b2 = params["conv2"]
    w3, b3 = params["conv3"]
    w4, b4 = params["conv4"]

    w1s, w2s, w3s = _stack_weight(w1), _stack_weight(w2), _stack_weight(w3)
    w4m = w4.reshape(10, _SIZ).astype(jnp.float32)
    b1c = b1.reshape(_SIZ, 1).astype(jnp.float32)
    b2c = b2.reshape(_SIZ, 1).astype(jnp.float32)
    b3c = b3.reshape(_SIZ, 1).astype(jnp.float32)
    b4c = b4.reshape(10, 1).astype(jnp.float32)
    mask = _make_mask()

    def full(shape):
        return pl.BlockSpec(shape, lambda b, _n=len(shape): (0,) * _n)

    out = pl.pallas_call(
        _net_kernel,
        out_shape=jax.ShapeDtypeStruct((B, 10, _H * _W), jnp.float32),
        grid=(B,),
        in_specs=[
            pl.BlockSpec((1, _CIN, _L), lambda b: (b, 0, 0)),
            full(w1s.shape), full(b1c.shape),
            full(w2s.shape), full(b2c.shape),
            full(w3s.shape), full(b3c.shape),
            full(w4m.shape), full(b4c.shape),
            full(mask.shape),
        ],
        out_specs=pl.BlockSpec((1, 10, _H * _W), lambda b: (b, 0, 0)),
        scratch_shapes=[pltpu.VMEM((_SIZ, 2 * _MARGIN + _L), jnp.float32)],
        compiler_params=pltpu.CompilerParams(
            dimension_semantics=("parallel",)),
    )(xc, w1s, b1c, w2s, b2c, w3s, b3c, w4m, b4c, mask)

    # (B, 10, 256) is already channel-major; reshape to NCHW is layout-free.
    return out.reshape(B, 10, _H, _W)


def init_params(key):
    # Deterministic init mimicking PyTorch Conv2d defaults (uniform +-1/sqrt(fan_in)).
    def conv_init(k, cout, cin, kh, kw):
        k_w, k_b = jax.random.split(k)
        fan_in = cin * kh * kw
        bound = 1.0 / float(fan_in) ** 0.5
        w = jax.random.uniform(k_w, (cout, cin, kh, kw), jnp.float32, -bound, bound)
        b = jax.random.uniform(k_b, (cout,), jnp.float32, -bound, bound)
        return w, b

    keys = jax.random.split(key, 4)
    return {
        "conv1": conv_init(keys[0], _SIZ, _CIN, 2, 2),   # Conv2d(10, 16, 2, padding=1)
        "conv2": conv_init(keys[1], _SIZ, _SIZ, 2, 2),   # Conv2d(16, 16, 2, padding=0)
        "conv3": conv_init(keys[2], _SIZ, _SIZ, 3, 3),   # Conv2d(16, 16, 3, padding=1)
        "conv4": conv_init(keys[3], 10, _SIZ, 1, 1),     # Conv2d(16, 10, 1)
    }


if __name__ == "__main__":
    key = jax.random.PRNGKey(0)
    k_params, k_x = jax.random.split(key)
    params = init_params(k_params)
    # Input channels = 10 are fixed by the module; small batch/spatial.
    x = jax.random.normal(k_x, (2, 10, 16, 16), jnp.float32)  # NCHW
    y = jax.jit(task368_forward)(params, x)
    y = jax.block_until_ready(y)
    assert y.shape == (2, 10, 16, 16) and y.dtype == jnp.float32
    print("KERNEL_OK")
</pallas_src>

<mosaic_0001>
module attributes {stable_mosaic.version = 11 : i64} {
  func.func @_net_kernel(%arg0: i32, %arg1: memref<1x10x400xf32, #tpu.memory_space<vmem>>, %arg2: memref<4x16x10xf32, #tpu.memory_space<vmem>>, %arg3: memref<16x1xf32, #tpu.memory_space<vmem>>, %arg4: memref<4x16x16xf32, #tpu.memory_space<vmem>>, %arg5: memref<16x1xf32, #tpu.memory_space<vmem>>, %arg6: memref<9x16x16xf32, #tpu.memory_space<vmem>>, %arg7: memref<16x1xf32, #tpu.memory_space<vmem>>, %arg8: memref<10x16xf32, #tpu.memory_space<vmem>>, %arg9: memref<10x1xf32, #tpu.memory_space<vmem>>, %arg10: memref<1x400xf32, #tpu.memory_space<vmem>>, %arg11: memref<1x10x256xf32, #tpu.memory_space<vmem>>, %arg12: memref<16x464xf32, #tpu.memory_space<vmem>>) attributes {dimension_semantics = [#tpu.dimension_semantics<parallel>], iteration_bounds = array<i64: 2>, scalar_prefetch = 0 : i64, scratch_operands = 1 : i64, tpu.core_type = #tpu.core_type<tc>, window_params = [{transform_indices = @transform_0, window_bounds = array<i64: 1, 10, 400>}, {pipeline_mode = #tpu.pipeline_mode<synchronous>, transform_indices = @transform_1, window_bounds = array<i64: 4, 16, 10>}, {pipeline_mode = #tpu.pipeline_mode<synchronous>, transform_indices = @transform_2, window_bounds = array<i64: 16, 1>}, {pipeline_mode = #tpu.pipeline_mode<synchronous>, transform_indices = @transform_3, window_bounds = array<i64: 4, 16, 16>}, {pipeline_mode = #tpu.pipeline_mode<synchronous>, transform_indices = @transform_4, window_bounds = array<i64: 16, 1>}, {pipeline_mode = #tpu.pipeline_mode<synchronous>, transform_indices = @transform_5, window_bounds = array<i64: 9, 16, 16>}, {pipeline_mode = #tpu.pipeline_mode<synchronous>, transform_indices = @transform_6, window_bounds = array<i64: 16, 1>}, {pipeline_mode = #tpu.pipeline_mode<synchronous>, transform_indices = @transform_7, window_bounds = array<i64: 10, 16>}, {pipeline_mode = #tpu.pipeline_mode<synchronous>, transform_indices = @transform_8, window_bounds = array<i64: 10, 1>}, {pipeline_mode = #tpu.pipeline_mode<synchronous>, transform_indices = @transform_9, window_bounds = array<i64: 1, 400>}, {transform_indices = @transform_10, window_bounds = array<i64: 1, 10, 256>}]} {
    %c0 = arith.constant 0 : index
    %c0_0 = arith.constant 0 : index
    %c0_1 = arith.constant 0 : index
    %0 = vector.load %arg1[%c0, %c0_0, %c0_1] : memref<1x10x400xf32, #tpu.memory_space<vmem>>, vector<1x10x400xf32>
    %1 = vector.shape_cast %0 : vector<1x10x400xf32> to vector<10x400xf32>
    %c0_2 = arith.constant 0 : index
    %c32 = arith.constant 32 : index
    %2 = vector.load %arg12[%c0_2, %c32] : memref<16x464xf32, #tpu.memory_space<vmem>>, vector<10x400xf32>
    tpu.vector_store %arg12[%c0_2, %c32], %1 {strides = array<i32>} : memref<16x464xf32, #tpu.memory_space<vmem>>, vector<10x400xf32>,
    %c0_3 = arith.constant 0 : index
    %c11 = arith.constant 11 : index
    %3 = vector.load %arg12[%c0_3, %c11] : memref<16x464xf32, #tpu.memory_space<vmem>>, vector<10x400xf32>
    %c0_4 = arith.constant 0 : index
    %c0_5 = arith.constant 0 : index
    %c0_6 = arith.constant 0 : index
    %4 = vector.load %arg2[%c0_4, %c0_5, %c0_6] : memref<4x16x10xf32, #tpu.memory_space<vmem>>, vector<1x16x10xf32>
    %5 = vector.shape_cast %4 : vector<1x16x10xf32> to vector<16x10xf32>
    %cst = arith.constant dense<0.000000e+00> : vector<16x400xf32>
    %6 = tpu.matmul %5, %3, %cst {dimension_numbers = #tpu.dot_dimension_numbers<[1], [0], [0], [1], [0, 0, 1, 1], [], []>} : vector<16x10xf32>, vector<10x400xf32>, vector<16x400xf32> -> vector<16x400xf32>
    %c0_7 = arith.constant 0 : index
    %c12 = arith.constant 12 : index
    %7 = vector.load %arg12[%c0_7, %c12] : memref<16x464xf32, #tpu.memory_space<vmem>>, vector<10x400xf32>
    %c1 = arith.constant 1 : index
    %c0_8 = arith.constant 0 : index
    %c0_9 = arith.constant 0 : index
    %8 = vector.load %arg2[%c1, %c0_8, %c0_9] : memref<4x16x10xf32, #tpu.memory_space<vmem>>, vector<1x16x10xf32>
    %9 = vector.shape_cast %8 : vector<1x16x10xf32> to vector<16x10xf32>
    %cst_10 = arith.constant dense<0.000000e+00> : vector<16x400xf32>
    %10 = tpu.matmul %9, %7, %cst_10 {dimension_numbers = #tpu.dot_dimension_numbers<[1], [0], [0], [1], [0, 0, 1, 1], [], []>} : vector<16x10xf32>, vector<10x400xf32>, vector<16x400xf32> -> vector<16x400xf32>
    %11 = arith.addf %6, %10 : vector<16x400xf32>
    %c0_11 = arith.constant 0 : index
    %c31 = arith.constant 31 : index
    %12 = vector.load %arg12[%c0_11, %c31] : memref<16x464xf32, #tpu.memory_space<vmem>>, vector<10x400xf32>
    %c2 = arith.constant 2 : index
    %c0_12 = arith.constant 0 : index
    %c0_13 = arith.constant 0 : index
    %13 = vector.load %arg2[%c2, %c0_12, %c0_13] : memref<4x16x10xf32, #tpu.memory_space<vmem>>, vector<1x16x10xf32>
    %14 = vector.shape_cast %13 : vector<1x16x10xf32> to vector<16x10xf32>
    %cst_14 = arith.constant dense<0.000000e+00> : vector<16x400xf32>
    %15 = tpu.matmul %14, %12, %cst_14 {dimension_numbers = #tpu.dot_dimension_numbers<[1], [0], [0], [1], [0, 0, 1, 1], [], []>} : vector<16x10xf32>, vector<10x400xf32>, vector<16x400xf32> -> vector<16x400xf32>
    %16 = arith.addf %11, %15 : vector<16x400xf32>
    %c0_15 = arith.constant 0 : index
    %c32_16 = arith.constant 32 : index
    %17 = vector.load %arg12[%c0_15, %c32_16] : memref<16x464xf32, #tpu.memory_space<vmem>>, vector<10x400xf32>
    %c3 = arith.constant 3 : index
    %c0_17 = arith.constant 0 : index
    %c0_18 = arith.constant 0 : index
    %18 = vector.load %arg2[%c3, %c0_17, %c0_18] : memref<4x16x10xf32, #tpu.memory_space<vmem>>, vector<1x16x10xf32>
    %19 = vector.shape_cast %18 : vector<1x16x10xf32> to vector<16x10xf32>
    %cst_19 = arith.constant dense<0.000000e+00> : vector<16x400xf32>
    %20 = tpu.matmul %19, %17, %cst_19 {dimension_numbers = #tpu.dot_dimension_numbers<[1], [0], [0], [1], [0, 0, 1, 1], [], []>} : vector<16x10xf32>, vector<10x400xf32>, vector<16x400xf32> -> vector<16x400xf32>
    %21 = arith.addf %16, %20 : vector<16x400xf32>
    %c0_20 = arith.constant 0 : index
    %c0_21 = arith.constant 0 : index
    %22 = vector.load %arg3[%c0_20, %c0_21] : memref<16x1xf32, #tpu.memory_space<vmem>>, vector<16x1xf32>
    %23 = vector.broadcast %22 : vector<16x1xf32> to vector<16x400xf32>
    %24 = arith.addf %21, %23 : vector<16x400xf32>
    %cst_22 = arith.constant 0.000000e+00 : f32
    %25 = vector.broadcast %cst_22 : f32 to vector<16x400xf32>
    %26 = arith.maximumf %24, %25 : vector<16x400xf32>
    %c0_23 = arith.constant 0 : index
    %c32_24 = arith.constant 32 : index
    %27 = vector.load %arg12[%c0_23, %c32_24] : memref<16x464xf32, #tpu.memory_space<vmem>>, vector<16x400xf32>
    tpu.vector_store %arg12[%c0_23, %c32_24], %26 {strides = array<i32>} : memref<16x464xf32, #tpu.memory_space<vmem>>, vector<16x400xf32>,
    %c0_25 = arith.constant 0 : index
    %c0_26 = arith.constant 0 : index
    %28 = vector.load %arg10[%c0_25, %c0_26] : memref<1x400xf32, #tpu.memory_space<vmem>>, vector<1x400xf32>
    %c0_27 = arith.constant 0 : index
    %c32_28 = arith.constant 32 : index
    %29 = vector.load %arg12[%c0_27, %c32_28] : memref<16x464xf32, #tpu.memory_space<vmem>>, vector<16x400xf32>
    %c0_29 = arith.constant 0 : index
    %c0_30 = arith.constant 0 : index
    %c0_31 = arith.constant 0 : index
    %30 = vector.load %arg4[%c0_29, %c0_30, %c0_31] : memref<4x16x16xf32, #tpu.memory_space<vmem>>, vector<1x16x16xf32>
    %31 = vector.shape_cast %30 : vector<1x16x16xf32> to vector<16x16xf32>
    %cst_32 = arith.constant dense<0.000000e+00> : vector<16x400xf32>
    %32 = tpu.matmul %31, %29, %cst_32 {dimension_numbers = #tpu.dot_dimension_numbers<[1], [0], [0], [1], [0, 0, 1, 1], [], []>} : vector<16x16xf32>, vector<16x400xf32>, vector<16x400xf32> -> vector<16x400xf32>
    %c0_33 = arith.constant 0 : index
    %c33 = arith.constant 33 : index
    %33 = vector.load %arg12[%c0_33, %c33] : memref<16x464xf32, #tpu.memory_space<vmem>>, vector<16x400xf32>
    %c1_34 = arith.constant 1 : index
    %c0_35 = arith.constant 0 : index
    %c0_36 = arith.constant 0 : index
    %34 = vector.load %arg4[%c1_34, %c0_35, %c0_36] : memref<4x16x16xf32, #tpu.memory_space<vmem>>, vector<1x16x16xf32>
    %35 = vector.shape_cast %34 : vector<1x16x16xf32> to vector<16x16xf32>
    %cst_37 = arith.constant dense<0.000000e+00> : vector<16x400xf32>
    %36 = tpu.matmul %35, %33, %cst_37 {dimension_numbers = #tpu.dot_dimension_numbers<[1], [0], [0], [1], [0, 0, 1, 1], [], []>} : vector<16x16xf32>, vector<16x400xf32>, vector<16x400xf32> -> vector<16x400xf32>
    %37 = arith.addf %32, %36 : vector<16x400xf32>
    %c0_38 = arith.constant 0 : index
    %c52 = arith.constant 52 : index
    %38 = vector.load %arg12[%c0_38, %c52] : memref<16x464xf32, #tpu.memory_space<vmem>>, vector<16x400xf32>
    %c2_39 = arith.constant 2 : index
    %c0_40 = arith.constant 0 : index
    %c0_41 = arith.constant 0 : index
    %39 = vector.load %arg4[%c2_39, %c0_40, %c0_41] : memref<4x16x16xf32, #tpu.memory_space<vmem>>, vector<1x16x16xf32>
    %40 = vector.shape_cast %39 : vector<1x16x16xf32> to vector<16x16xf32>
    %cst_42 = arith.constant dense<0.000000e+00> : vector<16x400xf32>
    %41 = tpu.matmul %40, %38, %cst_42 {dimension_numbers = #tpu.dot_dimension_numbers<[1], [0], [0], [1], [0, 0, 1, 1], [], []>} : vector<16x16xf32>, vector<16x400xf32>, vector<16x400xf32> -> vector<16x400xf32>
    %42 = arith.addf %37, %41 : vector<16x400xf32>
    %c0_43 = arith.constant 0 : index
    %c53 = arith.constant 53 : index
    %43 = vector.load %arg12[%c0_43, %c53] : memref<16x464xf32, #tpu.memory_space<vmem>>, vector<16x400xf32>
    %c3_44 = arith.constant 3 : index
    %c0_45 = arith.constant 0 : index
    %c0_46 = arith.constant 0 : index
    %44 = vector.load %arg4[%c3_44, %c0_45, %c0_46] : memref<4x16x16xf32, #tpu.memory_space<vmem>>, vector<1x16x16xf32>
    %45 = vector.shape_cast %44 : vector<1x16x16xf32> to vector<16x16xf32>
    %cst_47 = arith.constant dense<0.000000e+00> : vector<16x400xf32>
    %46 = tpu.matmul %45, %43, %cst_47 {dimension_numbers = #tpu.dot_dimension_numbers<[1], [0], [0], [1], [0, 0, 1, 1], [], []>} : vector<16x16xf32>, vector<16x400xf32>, vector<16x400xf32> -> vector<16x400xf32>
    %47 = arith.addf %42, %46 : vector<16x400xf32>
    %c0_48 = arith.constant 0 : index
    %c0_49 = arith.constant 0 : index
    %48 = vector.load %arg5[%c0_48, %c0_49] : memref<16x1xf32, #tpu.memory_space<vmem>>, vector<16x1xf32>
    %49 = vector.broadcast %48 : vector<16x1xf32> to vector<16x400xf32>
    %50 = arith.addf %47, %49 : vector<16x400xf32>
    %cst_50 = arith.constant 0.000000e+00 : f32
    %51 = vector.broadcast %cst_50 : f32 to vector<16x400xf32>
    %52 = arith.maximumf %50, %51 : vector<16x400xf32>
    %53 = vector.broadcast %28 : vector<1x400xf32> to vector<16x400xf32>
    %54 = arith.mulf %52, %53 : vector<16x400xf32>
    %c0_51 = arith.constant 0 : index
    %c32_52 = arith.constant 32 : index
    %55 = vector.load %arg12[%c0_51, %c32_52] : memref<16x464xf32, #tpu.memory_space<vmem>>, vector<16x400xf32>
    tpu.vector_store %arg12[%c0_51, %c32_52], %54 {strides = array<i32>} : memref<16x464xf32, #tpu.memory_space<vmem>>, vector<16x400xf32>,
    %c0_53 = arith.constant 0 : index
    %c11_54 = arith.constant 11 : index
    %56 = vector.load %arg12[%c0_53, %c11_54] : memref<16x464xf32, #tpu.memory_space<vmem>>, vector<16x400xf32>
    %c0_55 = arith.constant 0 : index
    %c0_56 = arith.constant 0 : index
    %c0_57 = arith.constant 0 : index
    %57 = vector.load %arg6[%c0_55, %c0_56, %c0_57] : memref<9x16x16xf32, #tpu.memory_space<vmem>>, vector<1x16x16xf32>
    %58 = vector.shape_cast %57 : vector<1x16x16xf32> to vector<16x16xf32>
    %cst_58 = arith.constant dense<0.000000e+00> : vector<16x400xf32>
    %59 = tpu.matmul %58, %56, %cst_58 {dimension_numbers = #tpu.dot_dimension_numbers<[1], [0], [0], [1], [0, 0, 1, 1], [], []>} : vector<16x16xf32>, vector<16x400xf32>, vector<16x400xf32> -> vector<16x400xf32>
    %c0_59 = arith.constant 0 : index
    %c12_60 = arith.constant 12 : index
    %60 = vector.load %arg12[%c0_59, %c12_60] : memref<16x464xf32, #tpu.memory_space<vmem>>, vector<16x400xf32>
    %c1_61 = arith.constant 1 : index
    %c0_62 = arith.constant 0 : index
    %c0_63 = arith.constant 0 : index
    %61 = vector.load %arg6[%c1_61, %c0_62, %c0_63] : memref<9x16x16xf32, #tpu.memory_space<vmem>>, vector<1x16x16xf32>
    %62 = vector.shape_cast %61 : vector<1x16x16xf32> to vector<16x16xf32>
    %cst_64 = arith.constant dense<0.000000e+00> : vector<16x400xf32>
    %63 = tpu.matmul %62, %60, %cst_64 {dimension_numbers = #tpu.dot_dimension_numbers<[1], [0], [0], [1], [0, 0, 1, 1], [], []>} : vector<16x16xf32>, vector<16x400xf32>, vector<16x400xf32> -> vector<16x400xf32>
    %64 = arith.addf %59, %63 : vector<16x400xf32>
    %c0_65 = arith.constant 0 : index
    %c13 = arith.constant 13 : index
    %65 = vector.load %arg12[%c0_65, %c13] : memref<16x464xf32, #tpu.memory_space<vmem>>, vector<16x400xf32>
    %c2_66 = arith.constant 2 : index
    %c0_67 = arith.constant 0 : index
    %c0_68 = arith.constant 0 : index
    %66 = vector.load %arg6[%c2_66, %c0_67, %c0_68] : memref<9x16x16xf32, #tpu.memory_space<vmem>>, vector<1x16x16xf32>
    %67 = vector.shape_cast %66 : vector<1x16x16xf32> to vector<16x16xf32>
    %cst_69 = arith.constant dense<0.000000e+00> : vector<16x400xf32>
    %68 = tpu.matmul %67, %65, %cst_69 {dimension_numbers = #tpu.dot_dimension_numbers<[1], [0], [0], [1], [0, 0, 1, 1], [], []>} : vector<16x16xf32>, vector<16x400xf32>, vector<16x400xf32> -> vector<16x400xf32>
    %69 = arith.addf %64, %68 : vector<16x400xf32>
    %c0_70 = arith.constant 0 : index
    %c31_71 = arith.constant 31 : index
    %70 = vector.load %arg12[%c0_70, %c31_71] : memref<16x464xf32, #tpu.memory_space<vmem>>, vector<16x400xf32>
    %c3_72 = arith.constant 3 : index
    %c0_73 = arith.constant 0 : index
    %c0_74 = arith.constant 0 : index
    %71 = vector.load %arg6[%c3_72, %c0_73, %c0_74] : memref<9x16x16xf32, #tpu.memory_space<vmem>>, vector<1x16x16xf32>
    %72 = vector.shape_cast %71 : vector<1x16x16xf32> to vector<16x16xf32>
    %cst_75 = arith.constant dense<0.000000e+00> : vector<16x400xf32>
    %73 = tpu.matmul %72, %70, %cst_75 {dimension_numbers = #tpu.dot_dimension_numbers<[1], [0], [0], [1], [0, 0, 1, 1], [], []>} : vector<16x16xf32>, vector<16x400xf32>, vector<16x400xf32> -> vector<16x400xf32>
    %74 = arith.addf %69, %73 : vector<16x400xf32>
    %c0_76 = arith.constant 0 : index
    %c32_77 = arith.constant 32 : index
    %75 = vector.load %arg12[%c0_76, %c32_77] : memref<16x464xf32, #tpu.memory_space<vmem>>, vector<16x400xf32>
    %c4 = arith.constant 4 : index
    %c0_78 = arith.constant 0 : index
    %c0_79 = arith.constant 0 : index
    %76 = vector.load %arg6[%c4, %c0_78, %c0_79] : memref<9x16x16xf32, #tpu.memory_space<vmem>>, vector<1x16x16xf32>
    %77 = vector.shape_cast %76 : vector<1x16x16xf32> to vector<16x16xf32>
    %cst_80 = arith.constant dense<0.000000e+00> : vector<16x400xf32>
    %78 = tpu.matmul %77, %75, %cst_80 {dimension_numbers = #tpu.dot_dimension_numbers<[1], [0], [0], [1], [0, 0, 1, 1], [], []>} : vector<16x16xf32>, vector<16x400xf32>, vector<16x400xf32> -> vector<16x400xf32>
    %79 = arith.addf %74, %78 : vector<16x400xf32>
    %c0_81 = arith.constant 0 : index
    %c33_82 = arith.constant 33 : index
    %80 = vector.load %arg12[%c0_81, %c33_82] : memref<16x464xf32, #tpu.memory_space<vmem>>, vector<16x400xf32>
    %c5 = arith.constant 5 : index
    %c0_83 = arith.constant 0 : index
    %c0_84 = arith.constant 0 : index
    %81 = vector.load %arg6[%c5, %c0_83, %c0_84] : memref<9x16x16xf32, #tpu.memory_space<vmem>>, vector<1x16x16xf32>
    %82 = vector.shape_cast %81 : vector<1x16x16xf32> to vector<16x16xf32>
    %cst_85 = arith.constant dense<0.000000e+00> : vector<16x400xf32>
    %83 = tpu.matmul %82, %80, %cst_85 {dimension_numbers = #tpu.dot_dimension_numbers<[1], [0], [0], [1], [0, 0, 1, 1], [], []>} : vector<16x16xf32>, vector<16x400xf32>, vector<16x400xf32> -> vector<16x400xf32>
    %84 = arith.addf %79, %83 : vector<16x400xf32>
    %c0_86 = arith.constant 0 : index
    %c51 = arith.constant 51 : index
    %85 = vector.load %arg12[%c0_86, %c51] : memref<16x464xf32, #tpu.memory_space<vmem>>, vector<16x400xf32>
    %c6 = arith.constant 6 : index
    %c0_87 = arith.constant 0 : index
    %c0_88 = arith.constant 0 : index
    %86 = vector.load %arg6[%c6, %c0_87, %c0_88] : memref<9x16x16xf32, #tpu.memory_space<vmem>>, vector<1x16x16xf32>
    %87 = vector.shape_cast %86 : vector<1x16x16xf32> to vector<16x16xf32>
    %cst_89 = arith.constant dense<0.000000e+00> : vector<16x400xf32>
    %88 = tpu.matmul %87, %85, %cst_89 {dimension_numbers = #tpu.dot_dimension_numbers<[1], [0], [0], [1], [0, 0, 1, 1], [], []>} : vector<16x16xf32>, vector<16x400xf32>, vector<16x400xf32> -> vector<16x400xf32>
    %89 = arith.addf %84, %88 : vector<16x400xf32>
    %c0_90 = arith.constant 0 : index
    %c52_91 = arith.constant 52 : index
    %90 = vector.load %arg12[%c0_90, %c52_91] : memref<16x464xf32, #tpu.memory_space<vmem>>, vector<16x400xf32>
    %c7 = arith.constant 7 : index
    %c0_92 = arith.constant 0 : index
    %c0_93 = arith.constant 0 : index
    %91 = vector.load %arg6[%c7, %c0_92, %c0_93] : memref<9x16x16xf32, #tpu.memory_space<vmem>>, vector<1x16x16xf32>
    %92 = vector.shape_cast %91 : vector<1x16x16xf32> to vector<16x16xf32>
    %cst_94 = arith.constant dense<0.000000e+00> : vector<16x400xf32>
    %93 = tpu.matmul %92, %90, %cst_94 {dimension_numbers = #tpu.dot_dimension_numbers<[1], [0], [0], [1], [0, 0, 1, 1], [], []>} : vector<16x16xf32>, vector<16x400xf32>, vector<16x400xf32> -> vector<16x400xf32>
    %94 = arith.addf %89, %93 : vector<16x400xf32>
    %c0_95 = arith.constant 0 : index
    %c53_96 = arith.constant 53 : index
    %95 = vector.load %arg12[%c0_95, %c53_96] : memref<16x464xf32, #tpu.memory_space<vmem>>, vector<16x400xf32>
    %c8 = arith.constant 8 : index
    %c0_97 = arith.constant 0 : index
    %c0_98 = arith.constant 0 : index
    %96 = vector.load %arg6[%c8, %c0_97, %c0_98] : memref<9x16x16xf32, #tpu.memory_space<vmem>>, vector<1x16x16xf32>
    %97 = vector.shape_cast %96 : vector<1x16x16xf32> to vector<16x16xf32>
    %cst_99 = arith.constant dense<0.000000e+00> : vector<16x400xf32>
    %98 = tpu.matmul %97, %95, %cst_99 {dimension_numbers = #tpu.dot_dimension_numbers<[1], [0], [0], [1], [0, 0, 1, 1], [], []>} : vector<16x16xf32>, vector<16x400xf32>, vector<16x400xf32> -> vector<16x400xf32>
    %99 = arith.addf %94, %98 : vector<16x400xf32>
    %c0_100 = arith.constant 0 : index
    %c0_101 = arith.constant 0 : index
    %100 = vector.load %arg7[%c0_100, %c0_101] : memref<16x1xf32, #tpu.memory_space<vmem>>, vector<16x1xf32>
    %101 = vector.broadcast %100 : vector<16x1xf32> to vector<16x400xf32>
    %102 = arith.addf %99, %101 : vector<16x400xf32>
    %cst_102 = arith.constant 0.000000e+00 : f32
    %103 = vector.broadcast %cst_102 : f32 to vector<16x400xf32>
    %104 = arith.maximumf %102, %103 : vector<16x400xf32>
    %c0_103 = arith.constant 0 : index
    %c0_104 = arith.constant 0 : index
    %105 = vector.load %arg8[%c0_103, %c0_104] : memref<10x16xf32, #tpu.memory_space<vmem>>, vector<10x16xf32>
    %cst_105 = arith.constant dense<0.000000e+00> : vector<10x400xf32>
    %106 = tpu.matmul %105, %104, %cst_105 {dimension_numbers = #tpu.dot_dimension_numbers<[1], [0], [0], [1], [0, 0, 1, 1], [], []>} : vector<10x16xf32>, vector<16x400xf32>, vector<10x400xf32> -> vector<10x400xf32>
    %c0_106 = arith.constant 0 : index
    %c0_107 = arith.constant 0 : index
    %107 = vector.load %arg9[%c0_106, %c0_107] : memref<10x1xf32, #tpu.memory_space<vmem>>, vector<10x1xf32>
    %108 = vector.broadcast %107 : vector<10x1xf32> to vector<10x400xf32>
    %109 = arith.addf %106, %108 : vector<10x400xf32>
    %110 = vector.extract_strided_slice %109 {offsets = [0, 42], sizes = [10, 16], strides = [1, 1]} : vector<10x400xf32> to vector<10x16xf32>
    %c0_108 = arith.constant 0 : index
    %c0_109 = arith.constant 0 : index
    %c0_110 = arith.constant 0 : index
    %111 = vector.load %arg11[%c0_108, %c0_109, %c0_110] : memref<1x10x256xf32, #tpu.memory_space<vmem>>, vector<1x10x16xf32>
    %112 = vector.shape_cast %111 : vector<1x10x16xf32> to vector<10x16xf32>
    %113 = vector.shape_cast %110 : vector<10x16xf32> to vector<1x10x16xf32>
    tpu.vector_store %arg11[%c0_108, %c0_109, %c0_110], %113 {strides = array<i32>} : memref<1x10x256xf32, #tpu.memory_space<vmem>>, vector<1x10x16xf32>,
    %114 = vector.extract_strided_slice %109 {offsets = [0, 62], sizes = [10, 16], strides = [1, 1]} : vector<10x400xf32> to vector<10x16xf32>
    %c0_111 = arith.constant 0 : index
    %c0_112 = arith.constant 0 : index
    %c16 = arith.constant 16 : index
    %115 = vector.load %arg11[%c0_111, %c0_112, %c16] : memref<1x10x256xf32, #tpu.memory_space<vmem>>, vector<1x10x16xf32>
    %116 = vector.shape_cast %115 : vector<1x10x16xf32> to vector<10x16xf32>
    %117 = vector.shape_cast %114 : vector<10x16xf32> to vector<1x10x16xf32>
    tpu.vector_store %arg11[%c0_111, %c0_112, %c16], %117 {strides = array<i32>} : memref<1x10x256xf32, #tpu.memory_space<vmem>>, vector<1x10x16xf32>,
    %118 = vector.extract_strided_slice %109 {offsets = [0, 82], sizes = [10, 16], strides = [1, 1]} : vector<10x400xf32> to vector<10x16xf32>
    %c0_113 = arith.constant 0 : index
    %c0_114 = arith.constant 0 : index
    %c32_115 = arith.constant 32 : index
    %119 = vector.load %arg11[%c0_113, %c0_114, %c32_115] : memref<1x10x256xf32, #tpu.memory_space<vmem>>, vector<1x10x16xf32>
    %120 = vector.shape_cast %119 : vector<1x10x16xf32> to vector<10x16xf32>
    %121 = vector.shape_cast %118 : vector<10x16xf32> to vector<1x10x16xf32>
    tpu.vector_store %arg11[%c0_113, %c0_114, %c32_115], %121 {strides = array<i32>} : memref<1x10x256xf32, #tpu.memory_space<vmem>>, vector<1x10x16xf32>,
    %122 = vector.extract_strided_slice %109 {offsets = [0, 102], sizes = [10, 16], strides = [1, 1]} : vector<10x400xf32> to vector<10x16xf32>
    %c0_116 = arith.constant 0 : index
    %c0_117 = arith.constant 0 : index
    %c48 = arith.constant 48 : index
    %123 = vector.load %arg11[%c0_116, %c0_117, %c48] : memref<1x10x256xf32, #tpu.memory_space<vmem>>, vector<1x10x16xf32>
    %124 = vector.shape_cast %123 : vector<1x10x16xf32> to vector<10x16xf32>
    %125 = vector.shape_cast %122 : vector<10x16xf32> to vector<1x10x16xf32>
    tpu.vector_store %arg11[%c0_116, %c0_117, %c48], %125 {strides = array<i32>} : memref<1x10x256xf32, #tpu.memory_space<vmem>>, vector<1x10x16xf32>,
    %126 = vector.extract_strided_slice %109 {offsets = [0, 122], sizes = [10, 16], strides = [1, 1]} : vector<10x400xf32> to vector<10x16xf32>
    %c0_118 = arith.constant 0 : index
    %c0_119 = arith.constant 0 : index
    %c64 = arith.constant 64 : index
    %127 = vector.load %arg11[%c0_118, %c0_119, %c64] : memref<1x10x256xf32, #tpu.memory_space<vmem>>, vector<1x10x16xf32>
    %128 = vector.shape_cast %127 : vector<1x10x16xf32> to vector<10x16xf32>
    %129 = vector.shape_cast %126 : vector<10x16xf32> to vector<1x10x16xf32>
    tpu.vector_store %arg11[%c0_118, %c0_119, %c64], %129 {strides = array<i32>} : memref<1x10x256xf32, #tpu.memory_space<vmem>>, vector<1x10x16xf32>,
    %130 = vector.extract_strided_slice %109 {offsets = [0, 142], sizes = [10, 16], strides = [1, 1]} : vector<10x400xf32> to vector<10x16xf32>
    %c0_120 = arith.constant 0 : index
    %c0_121 = arith.constant 0 : index
    %c80 = arith.constant 80 : index
    %131 = vector.load %arg11[%c0_120, %c0_121, %c80] : memref<1x10x256xf32, #tpu.memory_space<vmem>>, vector<1x10x16xf32>
    %132 = vector.shape_cast %131 : vector<1x10x16xf32> to vector<10x16xf32>
    %133 = vector.shape_cast %130 : vector<10x16xf32> to vector<1x10x16xf32>
    tpu.vector_store %arg11[%c0_120, %c0_121, %c80], %133 {strides = array<i32>} : memref<1x10x256xf32, #tpu.memory_space<vmem>>, vector<1x10x16xf32>,
    %134 = vector.extract_strided_slice %109 {offsets = [0, 162], sizes = [10, 16], strides = [1, 1]} : vector<10x400xf32> to vector<10x16xf32>
    %c0_122 = arith.constant 0 : index
    %c0_123 = arith.constant 0 : index
    %c96 = arith.constant 96 : index
    %135 = vector.load %arg11[%c0_122, %c0_123, %c96] : memref<1x10x256xf32, #tpu.memory_space<vmem>>, vector<1x10x16xf32>
    %136 = vector.shape_cast %135 : vector<1x10x16xf32> to vector<10x16xf32>
    %137 = vector.shape_cast %134 : vector<10x16xf32> to vector<1x10x16xf32>
    tpu.vector_store %arg11[%c0_122, %c0_123, %c96], %137 {strides = array<i32>} : memref<1x10x256xf32, #tpu.memory_space<vmem>>, vector<1x10x16xf32>,
    %138 = vector.extract_strided_slice %109 {offsets = [0, 182], sizes = [10, 16], strides = [1, 1]} : vector<10x400xf32> to vector<10x16xf32>
    %c0_124 = arith.constant 0 : index
    %c0_125 = arith.constant 0 : index
    %c112 = arith.constant 112 : index
    %139 = vector.load %arg11[%c0_124, %c0_125, %c112] : memref<1x10x256xf32, #tpu.memory_space<vmem>>, vector<1x10x16xf32>
    %140 = vector.shape_cast %139 : vector<1x10x16xf32> to vector<10x16xf32>
    %141 = vector.shape_cast %138 : vector<10x16xf32> to vector<1x10x16xf32>
    tpu.vector_store %arg11[%c0_124, %c0_125, %c112], %141 {strides = array<i32>} : memref<1x10x256xf32, #tpu.memory_space<vmem>>, vector<1x10x16xf32>,
    %142 = vector.extract_strided_slice %109 {offsets = [0, 202], sizes = [10, 16], strides = [1, 1]} : vector<10x400xf32> to vector<10x16xf32>
    %c0_126 = arith.constant 0 : index
    %c0_127 = arith.constant 0 : index
    %c128 = arith.constant 128 : index
    %143 = vector.load %arg11[%c0_126, %c0_127, %c128] : memref<1x10x256xf32, #tpu.memory_space<vmem>>, vector<1x10x16xf32>
    %144 = vector.shape_cast %143 : vector<1x10x16xf32> to vector<10x16xf32>
    %145 = vector.shape_cast %142 : vector<10x16xf32> to vector<1x10x16xf32>
    tpu.vector_store %arg11[%c0_126, %c0_127, %c128], %145 {strides = array<i32>} : memref<1x10x256xf32, #tpu.memory_space<vmem>>, vector<1x10x16xf32>,
    %146 = vector.extract_strided_slice %109 {offsets = [0, 222], sizes = [10, 16], strides = [1, 1]} : vector<10x400xf32> to vector<10x16xf32>
    %c0_128 = arith.constant 0 : index
    %c0_129 = arith.constant 0 : index
    %c144 = arith.constant 144 : index
    %147 = vector.load %arg11[%c0_128, %c0_129, %c144] : memref<1x10x256xf32, #tpu.memory_space<vmem>>, vector<1x10x16xf32>
    %148 = vector.shape_cast %147 : vector<1x10x16xf32> to vector<10x16xf32>
    %149 = vector.shape_cast %146 : vector<10x16xf32> to vector<1x10x16xf32>
    tpu.vector_store %arg11[%c0_128, %c0_129, %c144], %149 {strides = array<i32>} : memref<1x10x256xf32, #tpu.memory_space<vmem>>, vector<1x10x16xf32>,
    %150 = vector.extract_strided_slice %109 {offsets = [0, 242], sizes = [10, 16], strides = [1, 1]} : vector<10x400xf32> to vector<10x16xf32>
    %c0_130 = arith.constant 0 : index
    %c0_131 = arith.constant 0 : index
    %c160 = arith.constant 160 : index
    %151 = vector.load %arg11[%c0_130, %c0_131, %c160] : memref<1x10x256xf32, #tpu.memory_space<vmem>>, vector<1x10x16xf32>
    %152 = vector.shape_cast %151 : vector<1x10x16xf32> to vector<10x16xf32>
    %153 = vector.shape_cast %150 : vector<10x16xf32> to vector<1x10x16xf32>
    tpu.vector_store %arg11[%c0_130, %c0_131, %c160], %153 {strides = array<i32>} : memref<1x10x256xf32, #tpu.memory_space<vmem>>, vector<1x10x16xf32>,
    %154 = vector.extract_strided_slice %109 {offsets = [0, 262], sizes = [10, 16], strides = [1, 1]} : vector<10x400xf32> to vector<10x16xf32>
    %c0_132 = arith.constant 0 : index
    %c0_133 = arith.constant 0 : index
    %c176 = arith.constant 176 : index
    %155 = vector.load %arg11[%c0_132, %c0_133, %c176] : memref<1x10x256xf32, #tpu.memory_space<vmem>>, vector<1x10x16xf32>
    %156 = vector.shape_cast %155 : vector<1x10x16xf32> to vector<10x16xf32>
    %157 = vector.shape_cast %154 : vector<10x16xf32> to vector<1x10x16xf32>
    tpu.vector_store %arg11[%c0_132, %c0_133, %c176], %157 {strides = array<i32>} : memref<1x10x256xf32, #tpu.memory_space<vmem>>, vector<1x10x16xf32>,
    %158 = vector.extract_strided_slice %109 {offsets = [0, 282], sizes = [10, 16], strides = [1, 1]} : vector<10x400xf32> to vector<10x16xf32>
    %c0_134 = arith.constant 0 : index
    %c0_135 = arith.constant 0 : index
    %c192 = arith.constant 192 : index
    %159 = vector.load %arg11[%c0_134, %c0_135, %c192] : memref<1x10x256xf32, #tpu.memory_space<vmem>>, vector<1x10x16xf32>
    %160 = vector.shape_cast %159 : vector<1x10x16xf32> to vector<10x16xf32>
    %161 = vector.shape_cast %158 : vector<10x16xf32> to vector<1x10x16xf32>
    tpu.vector_store %arg11[%c0_134, %c0_135, %c192], %161 {strides = array<i32>} : memref<1x10x256xf32, #tpu.memory_space<vmem>>, vector<1x10x16xf32>,
    %162 = vector.extract_strided_slice %109 {offsets = [0, 302], sizes = [10, 16], strides = [1, 1]} : vector<10x400xf32> to vector<10x16xf32>
    %c0_136 = arith.constant 0 : index
    %c0_137 = arith.constant 0 : index
    %c208 = arith.constant 208 : index
    %163 = vector.load %arg11[%c0_136, %c0_137, %c208] : memref<1x10x256xf32, #tpu.memory_space<vmem>>, vector<1x10x16xf32>
    %164 = vector.shape_cast %163 : vector<1x10x16xf32> to vector<10x16xf32>
    %165 = vector.shape_cast %162 : vector<10x16xf32> to vector<1x10x16xf32>
    tpu.vector_store %arg11[%c0_136, %c0_137, %c208], %165 {strides = array<i32>} : memref<1x10x256xf32, #tpu.memory_space<vmem>>, vector<1x10x16xf32>,
    %166 = vector.extract_strided_slice %109 {offsets = [0, 322], sizes = [10, 16], strides = [1, 1]} : vector<10x400xf32> to vector<10x16xf32>
    %c0_138 = arith.constant 0 : index
    %c0_139 = arith.constant 0 : index
    %c224 = arith.constant 224 : index
    %167 = vector.load %arg11[%c0_138, %c0_139, %c224] : memref<1x10x256xf32, #tpu.memory_space<vmem>>, vector<1x10x16xf32>
    %168 = vector.shape_cast %167 : vector<1x10x16xf32> to vector<10x16xf32>
    %169 = vector.shape_cast %166 : vector<10x16xf32> to vector<1x10x16xf32>
    tpu.vector_store %arg11[%c0_138, %c0_139, %c224], %169 {strides = array<i32>} : memref<1x10x256xf32, #tpu.memory_space<vmem>>, vector<1x10x16xf32>,
    %170 = vector.extract_strided_slice %109 {offsets = [0, 342], sizes = [10, 16], strides = [1, 1]} : vector<10x400xf32> to vector<10x16xf32>
    %c0_140 = arith.constant 0 : index
    %c0_141 = arith.constant 0 : index
    %c240 = arith.constant 240 : index
    %171 = vector.load %arg11[%c0_140, %c0_141, %c240] : memref<1x10x256xf32, #tpu.memory_space<vmem>>, vector<1x10x16xf32>
    %172 = vector.shape_cast %171 : vector<1x10x16xf32> to vector<10x16xf32>
    %173 = vector.shape_cast %170 : vector<10x16xf32> to vector<1x10x16xf32>
    tpu.vector_store %arg11[%c0_140, %c0_141, %c240], %173 {strides = array<i32>} : memref<1x10x256xf32, #tpu.memory_space<vmem>>, vector<1x10x16xf32>,
    return
  }
  func.func @transform_0(%arg0: i32) -> (i32, i32, i32) {
    %c0_i32 = arith.constant 0 : i32
    %c0_i32_0 = arith.constant 0 : i32
    %c0_i32_1 = arith.constant 0 : i32
    return %arg0, %c0_i32, %c0_i32_0 : i32, i32, i32
  }
  func.func @transform_1(%arg0: i32) -> (i32, i32, i32) {
    %c0_i32 = arith.constant 0 : i32
    %c0_i32_0 = arith.constant 0 : i32
    %c0_i32_1 = arith.constant 0 : i32
    %c0_i32_2 = arith.constant 0 : i32
    return %c0_i32, %c0_i32_0, %c0_i32_1 : i32, i32, i32
  }
  func.func @transform_2(%arg0: i32) -> (i32, i32) {
    %c0_i32 = arith.constant 0 : i32
    %c0_i32_0 = arith.constant 0 : i32
    %c0_i32_1 = arith.constant 0 : i32
    return %c0_i32, %c0_i32_0 : i32, i32
  }
  func.func @transform_3(%arg0: i32) -> (i32, i32, i32) {
    %c0_i32 = arith.constant 0 : i32
    %c0_i32_0 = arith.constant 0 : i32
    %c0_i32_1 = arith.constant 0 : i32
    %c0_i32_2 = arith.constant 0 : i32
    return %c0_i32, %c0_i32_0, %c0_i32_1 : i32, i32, i32
  }
  func.func @transform_4(%arg0: i32) -> (i32, i32) {
    %c0_i32 = arith.constant 0 : i32
    %c0_i32_0 = arith.constant 0 : i32
    %c0_i32_1 = arith.constant 0 : i32
    return %c0_i32, %c0_i32_0 : i32, i32
  }
  func.func @transform_5(%arg0: i32) -> (i32, i32, i32) {
    %c0_i32 = arith.constant 0 : i32
    %c0_i32_0 = arith.constant 0 : i32
    %c0_i32_1 = arith.constant 0 : i32
    %c0_i32_2 = arith.constant 0 : i32
    return %c0_i32, %c0_i32_0, %c0_i32_1 : i32, i32, i32
  }
  func.func @transform_6(%arg0: i32) -> (i32, i32) {
    %c0_i32 = arith.constant 0 : i32
    %c0_i32_0 = arith.constant 0 : i32
    %c0_i32_1 = arith.constant 0 : i32
    return %c0_i32, %c0_i32_0 : i32, i32
  }
  func.func @transform_7(%arg0: i32) -> (i32, i32) {
    %c0_i32 = arith.constant 0 : i32
    %c0_i32_0 = arith.constant 0 : i32
    %c0_i32_1 = arith.constant 0 : i32
    return %c0_i32, %c0_i32_0 : i32, i32
  }
  func.func @transform_8(%arg0: i32) -> (i32, i32) {
    %c0_i32 = arith.constant 0 : i32
    %c0_i32_0 = arith.constant 0 : i32
    %c0_i32_1 = arith.constant 0 : i32
    return %c0_i32, %c0_i32_0 : i32, i32
  }
  func.func @transform_9(%arg0: i32) -> (i32, i32) {
    %c0_i32 = arith.constant 0 : i32
    %c0_i32_0 = arith.constant 0 : i32
    %c0_i32_1 = arith.constant 0 : i32
    return %c0_i32, %c0_i32_0 : i32, i32
  }
  func.func @transform_10(%arg0: i32) -> (i32, i32, i32) {
    %c0_i32 = arith.constant 0 : i32
    %c0_i32_0 = arith.constant 0 : i32
    %c0_i32_1 = arith.constant 0 : i32
    return %arg0, %c0_i32, %c0_i32_0 : i32, i32, i32
  }
}

</mosaic_0001>

<llo_original>
// kernel: task368_forward.1
$region0: #{task368_forward.1}
  #allocation0 [shape = 'u32[]', space=smem, size = 0x4, offset = 0x4, fixed_abs, tag = 'smem constant byte address 0x4 - core index']
  #allocation1 [shape = 'u32[144,128]{1,0:T(1,128)}', space=vmem, size = 0x12000, scoped, tag = 'internal scratch']
  #allocation2 [shape = 'f32[16,464]{1,0:T(8,128)}', space=vmem, size = 0x8000, scoped, tag = 'scratch operand']
  %s0 = inlined_call_operand.vmem [shape: f32[2,10,400], index: 0, kind: input, shape index: {}]
  %s1 = inlined_call_operand.vmem [shape: f32[4,16,10], index: 1, kind: input, shape index: {}]
  %s2 = inlined_call_operand.vmem [shape: f32[16,1], index: 2, kind: input, shape index: {}]
  %s3 = inlined_call_operand.vmem [shape: f32[4,16,16], index: 3, kind: input, shape index: {}]
  %s4 = inlined_call_operand.vmem [shape: f32[16,1], index: 4, kind: input, shape index: {}]
  %s5 = inlined_call_operand.vmem [shape: f32[9,16,16], index: 5, kind: input, shape index: {}]
  %s6 = inlined_call_operand.vmem [shape: f32[16,1], index: 6, kind: input, shape index: {}]
  %s7 = inlined_call_operand.vmem [shape: f32[10,16], index: 7, kind: input, shape index: {}]
  %s8 = inlined_call_operand.vmem [shape: f32[10,1], index: 8, kind: input, shape index: {}]
  %s9 = inlined_call_operand.vmem [shape: f32[1,400], index: 9, kind: input, shape index: {}]
  %s10 = inlined_call_operand.vmem [shape: f32[2,10,256], index: 10, kind: output, shape index: {}]
  %s11 = sld [smem:[#allocation0]]
  $region73: #{task368_forward.1} parent=0
    _
  %s13 = ssub.s32 1, %s11
  %s14 = scalar_select 0, %s13, %s11
  loop: start=0, step=1, limit=4
  $region2: #{task368_forward.1} parent=0 // loop_pre_header
    _
  $region3: #{task368_forward.1} parent=0 // loop_header
    %s16 = sphi 0, %s20
    %p17 = scmp.ge.s32.totalorder %s16, 4
    %s26 = sphi 0, %s28
    %s29 = sphi 0, %s26
    %s30 = sphi 0, %s29
    %s46 = sphi 0, %s30
    %s50 = sphi 0, %s50
    %s52 = sphi 0, %s50
    %s53 = sphi 0, %s52
    %s67 = sphi 0, %s53
    %s71 = sphi 0, %s71
    %s73 = sphi 0, %s71
    %s74 = sphi 0, %s73
    %s88 = sphi 0, %s74
    %s92 = sphi 0, %s92
    %s94 = sphi 0, %s92
    %s95 = sphi 0, %s94
    %s109 = sphi 0, %s95
    %s113 = sphi 0, %s113
    %s115 = sphi 0, %s113
    %s116 = sphi 0, %s115
    %s130 = sphi 0, %s116
    %s134 = sphi 0, %s134
    %s136 = sphi 0, %s134
    %s137 = sphi 0, %s136
    %s151 = sphi 0, %s137
    %s155 = sphi 0, %s155
    %s157 = sphi 0, %s155
    %s158 = sphi 0, %s157
    %s172 = sphi 0, %s158
    %s176 = sphi 0, %s176
    %s178 = sphi 0, %s176
    %s179 = sphi 0, %s178
    %s193 = sphi 0, %s179
    %s197 = sphi 0, %s197
    %s199 = sphi 0, %s197
    %s200 = sphi 0, %s199
    %s214 = sphi 0, %s200
    %s218 = sphi 0, %s218
    %s220 = sphi 0, %s218
    %s221 = sphi 0, %s220
    %s235 = sphi 0, %s221
    %s241 = sphi 0, %s243
    %s244 = sphi 0, %s241
    %s245 = sphi 0, %s244
    %s261 = sphi 0, %s245
  $region4: #{task368_forward.1} parent=0 // loop_header_branch
    %19 = sbr.rel (%p17) target = $region8
  $region5: #{task368_forward.1} parent=0 // loop_body
    %s21 = ssub.s32 %s16, 1
    %s22 = ssub.s32 %s16, 2
    %s23 = sadd.s32 %s16, 1
    %s24 = ssub.s32 %s16, %s23
    %p25 = scmp.eq.s32.totalorder %s24, 0
    %s27 = sadd.s32 %s26, 1
    %s28 = scalar_select %p25, %s26, %s27
    %p31 = pneg %p25
    %p32 = scmp.eq.s32.totalorder %s16, 1
    %p33 = por %p31, %p32
    %p34 = scmp.ne.s32.totalorder %s26, %s29
    %p35 = scmp.eq.s32.totalorder %s16, 0
    %p36 = por %p34, %p35
    %p37 = scmp.ne.s32.totalorder %s26, %s29
    %p38 = scmp.eq.s32.totalorder %s21, 1
    %p39 = por %p37, %p38
    %p40 = scmp.ne.s32.totalorder %s29, %s30
    %p41 = scmp.eq.s32.totalorder %s21, 0
    %p42 = por %p40, %p41
    %p43 = scmp.ne.s32.totalorder %s29, %s30
    %p44 = scmp.eq.s32.totalorder %s22, 1
    %p45 = por %p43, %p44
    %p47 = scmp.ne.s32.totalorder %s30, %s46
    %p48 = scmp.eq.s32.totalorder %s22, 0
    %p49 = por %p47, %p48
    %s51 = sadd.s32 %s50, 1
    %p54 = scmp.eq.s32.totalorder %s16, 1
    %p55 = scmp.ne.s32.totalorder %s50, %s52
    %p56 = scmp.eq.s32.totalorder %s16, 0
    %p57 = por %p55, %p56
    %p58 = scmp.ne.s32.totalorder %s50, %s52
    %p59 = scmp.eq.s32.totalorder %s21, 1
    %p60 = por %p58, %p59
    %p61 = scmp.ne.s32.totalorder %s52, %s53
    %p62 = scmp.eq.s32.totalorder %s21, 0
    %p63 = por %p61, %p62
    %p64 = scmp.ne.s32.totalorder %s52, %s53
    %p65 = scmp.eq.s32.totalorder %s22, 1
    %p66 = por %p64, %p65
    %p68 = scmp.ne.s32.totalorder %s53, %s67
    %p69 = scmp.eq.s32.totalorder %s22, 0
    %p70 = por %p68, %p69
    %s72 = sadd.s32 %s71, 1
    %p75 = scmp.eq.s32.totalorder %s16, 1
    %p76 = scmp.ne.s32.totalorder %s71, %s73
    %p77 = scmp.eq.s32.totalorder %s16, 0
    %p78 = por %p76, %p77
    %p79 = scmp.ne.s32.totalorder %s71, %s73
    %p80 = scmp.eq.s32.totalorder %s21, 1
    %p81 = por %p79, %p80
    %p82 = scmp.ne.s32.totalorder %s73, %s74
    %p83 = scmp.eq.s32.totalorder %s21, 0
    %p84 = por %p82, %p83
    %p85 = scmp.ne.s32.totalorder %s73, %s74
    %p86 = scmp.eq.s32.totalorder %s22, 1
    %p87 = por %p85, %p86
    %p89 = scmp.ne.s32.totalorder %s74, %s88
    %p90 = scmp.eq.s32.totalorder %s22, 0
    %p91 = por %p89, %p90
    %s93 = sadd.s32 %s92, 1
    %p96 = scmp.eq.s32.totalorder %s16, 1
    %p97 = scmp.ne.s32.totalorder %s92, %s94
    %p98 = scmp.eq.s32.totalorder %s16, 0
    %p99 = por %p97, %p98
    %p100 = scmp.ne.s32.totalorder %s92, %s94
    %p101 = scmp.eq.s32.totalorder %s21, 1
    %p102 = por %p100, %p101
    %p103 = scmp.ne.s32.totalorder %s94, %s95
    %p104 = scmp.eq.s32.totalorder %s21, 0
    %p105 = por %p103, %p104
    %p106 = scmp.ne.s32.totalorder %s94, %s95
    %p107 = scmp.eq.s32.totalorder %s22, 1
    %p108 = por %p106, %p107
    %p110 = scmp.ne.s32.totalorder %s95, %s109
    %p111 = scmp.eq.s32.totalorder %s22, 0
    %p112 = por %p110, %p111
    %s114 = sadd.s32 %s113, 1
    %p117 = scmp.eq.s32.totalorder %s16, 1
    %p118 = scmp.ne.s32.totalorder %s113, %s115
    %p119 = scmp.eq.s32.totalorder %s16, 0
    %p120 = por %p118, %p119
    %p121 = scmp.ne.s32.totalorder %s113, %s115
    %p122 = scmp.eq.s32.totalorder %s21, 1
    %p123 = por %p121, %p122
    %p124 = scmp.ne.s32.totalorder %s115, %s116
    %p125 = scmp.eq.s32.totalorder %s21, 0
    %p126 = por %p124, %p125
    %p127 = scmp.ne.s32.totalorder %s115, %s116
    %p128 = scmp.eq.s32.totalorder %s22, 1
    %p129 = por %p127, %p128
    %p131 = scmp.ne.s32.totalorder %s116, %s130
    %p132 = scmp.eq.s32.totalorder %s22, 0
    %p133 = por %p131, %p132
    %s135 = sadd.s32 %s134, 1
    %p138 = scmp.eq.s32.totalorder %s16, 1
    %p139 = scmp.ne.s32.totalorder %s134, %s136
    %p140 = scmp.eq.s32.totalorder %s16, 0
    %p141 = por %p139, %p140
    %p142 = scmp.ne.s32.totalorder %s134, %s136
    %p143 = scmp.eq.s32.totalorder %s21, 1
    %p144 = por %p142, %p143
    %p145 = scmp.ne.s32.totalorder %s136, %s137
    %p146 = scmp.eq.s32.totalorder %s21, 0
    %p147 = por %p145, %p146
    %p148 = scmp.ne.s32.totalorder %s136, %s137
    %p149 = scmp.eq.s32.totalorder %s22, 1
    %p150 = por %p148, %p149
    %p152 = scmp.ne.s32.totalorder %s137, %s151
    %p153 = scmp.eq.s32.totalorder %s22, 0
    %p154 = por %p152, %p153
    %s156 = sadd.s32 %s155, 1
    %p159 = scmp.eq.s32.totalorder %s16, 1
    %p160 = scmp.ne.s32.totalorder %s155, %s157
    %p161 = scmp.eq.s32.totalorder %s16, 0
    %p162 = por %p160, %p161
    %p163 = scmp.ne.s32.totalorder %s155, %s157
    %p164 = scmp.eq.s32.totalorder %s21, 1
    %p165 = por %p163, %p164
    %p166 = scmp.ne.s32.totalorder %s157, %s158
    %p167 = scmp.eq.s32.totalorder %s21, 0
    %p168 = por %p166, %p167
    %p169 = scmp.ne.s32.totalorder %s157, %s158
    %p170 = scmp.eq.s32.totalorder %s22, 1
    %p171 = por %p169, %p170
    %p173 = scmp.ne.s32.totalorder %s158, %s172
    %p174 = scmp.eq.s32.totalorder %s22, 0
    %p175 = por %p173, %p174
    %s177 = sadd.s32 %s176, 1
    %p180 = scmp.eq.s32.totalorder %s16, 1
    %p181 = scmp.ne.s32.totalorder %s176, %s178
    %p182 = scmp.eq.s32.totalorder %s16, 0
    %p183 = por %p181, %p182
    %p184 = scmp.ne.s32.totalorder %s176, %s178
    %p185 = scmp.eq.s32.totalorder %s21, 1
    %p186 = por %p184, %p185
    %p187 = scmp.ne.s32.totalorder %s178, %s179
    %p188 = scmp.eq.s32.totalorder %s21, 0
    %p189 = por %p187, %p188
    %p190 = scmp.ne.s32.totalorder %s178, %s179
    %p191 = scmp.eq.s32.totalorder %s22, 1
    %p192 = por %p190, %p191
    %p194 = scmp.ne.s32.totalorder %s179, %s193
    %p195 = scmp.eq.s32.totalorder %s22, 0
    %p196 = por %p194, %p195
    %s198 = sadd.s32 %s197, 1
    %p201 = scmp.eq.s32.totalorder %s16, 1
    %p202 = scmp.ne.s32.totalorder %s197, %s199
    %p203 = scmp.eq.s32.totalorder %s16, 0
    %p204 = por %p202, %p203
    %p205 = scmp.ne.s32.totalorder %s197, %s199
    %p206 = scmp.eq.s32.totalorder %s21, 1
    %p207 = por %p205, %p206
    %p208 = scmp.ne.s32.totalorder %s199, %s200
    %p209 = scmp.eq.s32.totalorder %s21, 0
    %p210 = por %p208, %p209
    %p211 = scmp.ne.s32.totalorder %s199, %s200
    %p212 = scmp.eq.s32.totalorder %s22, 1
    %p213 = por %p211, %p212
    %p215 = scmp.ne.s32.totalorder %s200, %s214
    %p216 = scmp.eq.s32.totalorder %s22, 0
    %p217 = por %p215, %p216
    %s219 = sadd.s32 %s218, 1
    %p222 = scmp.eq.s32.totalorder %s16, 1
    %p223 = scmp.ne.s32.totalorder %s218, %s220
    %p224 = scmp.eq.s32.totalorder %s16, 0
    %p225 = por %p223, %p224
    %p226 = scmp.ne.s32.totalorder %s218, %s220
    %p227 = scmp.eq.s32.totalorder %s21, 1
    %p228 = por %p226, %p227
    %p229 = scmp.ne.s32.totalorder %s220, %s221
    %p230 = scmp.eq.s32.totalorder %s21, 0
    %p231 = por %p229, %p230
    %p232 = scmp.ne.s32.totalorder %s220, %s221
    %p233 = scmp.eq.s32.totalorder %s22, 1
    %p234 = por %p232, %p233
    %p236 = scmp.ne.s32.totalorder %s221, %s235
    %p237 = scmp.eq.s32.totalorder %s22, 0
    %p238 = por %p236, %p237
    %s239 = ssub.s32 %s16, %s23
    %p240 = scmp.eq.s32.totalorder %s239, 0
    %s242 = sadd.s32 %s241, 1
    %s243 = scalar_select %p240, %s241, %s242
    %p246 = pneg %p240
    %p247 = scmp.eq.s32.totalorder %s16, 1
    %p248 = por %p246, %p247
    %p249 = scmp.ne.s32.totalorder %s241, %s244
    %p250 = scmp.eq.s32.totalorder %s16, 0
    %p251 = por %p249, %p250
    %p252 = scmp.ne.s32.totalorder %s241, %s244
    %p253 = scmp.eq.s32.totalorder %s21, 1
    %p254 = por %p252, %p253
    %p255 = scmp.ne.s32.totalorder %s244, %s245
    %p256 = scmp.eq.s32.totalorder %s21, 0
    %p257 = por %p255, %p256
    %p258 = scmp.ne.s32.totalorder %s244, %s245
    %p259 = scmp.eq.s32.totalorder %s22, 1
    %p260 = por %p258, %p259
    %p262 = scmp.ne.s32.totalorder %s245, %s261
    %p263 = scmp.eq.s32.totalorder %s22, 0
    %p264 = por %p262, %p263
    %p265 = scmp.le.s32.totalorder 1, %s16
    %p266 = scmp.lt.s32.totalorder %s16, 3
    %p267 = pnand %p265, %p266
    %p268 = pneg %p267
    // Predicated region
    $region9: #{task368_forward.1} parent=5 // pred_check
      _
    $region10: #{task368_forward.1} parent=5 // pred_check_branch
      %270 = sbr.rel (%p267) target = $region12
    $region11: #{task368_forward.1} parent=5 // pred_region
      %s271 = ssub.s32 %s16, 1
      // Predicated region
      $region13: #{task368_forward.1} parent=11 // pred_check
        %p272 = pneg %p63
      $region14: #{task368_forward.1} parent=11 // pred_check_branch
        %274 = sbr.rel (%p272) target = $region16
      $region15: #{task368_forward.1} parent=11 // pred_region
        _
      $region16: #{task368_forward.1} parent=11 // pred_fallthru
        _
      // Predicated region
      $region17: #{task368_forward.1} parent=11 // pred_check
        %p275 = pneg %p84
      $region18: #{task368_forward.1} parent=11 // pred_check_branch
        %277 = sbr.rel (%p275) target = $region20
      $region19: #{task368_forward.1} parent=11 // pred_region
        _
      $region20: #{task368_forward.1} parent=11 // pred_fallthru
        _
      // Predicated region
      $region21: #{task368_forward.1} parent=11 // pred_check
        %p278 = pneg %p105
      $region22: #{task368_forward.1} parent=11 // pred_check_branch
        %280 = sbr.rel (%p278) target = $region24
      $region23: #{task368_forward.1} parent=11 // pred_region
        _
      $region24: #{task368_forward.1} parent=11 // pred_fallthru
        _
      // Predicated region
      $region25: #{task368_forward.1} parent=11 // pred_check
        %p281 = pneg %p126
      $region26: #{task368_forward.1} parent=11 // pred_check_branch
        %283 = sbr.rel (%p281) target = $region28
      $region27: #{task368_forward.1} parent=11 // pred_region
        _
      $region28: #{task368_forward.1} parent=11 // pred_fallthru
        _
      // Predicated region
      $region29: #{task368_forward.1} parent=11 // pred_check
        %p284 = pneg %p147
      $region30: #{task368_forward.1} parent=11 // pred_check_branch
        %286 = sbr.rel (%p284) target = $region32
      $region31: #{task368_forward.1} parent=11 // pred_region
        _
      $region32: #{task368_forward.1} parent=11 // pred_fallthru
        _
      // Predicated region
      $region33: #{task368_forward.1} parent=11 // pred_check
        %p287 = pneg %p168
      $region34: #{task368_forward.1} parent=11 // pred_check_branch
        %289 = sbr.rel (%p287) target = $region36
      $region35: #{task368_forward.1} parent=11 // pred_region
        _
      $region36: #{task368_forward.1} parent=11 // pred_fallthru
        _
      // Predicated region
      $region37: #{task368_forward.1} parent=11 // pred_check
        %p290 = pneg %p189
      $region38: #{task368_forward.1} parent=11 // pred_check_branch
        %292 = sbr.rel (%p290) target = $region40
      $region39: #{task368_forward.1} parent=11 // pred_region
        _
      $region40: #{task368_forward.1} parent=11 // pred_fallthru
        _
      // Predicated region
      $region41: #{task368_forward.1} parent=11 // pred_check
        %p293 = pneg %p210
      $region42: #{task368_forward.1} parent=11 // pred_check_branch
        %295 = sbr.rel (%p293) target = $region44
      $region43: #{task368_forward.1} parent=11 // pred_region
        _
      $region44: #{task368_forward.1} parent=11 // pred_fallthru
        _
      // Predicated region
      $region45: #{task368_forward.1} parent=11 // pred_check
        %p296 = pneg %p231
      $region46: #{task368_forward.1} parent=11 // pred_check_branch
        %298 = sbr.rel (%p296) target = $region48
      $region47: #{task368_forward.1} parent=11 // pred_region
        _
      $region48: #{task368_forward.1} parent=11 // pred_fallthru
        _
    $region12: #{task368_forward.1} parent=5 // pred_fallthru
      _
    %p299 = scmp.lt.s32.totalorder %s16, 2
    // Predicated region
    $region49: #{task368_forward.1} parent=5 // pred_check
      %p300 = pneg %p299
    $region50: #{task368_forward.1} parent=5 // pred_check_branch
      %302 = sbr.rel (%p300) target = $region52
    $region51: #{task368_forward.1} parent=5 // pred_region
      // Predicated region
      $region53: #{task368_forward.1} parent=51 // pred_check
        %p303 = pneg %p36
      $region54: #{task368_forward.1} parent=51 // pred_check_branch
        %305 = sbr.rel (%p303) target = $region56
      $region55: #{task368_forward.1} parent=51 // pred_region
        %p306 = scmp.lt.s32.totalorder %s16, 1
        %s307 = scalar_select %p306, %s16, 1
        %s308 = smul.addr %s307, 8
        %s309 = smul.addr %s308, 8
        %s310 = scalar_lea.vmem %s0, %s309
      $region56: #{task368_forward.1} parent=51 // pred_fallthru
        _
    $region52: #{task368_forward.1} parent=5 // pred_fallthru
      _
    %p311 = scmp.le.s32.totalorder 1, %s16
    %p312 = scmp.lt.s32.totalorder %s16, 3
    %p313 = pnand %p311, %p312
    %p314 = pneg %p313
    // Predicated region
    $region57: #{task368_forward.1} parent=5 // pred_check
      _
    $region58: #{task368_forward.1} parent=5 // pred_check_branch
      %316 = sbr.rel (%p313) target = $region60
    $region59: #{task368_forward.1} parent=5 // pred_region
      %s317 = ssub.s32 %s16, 1
      %p318 = scmp.lt.s32.totalorder %s21, 1
      %s319 = scalar_select %p318, %s21, 1
      %s320 = smul.addr %s319, 8
      %s321 = smul.addr %s320, 8
      %s322 = scalar_lea.vmem %s0, %s321
      %p323 = pneg %p42
      %p324 = pneg %p39
      %p325 = pneg %p63
      %p326 = pneg %p60
      %p327 = pneg %p84
      %p328 = pneg %p81
      %p329 = pneg %p105
      %p330 = pneg %p102
      %p331 = pneg %p126
      %p332 = pneg %p123
      %p333 = pneg %p147
      %p334 = pneg %p144
      %p335 = pneg %p168
      %p336 = pneg %p165
      %p337 = pneg %p189
      %p338 = pneg %p186
      %p339 = pneg %p210
      %p340 = pneg %p207
      %p341 = pneg %p231
      %p342 = pneg %p228
      %p343 = pneg %p257
      %p344 = pneg %p254
      %p345 = scmp.lt.s32.totalorder %s21, 1
      %s346 = scalar_select %p345, %s21, 1
      %s347 = smul.addr %s346, 4
      %s348 = smul.addr %s347, 8
      %s349 = scalar_lea.vmem %s10, %s348
      %p350 = scmp.lt.s32.totalorder %s21, 1
      %s351 = scalar_select %p350, %s21, 1
      %s352 = smul.addr %s351, 8
      %s353 = smul.addr %s352, 8
      %s354 = scalar_lea.vmem %s0, %s353
      %p355 = scmp.lt.s32.totalorder %s21, 1
      %s356 = scalar_select %p355, %s21, 1
      %s357 = smul.addr %s356, 4
      %s358 = smul.addr %s357, 8
      %s359 = scalar_lea.vmem %s10, %s358
      %v360 = vld [vmem:[%s354] sm:$0xff]
      %v361 = vld [vmem:[%s354 + $0x8] sm:$0xff]
      %v362 = vld [vmem:[%s354 + $0x10] sm:$0xff]
      %v363 = vld [vmem:[%s354 + $0x18] sm:$0xff]
      %v364 = vld [vmem:[%s354 + $0x20] sm:$0x3]
      %v365 = vld [vmem:[%s354 + $0x28] sm:$0x3]
      %v366 = vld [vmem:[%s354 + $0x30] sm:$0x3]
      %v367 = vld [vmem:[%s354 + $0x38] sm:$0x3]
      %376 = vrot.lane.b32.xlu0 %v360, 32
      %v377 = vpop.permute.xlu0 %376
      %378 = vrot.lane.b32.xlu0 %v361, 32
      %v379 = vpop.permute.xlu0 %378
      %380 = vrot.lane.b32.xlu0 %v362, 32
      %v381 = vpop.permute.xlu0 %380
      %382 = vrot.lane.b32.xlu0 %v363, 32
      %v383 = vpop.permute.xlu0 %382
      %384 = vrot.lane.b32.xlu0 %v364, 32
      %v385 = vpop.permute.xlu0 %384
      %386 = vrot.lane.b32.xlu0 %v365, 32
      %v387 = vpop.permute.xlu0 %386
      %388 = vrot.lane.b32.xlu0 %v366, 32
      %v389 = vpop.permute.xlu0 %388
      %390 = vrot.lane.b32.xlu0 %v367, 32
      %v391 = vpop.permute.xlu0 %390
      %vm392 = vcmask 261120
      %v393 = vsel %vm392, %v377, %v379
      %v394 = vsel %vm392, %v379, %v381
      %v395 = vsel %vm392, %v381, %v383
      %v396 = vsel %vm392, %v385, %v387
      %v397 = vsel %vm392, %v387, %v389
      %v398 = vsel %vm392, %v389, %v391
      %vm407 = vcmask 1047808
      %408 = vst.msk [vmem:[#allocation2] sm:$0xff] %vm407, %v377
      %409 = vst [vmem:[#allocation2 + $0x8] sm:$0xff] %v393
      %410 = vst [vmem:[#allocation2 + $0x10] sm:$0xff] %v394
      %vm411 = vcmask 392192
      %412 = vst.msk [vmem:[#allocation2 + $0x18] sm:$0xff] %vm411, %v395
      %vm413 = vcmask 1041664
      %414 = vst.msk [vmem:[#allocation2 + $0x20] sm:$0x3] %vm413, %v385
      %415 = vst [vmem:[#allocation2 + $0x28] sm:$0x3] %v396
      %416 = vst [vmem:[#allocation2 + $0x30] sm:$0x3] %v397
      %vm417 = vcmask 386048
      %418 = vst.msk [vmem:[#allocation2 + $0x38] sm:$0x3] %vm417, %v398
      %v419 = vld [vmem:[#allocation2] sm:$0xff]
      %v420 = vld [vmem:[#allocation2 + $0x8] sm:$0xff]
      %v421 = vld [vmem:[#allocation2 + $0x10] sm:$0xff]
      %v422 = vld [vmem:[#allocation2 + $0x18] sm:$0xff]
      %v423 = vld [vmem:[#allocation2 + $0x20] sm:$0x3]
      %v424 = vld [vmem:[#allocation2 + $0x28] sm:$0x3]
      %v425 = vld [vmem:[#allocation2 + $0x30] sm:$0x3]
      %v426 = vld [vmem:[#allocation2 + $0x38] sm:$0x3]
      %v427 = vld [vmem:[%s1] sm:$0xff]
      %v428 = vld [vmem:[%s1 + $0x8] sm:$0xff]
      %s429 = scalar_lea.vmem %s1, 16
      %v430 = vld [vmem:[%s429] sm:$0xff]
      %v431 = vld [vmem:[%s429 + $0x8] sm:$0xff]
      %440 = vrot.lane.b32.xlu0 %v419, 116
      %v441 = vpop.permute.xlu0 %440
      %442 = vrot.lane.b32.xlu0 %v420, 116
      %v443 = vpop.permute.xlu0 %442
      %444 = vrot.lane.b32.xlu0 %v421, 116
      %v445 = vpop.permute.xlu0 %444
      %446 = vrot.lane.b32.xlu0 %v422, 116
      %v447 = vpop.permute.xlu0 %446
      %448 = vrot.lane.b32.xlu0 %v423, 116
      %v449 = vpop.permute.xlu0 %448
      %450 = vrot.lane.b32.xlu0 %v424, 116
      %v451 = vpop.permute.xlu0 %450
      %452 = vrot.lane.b32.xlu0 %v425, 116
      %v453 = vpop.permute.xlu0 %452
      %454 = vrot.lane.b32.xlu0 %v426, 116
      %v455 = vpop.permute.xlu0 %454
      %vm456 = vcmask 949248
      %v457 = vsel %vm456, %v441, %v443
      %v458 = vsel %vm456, %v443, %v445
      %v459 = vsel %vm456, %v445, %v447
      %v460 = vsel %vm456, %v449, %v451
      %v461 = vsel %vm456, %v451, %v453
      %v462 = vsel %vm456, %v453, %v455
      %vm467 = vcmask 80896
      %v469 = vsel %vm467, %v430, 0
      %v472 = vsel %vm467, %v431, 0
      %vm474 = vcmask 1041408
      %v475 = vsel %vm474, %v460, 0
      %v477 = vsel %vm474, %v461, 0
      %v479 = vsel %vm474, %v462, 0
      %v481 = vsel %vm474, %v455, 0
      %483 = vmatprep.subr.mxu0 %v458
      %484 = vmatpush1.msra.mxu0 %v457
      %485 = vmatprep.subr.mxu0 %v477
      %486 = vmatpush1.msra.mxu0 %v475
      %487 = vmatprep.subr.mxu0 0.0
      %488 = vmatpush1.msra.mxu0 0.0
      %489 = vmatprep.subr.mxu0 0.0
      %490 = vmatpush1.msra.mxu0 0.0
      %491 = vmatprep.subr.mxu0 0.0
      %492 = vmatpush1.msra.mxu0 0.0
      %493 = vmatprep.subr.mxu0 0.0
      %494 = vmatpush1.msra.mxu0 0.0
      %495 = vmatprep.subr.mxu0 0.0
      %496 = vmatpush1.msra.mxu0 0.0
      %497 = vmatprep.subr.mxu0 0.0
      %498 = vmatpush1.msra.mxu0 0.0
      %499 = vmatprep.subr.mxu0 0.0
      %500 = vmatpush1.msra.mxu0 0.0
      %501 = vmatprep.subr.mxu0 0.0
      %502 = vmatpush1.msra.mxu0 0.0
      %503 = vmatprep.subr.mxu0 0.0
      %504 = vmatpush1.msra.mxu0 0.0
      %505 = vmatprep.subr.mxu0 0.0
      %506 = vmatpush1.msra.mxu0 0.0
      %507 = vmatprep.subr.mxu0 0.0
      %508 = vmatpush1.msra.mxu0 0.0
      %509 = vmatprep.subr.mxu0 0.0
      %510 = vmatpush1.msra.mxu0 0.0
      %511 = vmatprep.subr.mxu0 0.0
      %512 = vmatpush1.msra.mxu0 0.0
      %513 = vmatprep.subr.mxu0 0.0
      %514 = vmatpush1.msra.mxu0 0.0
      %515 = vmatprep.subr.mxu0 0.0
      %516 = vmatpush1.msra.mxu0 0.0
      %517 = vmatprep.subr.mxu0 0.0
      %518 = vmatpush1.msra.mxu0 0.0
      %519 = vmatprep.subr.mxu0 0.0
      %520 = vmatpush1.msra.mxu0 0.0
      %521 = vmatprep.subr.mxu0 0.0
      %522 = vmatpush1.msra.mxu0 0.0
      %523 = vmatprep.subr.mxu0 0.0
      %524 = vmatpush1.msra.mxu0 0.0
      %525 = vmatprep.subr.mxu0 0.0
      %526 = vmatpush1.msra.mxu0 0.0
      %527 = vmatprep.subr.mxu0 0.0
      %528 = vmatpush1.msra.mxu0 0.0
      %529 = vmatprep.subr.mxu0 0.0
      %530 = vmatpush1.msra.mxu0 0.0
      %531 = vmatprep.subr.mxu0 0.0
      %532 = vmatpush1.msra.mxu0 0.0
      %533 = vmatprep.subr.mxu0 0.0
      %534 = vmatpush1.msra.mxu0 0.0
      %535 = vmatprep.subr.mxu0 0.0
      %536 = vmatpush1.msra.mxu0 0.0
      %537 = vmatprep.subr.mxu0 0.0
      %538 = vmatpush1.msra.mxu0 0.0
      %539 = vmatprep.subr.mxu0 0.0
      %540 = vmatpush1.msra.mxu0 0.0
      %541 = vmatprep.subr.mxu0 0.0
      %542 = vmatpush1.msra.mxu0 0.0
      %543 = vmatprep.subr.mxu0 0.0
      %544 = vmatpush1.msra.mxu0 0.0
      %545 = vmatprep.subr.mxu0 0.0
      %546 = vmatpush1.msra.mxu0 0.0
      %547 = vmatprep.mubr.f32.mxu0 0.0
      %548 = vmatmul.mubr.f32.gmra.mrb[0].mxu0 %v469
      %v549 = vpop.f32.mrb[0].mxu0
      %v550 = vadd.f32 0.0, %v549
      %v551 = vpop.f32.mrb[0].mxu0
      %v552 = vadd.f32 0.0, %v551
      %553 = vmatprep.mubr.f32.mxu0 0.0
      %554 = vmatmul.mubr.f32.gmra.mrb[0].mxu0 %v472
      %v555 = vpop.f32.mrb[0].mxu0
      %v556 = vadd.f32 0.0, %v555
      %v557 = vpop.f32.mrb[0].mxu0
      %v558 = vadd.f32 0.0, %v557
      %559 = vdwg.mxu0
      %560 = vmatprep.subr.mxu0 %v447
      %561 = vmatpush1.msra.mxu0 %v459
      %562 = vmatprep.subr.mxu0 %v481
      %563 = vmatpush1.msra.mxu0 %v479
      %564 = vmatprep.subr.mxu0 0.0
      %565 = vmatpush1.msra.mxu0 0.0
      %566 = vmatprep.subr.mxu0 0.0
      %567 = vmatpush1.msra.mxu0 0.0
      %568 = vmatprep.subr.mxu0 0.0
      %569 = vmatpush1.msra.mxu0 0.0
      %570 = vmatprep.subr.mxu0 0.0
      %571 = vmatpush1.msra.mxu0 0.0
      %572 = vmatprep.subr.mxu0 0.0
      %573 = vmatpush1.msra.mxu0 0.0
      %574 = vmatprep.subr.mxu0 0.0
      %575 = vmatpush1.msra.mxu0 0.0
      %576 = vmatprep.subr.mxu0 0.0
      %577 = vmatpush1.msra.mxu0 0.0
      %578 = vmatprep.subr.mxu0 0.0
      %579 = vmatpush1.msra.mxu0 0.0
      %580 = vmatprep.subr.mxu0 0.0
      %581 = vmatpush1.msra.mxu0 0.0
      %582 = vmatprep.subr.mxu0 0.0
      %583 = vmatpush1.msra.mxu0 0.0
      %584 = vmatprep.subr.mxu0 0.0
      %585 = vmatpush1.msra.mxu0 0.0
      %586 = vmatprep.subr.mxu0 0.0
      %587 = vmatpush1.msra.mxu0 0.0
      %588 = vmatprep.subr.mxu0 0.0
      %589 = vmatpush1.msra.mxu0 0.0
      %590 = vmatprep.subr.mxu0 0.0
      %591 = vmatpush1.msra.mxu0 0.0
      %592 = vmatprep.subr.mxu0 0.0
      %593 = vmatpush1.msra.mxu0 0.0
      %594 = vmatprep.subr.mxu0 0.0
      %595 = vmatpush1.msra.mxu0 0.0
      %596 = vmatprep.subr.mxu0 0.0
      %597 = vmatpush1.msra.mxu0 0.0
      %598 = vmatprep.subr.mxu0 0.0
      %599 = vmatpush1.msra.mxu0 0.0
      %600 = vmatprep.subr.mxu0 0.0
      %601 = vmatpush1.msra.mxu0 0.0
      %602 = vmatprep.subr.mxu0 0.0
      %603 = vmatpush1.msra.mxu0 0.0
      %604 = vmatprep.subr.mxu0 0.0
      %605 = vmatpush1.msra.mxu0 0.0
      %606 = vmatprep.subr.mxu0 0.0
      %607 = vmatpush1.msra.mxu0 0.0
      %608 = vmatprep.subr.mxu0 0.0
      %609 = vmatpush1.msra.mxu0 0.0
      %610 = vmatprep.subr.mxu0 0.0
      %611 = vmatpush1.msra.mxu0 0.0
      %612 = vmatprep.subr.mxu0 0.0
      %613 = vmatpush1.msra.mxu0 0.0
      %614 = vmatprep.subr.mxu0 0.0
      %615 = vmatpush1.msra.mxu0 0.0
      %616 = vmatprep.subr.mxu0 0.0
      %617 = vmatpush1.msra.mxu0 0.0
      %618 = vmatprep.subr.mxu0 0.0
      %619 = vmatpush1.msra.mxu0 0.0
      %620 = vmatprep.subr.mxu0 0.0
      %621 = vmatpush1.msra.mxu0 0.0
      %622 = vmatprep.subr.mxu0 0.0
      %623 = vmatpush1.msra.mxu0 0.0
      %624 = vmatprep.mubr.f32.mxu0 0.0
      %625 = vmatmul.mubr.f32.gmra.mrb[0].mxu0 %v469
      %v626 = vpop.f32.mrb[0].mxu0
      %v627 = vadd.f32 0.0, %v626
      %v628 = vpop.f32.mrb[0].mxu0
      %v629 = vadd.f32 0.0, %v628
      %630 = vmatprep.mubr.f32.mxu0 0.0
      %631 = vmatmul.mubr.f32.gmra.mrb[0].mxu0 %v472
      %v632 = vpop.f32.mrb[0].mxu0
      %v633 = vadd.f32 0.0, %v632
      %v634 = vpop.f32.mrb[0].mxu0
      %v635 = vadd.f32 0.0, %v634
      %636 = vdwg.mxu0
      %637 = vrot.lane.b32.xlu0 %v419, 117
      %v638 = vpop.permute.xlu0 %637
      %639 = vrot.lane.b32.xlu0 %v420, 117
      %v640 = vpop.permute.xlu0 %639
      %641 = vrot.lane.b32.xlu0 %v421, 117
      %v642 = vpop.permute.xlu0 %641
      %643 = vrot.lane.b32.xlu0 %v422, 117
      %v644 = vpop.permute.xlu0 %643
      %645 = vrot.lane.b32.xlu0 %v423, 117
      %v646 = vpop.permute.xlu0 %645
      %647 = vrot.lane.b32.xlu0 %v424, 117
      %v648 = vpop.permute.xlu0 %647
      %649 = vrot.lane.b32.xlu0 %v425, 117
      %v650 = vpop.permute.xlu0 %649
      %651 = vrot.lane.b32.xlu0 %v426, 117
      %v652 = vpop.permute.xlu0 %651
      %vm653 = vcmask 957440
      %v654 = vsel %vm653, %v638, %v640
      %v655 = vsel %vm653, %v640, %v642
      %v656 = vsel %vm653, %v642, %v644
      %v657 = vsel %vm653, %v646, %v648
      %v658 = vsel %vm653, %v648, %v650
      %v659 = vsel %vm653, %v650, %v652
      %v665 = vsel %vm467, %v427, 0
      %v668 = vsel %vm467, %v428, 0
      %v670 = vsel %vm474, %v657, 0
      %v672 = vsel %vm474, %v658, 0
      %v674 = vsel %vm474, %v659, 0
      %v676 = vsel %vm474, %v652, 0
      %678 = vmatprep.subr.mxu0 %v655
      %679 = vmatpush1.msra.mxu0 %v654
      %680 = vmatprep.subr.mxu0 %v672
      %681 = vmatpush1.msra.mxu0 %v670
      %682 = vmatprep.subr.mxu0 0.0
      %683 = vmatpush1.msra.mxu0 0.0
      %684 = vmatprep.subr.mxu0 0.0
      %685 = vmatpush1.msra.mxu0 0.0
      %686 = vmatprep.subr.mxu0 0.0
      %687 = vmatpush1.msra.mxu0 0.0
      %688 = vmatprep.subr.mxu0 0.0
      %689 = vmatpush1.msra.mxu0 0.0
      %690 = vmatprep.subr.mxu0 0.0
      %691 = vmatpush1.msra.mxu0 0.0
      %692 = vmatprep.subr.mxu0 0.0
      %693 = vmatpush1.msra.mxu0 0.0
      %694 = vmatprep.subr.mxu0 0.0
      %695 = vmatpush1.msra.mxu0 0.0
      %696 = vmatprep.subr.mxu0 0.0
      %697 = vmatpush1.msra.mxu0 0.0
      %698 = vmatprep.subr.mxu0 0.0
      %699 = vmatpush1.msra.mxu0 0.0
      %700 = vmatprep.subr.mxu0 0.0
      %701 = vmatpush1.msra.mxu0 0.0
      %702 = vmatprep.subr.mxu0 0.0
      %703 = vmatpush1.msra.mxu0 0.0
      %704 = vmatprep.subr.mxu0 0.0
      %705 = vmatpush1.msra.mxu0 0.0
      %706 = vmatprep.subr.mxu0 0.0
      %707 = vmatpush1.msra.mxu0 0.0
      %708 = vmatprep.subr.mxu0 0.0
      %709 = vmatpush1.msra.mxu0 0.0
      %710 = vmatprep.subr.mxu0 0.0
      %711 = vmatpush1.msra.mxu0 0.0
      %712 = vmatprep.subr.mxu0 0.0
      %713 = vmatpush1.msra.mxu0 0.0
      %714 = vmatprep.subr.mxu0 0.0
      %715 = vmatpush1.msra.mxu0 0.0
      %716 = vmatprep.subr.mxu0 0.0
      %717 = vmatpush1.msra.mxu0 0.0
      %718 = vmatprep.subr.mxu0 0.0
      %719 = vmatpush1.msra.mxu0 0.0
      %720 = vmatprep.subr.mxu0 0.0
      %721 = vmatpush1.msra.mxu0 0.0
      %722 = vmatprep.subr.mxu0 0.0
      %723 = vmatpush1.msra.mxu0 0.0
      %724 = vmatprep.subr.mxu0 0.0
      %725 = vmatpush1.msra.mxu0 0.0
      %726 = vmatprep.subr.mxu0 0.0
      %727 = vmatpush1.msra.mxu0 0.0
      %728 = vmatprep.subr.mxu0 0.0
      %729 = vmatpush1.msra.mxu0 0.0
      %730 = vmatprep.subr.mxu0 0.0
      %731 = vmatpush1.msra.mxu0 0.0
      %732 = vmatprep.subr.mxu0 0.0
      %733 = vmatpush1.msra.mxu0 0.0
      %734 = vmatprep.subr.mxu0 0.0
      %735 = vmatpush1.msra.mxu0 0.0
      %736 = vmatprep.subr.mxu0 0.0
      %737 = vmatpush1.msra.mxu0 0.0
      %738 = vmatprep.subr.mxu0 0.0
      %739 = vmatpush1.msra.mxu0 0.0
      %740 = vmatprep.subr.mxu0 0.0
      %741 = vmatpush1.msra.mxu0 0.0
      %742 = vmatprep.mubr.f32.mxu0 0.0
      %743 = vmatmul.mubr.f32.gmra.mrb[0].mxu0 %v665
      %v744 = vpop.f32.mrb[0].mxu0
      %v745 = vadd.f32 %v550, %v744
      %v746 = vpop.f32.mrb[0].mxu0
      %v747 = vadd.f32 %v552, %v746
      %748 = vmatprep.mubr.f32.mxu0 0.0
      %749 = vmatmul.mubr.f32.gmra.mrb[0].mxu0 %v668
      %v750 = vpop.f32.mrb[0].mxu0
      %v751 = vadd.f32 %v556, %v750
      %v752 = vpop.f32.mrb[0].mxu0
      %v753 = vadd.f32 %v558, %v752
      %754 = vdwg.mxu0
      %755 = vmatprep.subr.mxu0 %v644
      %756 = vmatpush1.msra.mxu0 %v656
      %757 = vmatprep.subr.mxu0 %v676
      %758 = vmatpush1.msra.mxu0 %v674
      %759 = vmatprep.subr.mxu0 0.0
      %760 = vmatpush1.msra.mxu0 0.0
      %761 = vmatprep.subr.mxu0 0.0
      %762 = vmatpush1.msra.mxu0 0.0
      %763 = vmatprep.subr.mxu0 0.0
      %764 = vmatpush1.msra.mxu0 0.0
      %765 = vmatprep.subr.mxu0 0.0
      %766 = vmatpush1.msra.mxu0 0.0
      %767 = vmatprep.subr.mxu0 0.0
      %768 = vmatpush1.msra.mxu0 0.0
      %769 = vmatprep.subr.mxu0 0.0
      %770 = vmatpush1.msra.mxu0 0.0
      %771 = vmatprep.subr.mxu0 0.0
      %772 = vmatpush1.msra.mxu0 0.0
      %773 = vmatprep.subr.mxu0 0.0
      %774 = vmatpush1.msra.mxu0 0.0
      %775 = vmatprep.subr.mxu0 0.0
      %776 = vmatpush1.msra.mxu0 0.0
      %777 = vmatprep.subr.mxu0 0.0
      %778 = vmatpush1.msra.mxu0 0.0
      %779 = vmatprep.subr.mxu0 0.0
      %780 = vmatpush1.msra.mxu0 0.0
      %781 = vmatprep.subr.mxu0 0.0
      %782 = vmatpush1.msra.mxu0 0.0
      %783 = vmatprep.subr.mxu0 0.0
      %784 = vmatpush1.msra.mxu0 0.0
      %785 = vmatprep.subr.mxu0 0.0
      %786 = vmatpush1.msra.mxu0 0.0
      %787 = vmatprep.subr.mxu0 0.0
      %788 = vmatpush1.msra.mxu0 0.0
      %789 = vmatprep.subr.mxu0 0.0
      %790 = vmatpush1.msra.mxu0 0.0
      %791 = vmatprep.subr.mxu0 0.0
      %792 = vmatpush1.msra.mxu0 0.0
      %793 = vmatprep.subr.mxu0 0.0
      %794 = vmatpush1.msra.mxu0 0.0
      %795 = vmatprep.subr.mxu0 0.0
      %796 = vmatpush1.msra.mxu0 0.0
      %797 = vmatprep.subr.mxu0 0.0
      %798 = vmatpush1.msra.mxu0 0.0
      %799 = vmatprep.subr.mxu0 0.0
      %800 = vmatpush1.msra.mxu0 0.0
      %801 = vmatprep.subr.mxu0 0.0
      %802 = vmatpush1.msra.mxu0 0.0
      %803 = vmatprep.subr.mxu0 0.0
      %804 = vmatpush1.msra.mxu0 0.0
      %805 = vmatprep.subr.mxu0 0.0
      %806 = vmatpush1.msra.mxu0 0.0
      %807 = vmatprep.subr.mxu0 0.0
      %808 = vmatpush1.msra.mxu0 0.0
      %809 = vmatprep.subr.mxu0 0.0
      %810 = vmatpush1.msra.mxu0 0.0
      %811 = vmatprep.subr.mxu0 0.0
      %812 = vmatpush1.msra.mxu0 0.0
      %813 = vmatprep.subr.mxu0 0.0
      %814 = vmatpush1.msra.mxu0 0.0
      %815 = vmatprep.subr.mxu0 0.0
      %816 = vmatpush1.msra.mxu0 0.0
      %817 = vmatprep.subr.mxu0 0.0
      %818 = vmatpush1.msra.mxu0 0.0
      %819 = vmatprep.mubr.f32.mxu0 0.0
      %820 = vmatmul.mubr.f32.gmra.mrb[0].mxu0 %v665
      %v821 = vpop.f32.mrb[0].mxu0
      %v822 = vadd.f32 %v627, %v821
      %v823 = vpop.f32.mrb[0].mxu0
      %v824 = vadd.f32 %v629, %v823
      %825 = vmatprep.mubr.f32.mxu0 0.0
      %826 = vmatmul.mubr.f32.gmra.mrb[0].mxu0 %v668
      %v827 = vpop.f32.mrb[0].mxu0
      %v828 = vadd.f32 %v633, %v827
      %v829 = vpop.f32.mrb[0].mxu0
      %v830 = vadd.f32 %v635, %v829
      %831 = vdwg.mxu0
      %s832 = scalar_lea.vmem %s1, 32
      %v833 = vld [vmem:[%s832] sm:$0xff]
      %v834 = vld [vmem:[%s832 + $0x8] sm:$0xff]
      %835 = vrot.lane.b32.xlu0 %v419, 97
      %v836 = vpop.permute.xlu0 %835
      %837 = vrot.lane.b32.xlu0 %v420, 97
      %v838 = vpop.permute.xlu0 %837
      %839 = vrot.lane.b32.xlu0 %v421, 97
      %v840 = vpop.permute.xlu0 %839
      %841 = vrot.lane.b32.xlu0 %v422, 97
      %v842 = vpop.permute.xlu0 %841
      %843 = vrot.lane.b32.xlu0 %v423, 97
      %v844 = vpop.permute.xlu0 %843
      %845 = vrot.lane.b32.xlu0 %v424, 97
      %v846 = vpop.permute.xlu0 %845
      %847 = vrot.lane.b32.xlu0 %v425, 97
      %v848 = vpop.permute.xlu0 %847
      %849 = vrot.lane.b32.xlu0 %v426, 97
      %v850 = vpop.permute.xlu0 %849
      %vm851 = vcmask 793600
      %v852 = vsel %vm851, %v836, %v838
      %v853 = vsel %vm851, %v838, %v840
      %v854 = vsel %vm851, %v840, %v842
      %v855 = vsel %vm851, %v844, %v846
      %v856 = vsel %vm851, %v846, %v848
      %v857 = vsel %vm851, %v848, %v850
      %v863 = vsel %vm467, %v833, 0
      %v866 = vsel %vm467, %v834, 0
      %v868 = vsel %vm474, %v855, 0
      %v870 = vsel %vm474, %v856, 0
      %v872 = vsel %vm474, %v857, 0
      %v874 = vsel %vm474, %v850, 0
      %876 = vmatprep.subr.mxu0 %v853
      %877 = vmatpush1.msra.mxu0 %v852
      %878 = vmatprep.subr.mxu0 %v870
      %879 = vmatpush1.msra.mxu0 %v868
      %880 = vmatprep.subr.mxu0 0.0
      %881 = vmatpush1.msra.mxu0 0.0
      %882 = vmatprep.subr.mxu0 0.0
      %883 = vmatpush1.msra.mxu0 0.0
      %884 = vmatprep.subr.mxu0 0.0
      %885 = vmatpush1.msra.mxu0 0.0
      %886 = vmatprep.subr.mxu0 0.0
      %887 = vmatpush1.msra.mxu0 0.0
      %888 = vmatprep.subr.mxu0 0.0
      %889 = vmatpush1.msra.mxu0 0.0
      %890 = vmatprep.subr.mxu0 0.0
      %891 = vmatpush1.msra.mxu0 0.0
      %892 = vmatprep.subr.mxu0 0.0
      %893 = vmatpush1.msra.mxu0 0.0
      %894 = vmatprep.subr.mxu0 0.0
      %895 = vmatpush1.msra.mxu0 0.0
      %896 = vmatprep.subr.mxu0 0.0
      %897 = vmatpush1.msra.mxu0 0.0
      %898 = vmatprep.subr.mxu0 0.0
      %899 = vmatpush1.msra.mxu0 0.0
      %900 = vmatprep.subr.mxu0 0.0
      %901 = vmatpush1.msra.mxu0 0.0
      %902 = vmatprep.subr.mxu0 0.0
      %903 = vmatpush1.msra.mxu0 0.0
      %904 = vmatprep.subr.mxu0 0.0
      %905 = vmatpush1.msra.mxu0 0.0
      %906 = vmatprep.subr.mxu0 0.0
      %907 = vmatpush1.msra.mxu0 0.0
      %908 = vmatprep.subr.mxu0 0.0
      %909 = vmatpush1.msra.mxu0 0.0
      %910 = vmatprep.subr.mxu0 0.0
      %911 = vmatpush1.msra.mxu0 0.0
      %912 = vmatprep.subr.mxu0 0.0
      %913 = vmatpush1.msra.mxu0 0.0
      %914 = vmatprep.subr.mxu0 0.0
      %915 = vmatpush1.msra.mxu0 0.0
      %916 = vmatprep.subr.mxu0 0.0
      %917 = vmatpush1.msra.mxu0 0.0
      %918 = vmatprep.subr.mxu0 0.0
      %919 = vmatpush1.msra.mxu0 0.0
      %920 = vmatprep.subr.mxu0 0.0
      %921 = vmatpush1.msra.mxu0 0.0
      %922 = vmatprep.subr.mxu0 0.0
      %923 = vmatpush1.msra.mxu0 0.0
      %924 = vmatprep.subr.mxu0 0.0
      %925 = vmatpush1.msra.mxu0 0.0
      %926 = vmatprep.subr.mxu0 0.0
      %927 = vmatpush1.msra.mxu0 0.0
      %928 = vmatprep.subr.mxu0 0.0
      %929 = vmatpush1.msra.mxu0 0.0
      %930 = vmatprep.subr.mxu0 0.0
      %931 = vmatpush1.msra.mxu0 0.0
      %932 = vmatprep.subr.mxu0 0.0
      %933 = vmatpush1.msra.mxu0 0.0
      %934 = vmatprep.subr.mxu0 0.0
      %935 = vmatpush1.msra.mxu0 0.0
      %936 = vmatprep.subr.mxu0 0.0
      %937 = vmatpush1.msra.mxu0 0.0
      %938 = vmatprep.subr.mxu0 0.0
      %939 = vmatpush1.msra.mxu0 0.0
      %940 = vmatprep.mubr.f32.mxu0 0.0
      %941 = vmatmul.mubr.f32.gmra.mrb[0].mxu0 %v863
      %v942 = vpop.f32.mrb[0].mxu0
      %v943 = vadd.f32 0.0, %v942
      %v944 = vpop.f32.mrb[0].mxu0
      %v945 = vadd.f32 0.0, %v944
      %946 = vmatprep.mubr.f32.mxu0 0.0
      %947 = vmatmul.mubr.f32.gmra.mrb[0].mxu0 %v866
      %v948 = vpop.f32.mrb[0].mxu0
      %v949 = vadd.f32 0.0, %v948
      %v950 = vpop.f32.mrb[0].mxu0
      %v951 = vadd.f32 0.0, %v950
      %952 = vdwg.mxu0
      %953 = vmatprep.subr.mxu0 %v842
      %954 = vmatpush1.msra.mxu0 %v854
      %955 = vmatprep.subr.mxu0 %v874
      %956 = vmatpush1.msra.mxu0 %v872
      %957 = vmatprep.subr.mxu0 0.0
      %958 = vmatpush1.msra.mxu0 0.0
      %959 = vmatprep.subr.mxu0 0.0
      %960 = vmatpush1.msra.mxu0 0.0
      %961 = vmatprep.subr.mxu0 0.0
      %962 = vmatpush1.msra.mxu0 0.0
      %963 = vmatprep.subr.mxu0 0.0
      %964 = vmatpush1.msra.mxu0 0.0
      %965 = vmatprep.subr.mxu0 0.0
      %966 = vmatpush1.msra.mxu0 0.0
      %967 = vmatprep.subr.mxu0 0.0
      %968 = vmatpush1.msra.mxu0 0.0
      %969 = vmatprep.subr.mxu0 0.0
      %970 = vmatpush1.msra.mxu0 0.0
      %971 = vmatprep.subr.mxu0 0.0
      %972 = vmatpush1.msra.mxu0 0.0
      %973 = vmatprep.subr.mxu0 0.0
      %974 = vmatpush1.msra.mxu0 0.0
      %975 = vmatprep.subr.mxu0 0.0
      %976 = vmatpush1.msra.mxu0 0.0
      %977 = vmatprep.subr.mxu0 0.0
      %978 = vmatpush1.msra.mxu0 0.0
      %979 = vmatprep.subr.mxu0 0.0
      %980 = vmatpush1.msra.mxu0 0.0
      %981 = vmatprep.subr.mxu0 0.0
      %982 = vmatpush1.msra.mxu0 0.0
      %983 = vmatprep.subr.mxu0 0.0
      %984 = vmatpush1.msra.mxu0 0.0
      %985 = vmatprep.subr.mxu0 0.0
      %986 = vmatpush1.msra.mxu0 0.0
      %987 = vmatprep.subr.mxu0 0.0
      %988 = vmatpush1.msra.mxu0 0.0
      %989 = vmatprep.subr.mxu0 0.0
      %990 = vmatpush1.msra.mxu0 0.0
      %991 = vmatprep.subr.mxu0 0.0
      %992 = vmatpush1.msra.mxu0 0.0
      %993 = vmatprep.subr.mxu0 0.0
      %994 = vmatpush1.msra.mxu0 0.0
      %995 = vmatprep.subr.mxu0 0.0
      %996 = vmatpush1.msra.mxu0 0.0
      %997 = vmatprep.subr.mxu0 0.0
      %998 = vmatpush1.msra.mxu0 0.0
      %999 = vmatprep.subr.mxu0 0.0
      %1000 = vmatpush1.msra.mxu0 0.0
      %1001 = vmatprep.subr.mxu0 0.0
      %1002 = vmatpush1.msra.mxu0 0.0
      %1003 = vmatprep.subr.mxu0 0.0
      %1004 = vmatpush1.msra.mxu0 0.0
      %1005 = vmatprep.subr.mxu0 0.0
      %1006 = vmatpush1.msra.mxu0 0.0
      %1007 = vmatprep.subr.mxu0 0.0
      %1008 = vmatpush1.msra.mxu0 0.0
      %1009 = vmatprep.subr.mxu0 0.0
      %1010 = vmatpush1.msra.mxu0 0.0
      %1011 = vmatprep.subr.mxu0 0.0
      %1012 = vmatpush1.msra.mxu0 0.0
      %1013 = vmatprep.subr.mxu0 0.0
      %1014 = vmatpush1.msra.mxu0 0.0
      %1015 = vmatprep.subr.mxu0 0.0
      %1016 = vmatpush1.msra.mxu0 0.0
      %1017 = vmatprep.mubr.f32.mxu0 0.0
      %1018 = vmatmul.mubr.f32.gmra.mrb[0].mxu0 %v863
      %v1019 = vpop.f32.mrb[0].mxu0
      %v1020 = vadd.f32 0.0, %v1019
      %v1021 = vpop.f32.mrb[0].mxu0
      %v1022 = vadd.f32 0.0, %v1021
      %1023 = vmatprep.mubr.f32.mxu0 0.0
      %1024 = vmatmul.mubr.f32.gmra.mrb[0].mxu0 %v866
      %v1025 = vpop.f32.mrb[0].mxu0
      %v1026 = vadd.f32 0.0, %v1025
      %v1027 = vpop.f32.mrb[0].mxu0
      %v1028 = vadd.f32 0.0, %v1027
      %1029 = vdwg.mxu0
      %v1030 = vadd.f32 %v745, %v943
      %v1031 = vadd.f32 %v747, %v945
      %v1032 = vadd.f32 %v822, %v1020
      %v1033 = vadd.f32 %v824, %v1022
      %v1034 = vadd.f32 %v751, %v949
      %v1035 = vadd.f32 %v753, %v951
      %v1036 = vadd.f32 %v828, %v1026
      %v1037 = vadd.f32 %v830, %v1028
      %s1038 = scalar_lea.vmem %s1, 48
      %v1039 = vld [vmem:[%s1038] sm:$0xff]
      %v1040 = vld [vmem:[%s1038 + $0x8] sm:$0xff]
      %1041 = vrot.lane.b32.xlu0 %v419, 96
      %v1042 = vpop.permute.xlu0 %1041
      %1043 = vrot.lane.b32.xlu0 %v420, 96
      %v1044 = vpop.permute.xlu0 %1043
      %1045 = vrot.lane.b32.xlu0 %v421, 96
      %v1046 = vpop.permute.xlu0 %1045
      %1047 = vrot.lane.b32.xlu0 %v422, 96
      %v1048 = vpop.permute.xlu0 %1047
      %1049 = vrot.lane.b32.xlu0 %v423, 96
      %v1050 = vpop.permute.xlu0 %1049
      %1051 = vrot.lane.b32.xlu0 %v424, 96
      %v1052 = vpop.permute.xlu0 %1051
      %1053 = vrot.lane.b32.xlu0 %v425, 96
      %v1054 = vpop.permute.xlu0 %1053
      %1055 = vrot.lane.b32.xlu0 %v426, 96
      %v1056 = vpop.permute.xlu0 %1055
      %vm1057 = vcmask 785408
      %v1058 = vsel %vm1057, %v1042, %v1044
      %v1059 = vsel %vm1057, %v1044, %v1046
      %v1060 = vsel %vm1057, %v1046, %v1048
      %v1061 = vsel %vm1057, %v1050, %v1052
      %v1062 = vsel %vm1057, %v1052, %v1054
      %v1063 = vsel %vm1057, %v1054, %v1056
      %v1069 = vsel %vm467, %v1039, 0
      %v1072 = vsel %vm467, %v1040, 0
      %v1074 = vsel %vm474, %v1061, 0
      %v1076 = vsel %vm474, %v1062, 0
      %v1078 = vsel %vm474, %v1063, 0
      %v1080 = vsel %vm474, %v1056, 0
      %1082 = vmatprep.subr.mxu0 %v1059
      %1083 = vmatpush1.msra.mxu0 %v1058
      %1084 = vmatprep.subr.mxu0 %v1076
      %1085 = vmatpush1.msra.mxu0 %v1074
      %1086 = vmatprep.subr.mxu0 0.0
      %1087 = vmatpush1.msra.mxu0 0.0
      %1088 = vmatprep.subr.mxu0 0.0
      %1089 = vmatpush1.msra.mxu0 0.0
      %1090 = vmatprep.subr.mxu0 0.0
      %1091 = vmatpush1.msra.mxu0 0.0
      %1092 = vmatprep.subr.mxu0 0.0
      %1093 = vmatpush1.msra.mxu0 0.0
      %1094 = vmatprep.subr.mxu0 0.0
      %1095 = vmatpush1.msra.mxu0 0.0
      %1096 = vmatprep.subr.mxu0 0.0
      %1097 = vmatpush1.msra.mxu0 0.0
      %1098 = vmatprep.subr.mxu0 0.0
      %1099 = vmatpush1.msra.mxu0 0.0
      %1100 = vmatprep.subr.mxu0 0.0
      %1101 = vmatpush1.msra.mxu0 0.0
      %1102 = vmatprep.subr.mxu0 0.0
      %1103 = vmatpush1.msra.mxu0 0.0
      %1104 = vmatprep.subr.mxu0 0.0
      %1105 = vmatpush1.msra.mxu0 0.0
      %1106 = vmatprep.subr.mxu0 0.0
      %1107 = vmatpush1.msra.mxu0 0.0
      %1108 = vmatprep.subr.mxu0 0.0
      %1109 = vmatpush1.msra.mxu0 0.0
      %1110 = vmatprep.subr.mxu0 0.0
      %1111 = vmatpush1.msra.mxu0 0.0
      %1112 = vmatprep.subr.mxu0 0.0
      %1113 = vmatpush1.msra.mxu0 0.0
      %1114 = vmatprep.subr.mxu0 0.0
      %1115 = vmatpush1.msra.mxu0 0.0
      %1116 = vmatprep.subr.mxu0 0.0
      %1117 = vmatpush1.msra.mxu0 0.0
      %1118 = vmatprep.subr.mxu0 0.0
      %1119 = vmatpush1.msra.mxu0 0.0
      %1120 = vmatprep.subr.mxu0 0.0
      %1121 = vmatpush1.msra.mxu0 0.0
      %1122 = vmatprep.subr.mxu0 0.0
      %1123 = vmatpush1.msra.mxu0 0.0
      %1124 = vmatprep.subr.mxu0 0.0
      %1125 = vmatpush1.msra.mxu0 0.0
      %1126 = vmatprep.subr.mxu0 0.0
      %1127 = vmatpush1.msra.mxu0 0.0
      %1128 = vmatprep.subr.mxu0 0.0
      %1129 = vmatpush1.msra.mxu0 0.0
      %1130 = vmatprep.subr.mxu0 0.0
      %1131 = vmatpush1.msra.mxu0 0.0
      %1132 = vmatprep.subr.mxu0 0.0
      %1133 = vmatpush1.msra.mxu0 0.0
      %1134 = vmatprep.subr.mxu0 0.0
      %1135 = vmatpush1.msra.mxu0 0.0
      %1136 = vmatprep.subr.mxu0 0.0
      %1137 = vmatpush1.msra.mxu0 0.0
      %1138 = vmatprep.subr.mxu0 0.0
      %1139 = vmatpush1.msra.mxu0 0.0
      %1140 = vmatprep.subr.mxu0 0.0
      %1141 = vmatpush1.msra.mxu0 0.0
      %1142 = vmatprep.subr.mxu0 0.0
      %1143 = vmatpush1.msra.mxu0 0.0
      %1144 = vmatprep.subr.mxu0 0.0
      %1145 = vmatpush1.msra.mxu0 0.0
      %1146 = vmatprep.mubr.f32.mxu0 0.0
      %1147 = vmatmul.mubr.f32.gmra.mrb[0].mxu0 %v1069
      %v1148 = vpop.f32.mrb[0].mxu0
      %v1149 = vadd.f32 0.0, %v1148
      %v1150 = vpop.f32.mrb[0].mxu0
      %v1151 = vadd.f32 0.0, %v1150
      %1152 = vmatprep.mubr.f32.mxu0 0.0
      %1153 = vmatmul.mubr.f32.gmra.mrb[0].mxu0 %v1072
      %v1154 = vpop.f32.mrb[0].mxu0
      %v1155 = vadd.f32 0.0, %v1154
      %v1156 = vpop.f32.mrb[0].mxu0
      %v1157 = vadd.f32 0.0, %v1156
      %1158 = vdwg.mxu0
      %1159 = vmatprep.subr.mxu0 %v1048
      %1160 = vmatpush1.msra.mxu0 %v1060
      %1161 = vmatprep.subr.mxu0 %v1080
      %1162 = vmatpush1.msra.mxu0 %v1078
      %1163 = vmatprep.subr.mxu0 0.0
      %1164 = vmatpush1.msra.mxu0 0.0
      %1165 = vmatprep.subr.mxu0 0.0
      %1166 = vmatpush1.msra.mxu0 0.0
      %1167 = vmatprep.subr.mxu0 0.0
      %1168 = vmatpush1.msra.mxu0 0.0
      %1169 = vmatprep.subr.mxu0 0.0
      %1170 = vmatpush1.msra.mxu0 0.0
      %1171 = vmatprep.subr.mxu0 0.0
      %1172 = vmatpush1.msra.mxu0 0.0
      %1173 = vmatprep.subr.mxu0 0.0
      %1174 = vmatpush1.msra.mxu0 0.0
      %1175 = vmatprep.subr.mxu0 0.0
      %1176 = vmatpush1.msra.mxu0 0.0
      %1177 = vmatprep.subr.mxu0 0.0
      %1178 = vmatpush1.msra.mxu0 0.0
      %1179 = vmatprep.subr.mxu0 0.0
      %1180 = vmatpush1.msra.mxu0 0.0
      %1181 = vmatprep.subr.mxu0 0.0
      %1182 = vmatpush1.msra.mxu0 0.0
      %1183 = vmatprep.subr.mxu0 0.0
      %1184 = vmatpush1.msra.mxu0 0.0
      %1185 = vmatprep.subr.mxu0 0.0
      %1186 = vmatpush1.msra.mxu0 0.0
      %1187 = vmatprep.subr.mxu0 0.0
      %1188 = vmatpush1.msra.mxu0 0.0
      %1189 = vmatprep.subr.mxu0 0.0
      %1190 = vmatpush1.msra.mxu0 0.0
      %1191 = vmatprep.subr.mxu0 0.0
      %1192 = vmatpush1.msra.mxu0 0.0
      %1193 = vmatprep.subr.mxu0 0.0
      %1194 = vmatpush1.msra.mxu0 0.0
      %1195 = vmatprep.subr.mxu0 0.0
      %1196 = vmatpush1.msra.mxu0 0.0
      %1197 = vmatprep.subr.mxu0 0.0
      %1198 = vmatpush1.msra.mxu0 0.0
      %1199 = vmatprep.subr.mxu0 0.0
      %1200 = vmatpush1.msra.mxu0 0.0
      %1201 = vmatprep.subr.mxu0 0.0
      %1202 = vmatpush1.msra.mxu0 0.0
      %1203 = vmatprep.subr.mxu0 0.0
      %1204 = vmatpush1.msra.mxu0 0.0
      %1205 = vmatprep.subr.mxu0 0.0
      %1206 = vmatpush1.msra.mxu0 0.0
      %1207 = vmatprep.subr.mxu0 0.0
      %1208 = vmatpush1.msra.mxu0 0.0
      %1209 = vmatprep.subr.mxu0 0.0
      %1210 = vmatpush1.msra.mxu0 0.0
      %1211 = vmatprep.subr.mxu0 0.0
      %1212 = vmatpush1.msra.mxu0 0.0
      %1213 = vmatprep.subr.mxu0 0.0
      %1214 = vmatpush1.msra.mxu0 0.0
      %1215 = vmatprep.subr.mxu0 0.0
      %1216 = vmatpush1.msra.mxu0 0.0
      %1217 = vmatprep.subr.mxu0 0.0
      %1218 = vmatpush1.msra.mxu0 0.0
      %1219 = vmatprep.subr.mxu0 0.0
      %1220 = vmatpush1.msra.mxu0 0.0
      %1221 = vmatprep.subr.mxu0 0.0
      %1222 = vmatpush1.msra.mxu0 0.0
      %1223 = vmatprep.mubr.f32.mxu0 0.0
      %1224 = vmatmul.mubr.f32.gmra.mrb[0].mxu0 %v1069
      %v1225 = vpop.f32.mrb[0].mxu0
      %v1226 = vadd.f32 0.0, %v1225
      %v1227 = vpop.f32.mrb[0].mxu0
      %v1228 = vadd.f32 0.0, %v1227
      %1229 = vmatprep.mubr.f32.mxu0 0.0
      %1230 = vmatmul.mubr.f32.gmra.mrb[0].mxu0 %v1072
      %v1231 = vpop.f32.mrb[0].mxu0
      %v1232 = vadd.f32 0.0, %v1231
      %v1233 = vpop.f32.mrb[0].mxu0
      %v1234 = vadd.f32 0.0, %v1233
      %1235 = vdwg.mxu0
      %v1236 = vadd.f32 %v1030, %v1149
      %v1237 = vadd.f32 %v1031, %v1151
      %v1238 = vadd.f32 %v1032, %v1226
      %v1239 = vadd.f32 %v1033, %v1228
      %v1240 = vadd.f32 %v1034, %v1155
      %v1241 = vadd.f32 %v1035, %v1157
      %v1242 = vadd.f32 %v1036, %v1232
      %v1243 = vadd.f32 %v1037, %v1234
      %v1244 = vld [vmem:[%s2] sm:$0xff]
      %v1245 = vld [vmem:[%s2 + $0x8] sm:$0xff]
      %1247 = vset.pattern.permute.xlu0 0
      %1248 = vperm.xlu0 %1247, %v1244
      %v1249 = vpop.permute.xlu0 %1248
      %1252 = vset.pattern.permute.xlu0 0
      %1253 = vperm.xlu0 %1252, %v1245
      %v1254 = vpop.permute.xlu0 %1253
      %v1256 = vadd.f32 %v1236, %v1249
      %v1257 = vadd.f32 %v1237, %v1249
      %v1258 = vadd.f32 %v1238, %v1249
      %v1259 = vadd.f32 %v1239, %v1249
      %v1260 = vadd.f32 %v1240, %v1254
      %v1261 = vadd.f32 %v1241, %v1254
      %v1262 = vadd.f32 %v1242, %v1254
      %v1263 = vadd.f32 %v1243, %v1254
      %v1264 = vmax.f32 %v1256, 0.0
      %v1265 = vmax.f32 %v1257, 0.0
      %v1266 = vmax.f32 %v1258, 0.0
      %v1267 = vmax.f32 %v1259, 0.0
      %v1268 = vmax.f32 %v1260, 0.0
      %v1269 = vmax.f32 %v1261, 0.0
      %v1270 = vmax.f32 %v1262, 0.0
      %v1271 = vmax.f32 %v1263, 0.0
      %1280 = vrot.lane.b32.xlu0 %v1264, 32
      %v1281 = vpop.permute.xlu0 %1280
      %1282 = vrot.lane.b32.xlu0 %v1265, 32
      %v1283 = vpop.permute.xlu0 %1282
      %1284 = vrot.lane.b32.xlu0 %v1266, 32
      %v1285 = vpop.permute.xlu0 %1284
      %1286 = vrot.lane.b32.xlu0 %v1267, 32
      %v1287 = vpop.permute.xlu0 %1286
      %1288 = vrot.lane.b32.xlu0 %v1268, 32
      %v1289 = vpop.permute.xlu0 %1288
      %1290 = vrot.lane.b32.xlu0 %v1269, 32
      %v1291 = vpop.permute.xlu0 %1290
      %1292 = vrot.lane.b32.xlu0 %v1270, 32
      %v1293 = vpop.permute.xlu0 %1292
      %1294 = vrot.lane.b32.xlu0 %v1271, 32
      %v1295 = vpop.permute.xlu0 %1294
      %v1296 = vsel %vm392, %v1281, %v1283
      %v1297 = vsel %vm392, %v1283, %v1285
      %v1298 = vsel %vm392, %v1285, %v1287
      %v1299 = vsel %vm392, %v1289, %v1291
      %v1300 = vsel %vm392, %v1291, %v1293
      %v1301 = vsel %vm392, %v1293, %v1295
      %1310 = vst.msk [vmem:[#allocation2] sm:$0xff] %vm407, %v1281
      %1311 = vst [vmem:[#allocation2 + $0x8] sm:$0xff] %v1296
      %1312 = vst [vmem:[#allocation2 + $0x10] sm:$0xff] %v1297
      %1313 = vst.msk [vmem:[#allocation2 + $0x18] sm:$0xff] %vm411, %v1298
      %1314 = vst.msk [vmem:[#allocation2 + $0x20] sm:$0xff] %vm407, %v1289
      %1315 = vst [vmem:[#allocation2 + $0x28] sm:$0xff] %v1299
      %1316 = vst [vmem:[#allocation2 + $0x30] sm:$0xff] %v1300
      %1317 = vst.msk [vmem:[#allocation2 + $0x38] sm:$0xff] %vm411, %v1301
      %v1318 = vld [vmem:[%s9] sm:$0xf]
      %v1319 = vld [vmem:[#allocation2] sm:$0xff]
      %v1320 = vld [vmem:[#allocation2 + $0x8] sm:$0xff]
      %v1321 = vld [vmem:[#allocation2 + $0x10] sm:$0xff]
      %v1322 = vld [vmem:[#allocation2 + $0x18] sm:$0xff]
      %v1323 = vld [vmem:[#allocation2 + $0x20] sm:$0xff]
      %v1324 = vld [vmem:[#allocation2 + $0x28] sm:$0xff]
      %v1325 = vld [vmem:[#allocation2 + $0x30] sm:$0xff]
      %v1326 = vld [vmem:[#allocation2 + $0x38] sm:$0xff]
      %v1327 = vld [vmem:[%s3] sm:$0xff]
      %v1328 = vld [vmem:[%s3 + $0x8] sm:$0xff]
      %s1329 = scalar_lea.vmem %s3, 16
      %v1330 = vld [vmem:[%s1329] sm:$0xff]
      %v1331 = vld [vmem:[%s1329 + $0x8] sm:$0xff]
      %1340 = vrot.lane.b32.xlu0 %v1319, 95
      %v1341 = vpop.permute.xlu0 %1340
      %1342 = vrot.lane.b32.xlu0 %v1320, 95
      %v1343 = vpop.permute.xlu0 %1342
      %1344 = vrot.lane.b32.xlu0 %v1321, 95
      %v1345 = vpop.permute.xlu0 %1344
      %1346 = vrot.lane.b32.xlu0 %v1322, 95
      %v1347 = vpop.permute.xlu0 %1346
      %1348 = vrot.lane.b32.xlu0 %v1323, 95
      %v1349 = vpop.permute.xlu0 %1348
      %1350 = vrot.lane.b32.xlu0 %v1324, 95
      %v1351 = vpop.permute.xlu0 %1350
      %1352 = vrot.lane.b32.xlu0 %v1325, 95
      %v1353 = vpop.permute.xlu0 %1352
      %1354 = vrot.lane.b32.xlu0 %v1326, 95
      %v1355 = vpop.permute.xlu0 %1354
      %vm1356 = vcmask 777216
      %v1357 = vsel %vm1356, %v1341, %v1343
      %v1358 = vsel %vm1356, %v1343, %v1345
      %v1359 = vsel %vm1356, %v1345, %v1347
      %v1360 = vsel %vm1356, %v1349, %v1351
      %v1361 = vsel %vm1356, %v1351, %v1353
      %v1362 = vsel %vm1356, %v1353, %v1355
      %vm1371 = vcmask 130048
      %v1373 = vsel %vm1371, %v1330, 0
      %v1376 = vsel %vm1371, %v1331, 0
      %1378 = vmatprep.subr.mxu0 %v1358
      %1379 = vmatpush1.msra.mxu0 %v1357
      %1380 = vmatprep.subr.mxu0 %v1361
      %1381 = vmatpush1.msra.mxu0 %v1360
      %1382 = vmatprep.subr.mxu0 0.0
      %1383 = vmatpush1.msra.mxu0 0.0
      %1384 = vmatprep.subr.mxu0 0.0
      %1385 = vmatpush1.msra.mxu0 0.0
      %1386 = vmatprep.subr.mxu0 0.0
      %1387 = vmatpush1.msra.mxu0 0.0
      %1388 = vmatprep.subr.mxu0 0.0
      %1389 = vmatpush1.msra.mxu0 0.0
      %1390 = vmatprep.subr.mxu0 0.0
      %1391 = vmatpush1.msra.mxu0 0.0
      %1392 = vmatprep.subr.mxu0 0.0
      %1393 = vmatpush1.msra.mxu0 0.0
      %1394 = vmatprep.subr.mxu0 0.0
      %1395 = vmatpush1.msra.mxu0 0.0
      %1396 = vmatprep.subr.mxu0 0.0
      %1397 = vmatpush1.msra.mxu0 0.0
      %1398 = vmatprep.subr.mxu0 0.0
      %1399 = vmatpush1.msra.mxu0 0.0
      %1400 = vmatprep.subr.mxu0 0.0
      %1401 = vmatpush1.msra.mxu0 0.0
      %1402 = vmatprep.subr.mxu0 0.0
      %1403 = vmatpush1.msra.mxu0 0.0
      %1404 = vmatprep.subr.mxu0 0.0
      %1405 = vmatpush1.msra.mxu0 0.0
      %1406 = vmatprep.subr.mxu0 0.0
      %1407 = vmatpush1.msra.mxu0 0.0
      %1408 = vmatprep.subr.mxu0 0.0
      %1409 = vmatpush1.msra.mxu0 0.0
      %1410 = vmatprep.subr.mxu0 0.0
      %1411 = vmatpush1.msra.mxu0 0.0
      %1412 = vmatprep.subr.mxu0 0.0
      %1413 = vmatpush1.msra.mxu0 0.0
      %1414 = vmatprep.subr.mxu0 0.0
      %1415 = vmatpush1.msra.mxu0 0.0
      %1416 = vmatprep.subr.mxu0 0.0
      %1417 = vmatpush1.msra.mxu0 0.0
      %1418 = vmatprep.subr.mxu0 0.0
      %1419 = vmatpush1.msra.mxu0 0.0
      %1420 = vmatprep.subr.mxu0 0.0
      %1421 = vmatpush1.msra.mxu0 0.0
      %1422 = vmatprep.subr.mxu0 0.0
      %1423 = vmatpush1.msra.mxu0 0.0
      %1424 = vmatprep.subr.mxu0 0.0
      %1425 = vmatpush1.msra.mxu0 0.0
      %1426 = vmatprep.subr.mxu0 0.0
      %1427 = vmatpush1.msra.mxu0 0.0
      %1428 = vmatprep.subr.mxu0 0.0
      %1429 = vmatpush1.msra.mxu0 0.0
      %1430 = vmatprep.subr.mxu0 0.0
      %1431 = vmatpush1.msra.mxu0 0.0
      %1432 = vmatprep.subr.mxu0 0.0
      %1433 = vmatpush1.msra.mxu0 0.0
      %1434 = vmatprep.subr.mxu0 0.0
      %1435 = vmatpush1.msra.mxu0 0.0
      %1436 = vmatprep.subr.mxu0 0.0
      %1437 = vmatpush1.msra.mxu0 0.0
      %1438 = vmatprep.subr.mxu0 0.0
      %1439 = vmatpush1.msra.mxu0 0.0
      %1440 = vmatprep.subr.mxu0 0.0
      %1441 = vmatpush1.msra.mxu0 0.0
      %1442 = vmatprep.mubr.f32.mxu0 0.0
      %1443 = vmatmul.mubr.f32.gmra.mrb[0].mxu0 %v1373
      %v1444 = vpop.f32.mrb[0].mxu0
      %v1445 = vadd.f32 0.0, %v1444
      %v1446 = vpop.f32.mrb[0].mxu0
      %v1447 = vadd.f32 0.0, %v1446
      %1448 = vmatprep.mubr.f32.mxu0 0.0
      %1449 = vmatmul.mubr.f32.gmra.mrb[0].mxu0 %v1376
      %v1450 = vpop.f32.mrb[0].mxu0
      %v1451 = vadd.f32 0.0, %v1450
      %v1452 = vpop.f32.mrb[0].mxu0
      %v1453 = vadd.f32 0.0, %v1452
      %1454 = vdwg.mxu0
      %1455 = vmatprep.subr.mxu0 %v1347
      %1456 = vmatpush1.msra.mxu0 %v1359
      %1457 = vmatprep.subr.mxu0 %v1355
      %1458 = vmatpush1.msra.mxu0 %v1362
      %1459 = vmatprep.subr.mxu0 0.0
      %1460 = vmatpush1.msra.mxu0 0.0
      %1461 = vmatprep.subr.mxu0 0.0
      %1462 = vmatpush1.msra.mxu0 0.0
      %1463 = vmatprep.subr.mxu0 0.0
      %1464 = vmatpush1.msra.mxu0 0.0
      %1465 = vmatprep.subr.mxu0 0.0
      %1466 = vmatpush1.msra.mxu0 0.0
      %1467 = vmatprep.subr.mxu0 0.0
      %1468 = vmatpush1.msra.mxu0 0.0
      %1469 = vmatprep.subr.mxu0 0.0
      %1470 = vmatpush1.msra.mxu0 0.0
      %1471 = vmatprep.subr.mxu0 0.0
      %1472 = vmatpush1.msra.mxu0 0.0
      %1473 = vmatprep.subr.mxu0 0.0
      %1474 = vmatpush1.msra.mxu0 0.0
      %1475 = vmatprep.subr.mxu0 0.0
      %1476 = vmatpush1.msra.mxu0 0.0
      %1477 = vmatprep.subr.mxu0 0.0
      %1478 = vmatpush1.msra.mxu0 0.0
      %1479 = vmatprep.subr.mxu0 0.0
      %1480 = vmatpush1.msra.mxu0 0.0
      %1481 = vmatprep.subr.mxu0 0.0
      %1482 = vmatpush1.msra.mxu0 0.0
      %1483 = vmatprep.subr.mxu0 0.0
      %1484 = vmatpush1.msra.mxu0 0.0
      %1485 = vmatprep.subr.mxu0 0.0
      %1486 = vmatpush1.msra.mxu0 0.0
      %1487 = vmatprep.subr.mxu0 0.0
      %1488 = vmatpush1.msra.mxu0 0.0
      %1489 = vmatprep.subr.mxu0 0.0
      %1490 = vmatpush1.msra.mxu0 0.0
      %1491 = vmatprep.subr.mxu0 0.0
      %1492 = vmatpush1.msra.mxu0 0.0
      %1493 = vmatprep.subr.mxu0 0.0
      %1494 = vmatpush1.msra.mxu0 0.0
      %1495 = vmatprep.subr.mxu0 0.0
      %1496 = vmatpush1.msra.mxu0 0.0
      %1497 = vmatprep.subr.mxu0 0.0
      %1498 = vmatpush1.msra.mxu0 0.0
      %1499 = vmatprep.subr.mxu0 0.0
      %1500 = vmatpush1.msra.mxu0 0.0
      %1501 = vmatprep.subr.mxu0 0.0
      %1502 = vmatpush1.msra.mxu0 0.0
      %1503 = vmatprep.subr.mxu0 0.0
      %1504 = vmatpush1.msra.mxu0 0.0
      %1505 = vmatprep.subr.mxu0 0.0
      %1506 = vmatpush1.msra.mxu0 0.0
      %1507 = vmatprep.subr.mxu0 0.0
      %1508 = vmatpush1.msra.mxu0 0.0
      %1509 = vmatprep.subr.mxu0 0.0
      %1510 = vmatpush1.msra.mxu0 0.0
      %1511 = vmatprep.subr.mxu0 0.0
      %1512 = vmatpush1.msra.mxu0 0.0
      %1513 = vmatprep.subr.mxu0 0.0
      %1514 = vmatpush1.msra.mxu0 0.0
      %1515 = vmatprep.subr.mxu0 0.0
      %1516 = vmatpush1.msra.mxu0 0.0
      %1517 = vmatprep.subr.mxu0 0.0
      %1518 = vmatpush1.msra.mxu0 0.0
      %1519 = vmatprep.mubr.f32.mxu0 0.0
      %1520 = vmatmul.mubr.f32.gmra.mrb[0].mxu0 %v1373
      %v1521 = vpop.f32.mrb[0].mxu0
      %v1522 = vadd.f32 0.0, %v1521
      %v1523 = vpop.f32.mrb[0].mxu0
      %v1524 = vadd.f32 0.0, %v1523
      %1525 = vmatprep.mubr.f32.mxu0 0.0
      %1526 = vmatmul.mubr.f32.gmra.mrb[0].mxu0 %v1376
      %v1527 = vpop.f32.mrb[0].mxu0
      %v1528 = vadd.f32 0.0, %v1527
      %v1529 = vpop.f32.mrb[0].mxu0
      %v1530 = vadd.f32 0.0, %v1529
      %1531 = vdwg.mxu0
      %1532 = vrot.lane.b32.xlu0 %v1319, 96
      %v1533 = vpop.permute.xlu0 %1532
      %1534 = vrot.lane.b32.xlu0 %v1320, 96
      %v1535 = vpop.permute.xlu0 %1534
      %1536 = vrot.lane.b32.xlu0 %v1321, 96
      %v1537 = vpop.permute.xlu0 %1536
      %1538 = vrot.lane.b32.xlu0 %v1322, 96
      %v1539 = vpop.permute.xlu0 %1538
      %1540 = vrot.lane.b32.xlu0 %v1323, 96
      %v1541 = vpop.permute.xlu0 %1540
      %1542 = vrot.lane.b32.xlu0 %v1324, 96
      %v1543 = vpop.permute.xlu0 %1542
      %1544 = vrot.lane.b32.xlu0 %v1325, 96
      %v1545 = vpop.permute.xlu0 %1544
      %1546 = vrot.lane.b32.xlu0 %v1326, 96
      %v1547 = vpop.permute.xlu0 %1546
      %v1548 = vsel %vm1057, %v1533, %v1535
      %v1549 = vsel %vm1057, %v1535, %v1537
      %v1550 = vsel %vm1057, %v1537, %v1539
      %v1551 = vsel %vm1057, %v1541, %v1543
      %v1552 = vsel %vm1057, %v1543, %v1545
      %v1553 = vsel %vm1057, %v1545, %v1547
      %v1563 = vsel %vm1371, %v1327, 0
      %v1566 = vsel %vm1371, %v1328, 0
      %1568 = vmatprep.subr.mxu0 %v1549
      %1569 = vmatpush1.msra.mxu0 %v1548
      %1570 = vmatprep.subr.mxu0 %v1552
      %1571 = vmatpush1.msra.mxu0 %v1551
      %1572 = vmatprep.subr.mxu0 0.0
      %1573 = vmatpush1.msra.mxu0 0.0
      %1574 = vmatprep.subr.mxu0 0.0
      %1575 = vmatpush1.msra.mxu0 0.0
      %1576 = vmatprep.subr.mxu0 0.0
      %1577 = vmatpush1.msra.mxu0 0.0
      %1578 = vmatprep.subr.mxu0 0.0
      %1579 = vmatpush1.msra.mxu0 0.0
      %1580 = vmatprep.subr.mxu0 0.0
      %1581 = vmatpush1.msra.mxu0 0.0
      %1582 = vmatprep.subr.mxu0 0.0
      %1583 = vmatpush1.msra.mxu0 0.0
      %1584 = vmatprep.subr.mxu0 0.0
      %1585 = vmatpush1.msra.mxu0 0.0
      %1586 = vmatprep.subr.mxu0 0.0
      %1587 = vmatpush1.msra.mxu0 0.0
      %1588 = vmatprep.subr.mxu0 0.0
      %1589 = vmatpush1.msra.mxu0 0.0
      %1590 = vmatprep.subr.mxu0 0.0
      %1591 = vmatpush1.msra.mxu0 0.0
      %1592 = vmatprep.subr.mxu0 0.0
      %1593 = vmatpush1.msra.mxu0 0.0
      %1594 = vmatprep.subr.mxu0 0.0
      %1595 = vmatpush1.msra.mxu0 0.0
      %1596 = vmatprep.subr.mxu0 0.0
      %1597 = vmatpush1.msra.mxu0 0.0
      %1598 = vmatprep.subr.mxu0 0.0
      %1599 = vmatpush1.msra.mxu0 0.0
      %1600 = vmatprep.subr.mxu0 0.0
      %1601 = vmatpush1.msra.mxu0 0.0
      %1602 = vmatprep.subr.mxu0 0.0
      %1603 = vmatpush1.msra.mxu0 0.0
      %1604 = vmatprep.subr.mxu0 0.0
      %1605 = vmatpush1.msra.mxu0 0.0
      %1606 = vmatprep.subr.mxu0 0.0
      %1607 = vmatpush1.msra.mxu0 0.0
      %1608 = vmatprep.subr.mxu0 0.0
      %1609 = vmatpush1.msra.mxu0 0.0
      %1610 = vmatprep.subr.mxu0 0.0
      %1611 = vmatpush1.msra.mxu0 0.0
      %1612 = vmatprep.subr.mxu0 0.0
      %1613 = vmatpush1.msra.mxu0 0.0
      %1614 = vmatprep.subr.mxu0 0.0
      %1615 = vmatpush1.msra.mxu0 0.0
      %1616 = vmatprep.subr.mxu0 0.0
      %1617 = vmatpush1.msra.mxu0 0.0
      %1618 = vmatprep.subr.mxu0 0.0
      %1619 = vmatpush1.msra.mxu0 0.0
      %1620 = vmatprep.subr.mxu0 0.0
      %1621 = vmatpush1.msra.mxu0 0.0
      %1622 = vmatprep.subr.mxu0 0.0
      %1623 = vmatpush1.msra.mxu0 0.0
      %1624 = vmatprep.subr.mxu0 0.0
      %1625 = vmatpush1.msra.mxu0 0.0
      %1626 = vmatprep.subr.mxu0 0.0
      %1627 = vmatpush1.msra.mxu0 0.0
      %1628 = vmatprep.subr.mxu0 0.0
      %1629 = vmatpush1.msra.mxu0 0.0
      %1630 = vmatprep.subr.mxu0 0.0
      %1631 = vmatpush1.msra.mxu0 0.0
      %1632 = vmatprep.mubr.f32.mxu0 0.0
      %1633 = vmatmul.mubr.f32.gmra.mrb[0].mxu0 %v1563
      %v1634 = vpop.f32.mrb[0].mxu0
      %v1635 = vadd.f32 %v1445, %v1634
      %v1636 = vpop.f32.mrb[0].mxu0
      %v1637 = vadd.f32 %v1447, %v1636
      %1638 = vmatprep.mubr.f32.mxu0 0.0
      %1639 = vmatmul.mubr.f32.gmra.mrb[0].mxu0 %v1566
      %v1640 = vpop.f32.mrb[0].mxu0
      %v1641 = vadd.f32 %v1451, %v1640
      %v1642 = vpop.f32.mrb[0].mxu0
      %v1643 = vadd.f32 %v1453, %v1642
      %1644 = vdwg.mxu0
      %1645 = vmatprep.subr.mxu0 %v1539
      %1646 = vmatpush1.msra.mxu0 %v1550
      %1647 = vmatprep.subr.mxu0 %v1547
      %1648 = vmatpush1.msra.mxu0 %v1553
      %1649 = vmatprep.subr.mxu0 0.0
      %1650 = vmatpush1.msra.mxu0 0.0
      %1651 = vmatprep.subr.mxu0 0.0
      %1652 = vmatpush1.msra.mxu0 0.0
      %1653 = vmatprep.subr.mxu0 0.0
      %1654 = vmatpush1.msra.mxu0 0.0
      %1655 = vmatprep.subr.mxu0 0.0
      %1656 = vmatpush1.msra.mxu0 0.0
      %1657 = vmatprep.subr.mxu0 0.0
      %1658 = vmatpush1.msra.mxu0 0.0
      %1659 = vmatprep.subr.mxu0 0.0
      %1660 = vmatpush1.msra.mxu0 0.0
      %1661 = vmatprep.subr.mxu0 0.0
      %1662 = vmatpush1.msra.mxu0 0.0
      %1663 = vmatprep.subr.mxu0 0.0
      %1664 = vmatpush1.msra.mxu0 0.0
      %1665 = vmatprep.subr.mxu0 0.0
      %1666 = vmatpush1.msra.mxu0 0.0
      %1667 = vmatprep.subr.mxu0 0.0
      %1668 = vmatpush1.msra.mxu0 0.0
      %1669 = vmatprep.subr.mxu0 0.0
      %1670 = vmatpush1.msra.mxu0 0.0
      %1671 = vmatprep.subr.mxu0 0.0
      %1672 = vmatpush1.msra.mxu0 0.0
      %1673 = vmatprep.subr.mxu0 0.0
      %1674 = vmatpush1.msra.mxu0 0.0
      %1675 = vmatprep.subr.mxu0 0.0
      %1676 = vmatpush1.msra.mxu0 0.0
      %1677 = vmatprep.subr.mxu0 0.0
      %1678 = vmatpush1.msra.mxu0 0.0
      %1679 = vmatprep.subr.mxu0 0.0
      %1680 = vmatpush1.msra.mxu0 0.0
      %1681 = vmatprep.subr.mxu0 0.0
      %1682 = vmatpush1.msra.mxu0 0.0
      %1683 = vmatprep.subr.mxu0 0.0
      %1684 = vmatpush1.msra.mxu0 0.0
      %1685 = vmatprep.subr.mxu0 0.0
      %1686 = vmatpush1.msra.mxu0 0.0
      %1687 = vmatprep.subr.mxu0 0.0
      %1688 = vmatpush1.msra.mxu0 0.0
      %1689 = vmatprep.subr.mxu0 0.0
      %1690 = vmatpush1.msra.mxu0 0.0
      %1691 = vmatprep.subr.mxu0 0.0
      %1692 = vmatpush1.msra.mxu0 0.0
      %1693 = vmatprep.subr.mxu0 0.0
      %1694 = vmatpush1.msra.mxu0 0.0
      %1695 = vmatprep.subr.mxu0 0.0
      %1696 = vmatpush1.msra.mxu0 0.0
      %1697 = vmatprep.subr.mxu0 0.0
      %1698 = vmatpush1.msra.mxu0 0.0
      %1699 = vmatprep.subr.mxu0 0.0
      %1700 = vmatpush1.msra.mxu0 0.0
      %1701 = vmatprep.subr.mxu0 0.0
      %1702 = vmatpush1.msra.mxu0 0.0
      %1703 = vmatprep.subr.mxu0 0.0
      %1704 = vmatpush1.msra.mxu0 0.0
      %1705 = vmatprep.subr.mxu0 0.0
      %1706 = vmatpush1.msra.mxu0 0.0
      %1707 = vmatprep.subr.mxu0 0.0
      %1708 = vmatpush1.msra.mxu0 0.0
      %1709 = vmatprep.mubr.f32.mxu0 0.0
      %1710 = vmatmul.mubr.f32.gmra.mrb[0].mxu0 %v1563
      %v1711 = vpop.f32.mrb[0].mxu0
      %v1712 = vadd.f32 %v1522, %v1711
      %v1713 = vpop.f32.mrb[0].mxu0
      %v1714 = vadd.f32 %v1524, %v1713
      %1715 = vmatprep.mubr.f32.mxu0 0.0
      %1716 = vmatmul.mubr.f32.gmra.mrb[0].mxu0 %v1566
      %v1717 = vpop.f32.mrb[0].mxu0
      %v1718 = vadd.f32 %v1528, %v1717
      %v1719 = vpop.f32.mrb[0].mxu0
      %v1720 = vadd.f32 %v1530, %v1719
      %1721 = vdwg.mxu0
      %s1722 = scalar_lea.vmem %s3, 32
      %v1723 = vld [vmem:[%s1722] sm:$0xff]
      %v1724 = vld [vmem:[%s1722 + $0x8] sm:$0xff]
      %1725 = vrot.lane.b32.xlu0 %v1319, 76
      %v1726 = vpop.permute.xlu0 %1725
      %1727 = vrot.lane.b32.xlu0 %v1320, 76
      %v1728 = vpop.permute.xlu0 %1727
      %1729 = vrot.lane.b32.xlu0 %v1321, 76
      %v1730 = vpop.permute.xlu0 %1729
      %1731 = vrot.lane.b32.xlu0 %v1322, 76
      %v1732 = vpop.permute.xlu0 %1731
      %1733 = vrot.lane.b32.xlu0 %v1323, 76
      %v1734 = vpop.permute.xlu0 %1733
      %1735 = vrot.lane.b32.xlu0 %v1324, 76
      %v1736 = vpop.permute.xlu0 %1735
      %1737 = vrot.lane.b32.xlu0 %v1325, 76
      %v1738 = vpop.permute.xlu0 %1737
      %1739 = vrot.lane.b32.xlu0 %v1326, 76
      %v1740 = vpop.permute.xlu0 %1739
      %vm1741 = vcmask 621568
      %v1742 = vsel %vm1741, %v1726, %v1728
      %v1743 = vsel %vm1741, %v1728, %v1730
      %v1744 = vsel %vm1741, %v1730, %v1732
      %v1745 = vsel %vm1741, %v1734, %v1736
      %v1746 = vsel %vm1741, %v1736, %v1738
      %v1747 = vsel %vm1741, %v1738, %v1740
      %v1757 = vsel %vm1371, %v1723, 0
      %v1760 = vsel %vm1371, %v1724, 0
      %1762 = vmatprep.subr.mxu0 %v1743
      %1763 = vmatpush1.msra.mxu0 %v1742
      %1764 = vmatprep.subr.mxu0 %v1746
      %1765 = vmatpush1.msra.mxu0 %v1745
      %1766 = vmatprep.subr.mxu0 0.0
      %1767 = vmatpush1.msra.mxu0 0.0
      %1768 = vmatprep.subr.mxu0 0.0
      %1769 = vmatpush1.msra.mxu0 0.0
      %1770 = vmatprep.subr.mxu0 0.0
      %1771 = vmatpush1.msra.mxu0 0.0
      %1772 = vmatprep.subr.mxu0 0.0
      %1773 = vmatpush1.msra.mxu0 0.0
      %1774 = vmatprep.subr.mxu0 0.0
      %1775 = vmatpush1.msra.mxu0 0.0
      %1776 = vmatprep.subr.mxu0 0.0
      %1777 = vmatpush1.msra.mxu0 0.0
      %1778 = vmatprep.subr.mxu0 0.0
      %1779 = vmatpush1.msra.mxu0 0.0
      %1780 = vmatprep.subr.mxu0 0.0
      %1781 = vmatpush1.msra.mxu0 0.0
      %1782 = vmatprep.subr.mxu0 0.0
      %1783 = vmatpush1.msra.mxu0 0.0
      %1784 = vmatprep.subr.mxu0 0.0
      %1785 = vmatpush1.msra.mxu0 0.0
      %1786 = vmatprep.subr.mxu0 0.0
      %1787 = vmatpush1.msra.mxu0 0.0
      %1788 = vmatprep.subr.mxu0 0.0
      %1789 = vmatpush1.msra.mxu0 0.0
      %1790 = vmatprep.subr.mxu0 0.0
      %1791 = vmatpush1.msra.mxu0 0.0
      %1792 = vmatprep.subr.mxu0 0.0
      %1793 = vmatpush1.msra.mxu0 0.0
      %1794 = vmatprep.subr.mxu0 0.0
      %1795 = vmatpush1.msra.mxu0 0.0
      %1796 = vmatprep.subr.mxu0 0.0
      %1797 = vmatpush1.msra.mxu0 0.0
      %1798 = vmatprep.subr.mxu0 0.0
      %1799 = vmatpush1.msra.mxu0 0.0
      %1800 = vmatprep.subr.mxu0 0.0
      %1801 = vmatpush1.msra.mxu0 0.0
      %1802 = vmatprep.subr.mxu0 0.0
      %1803 = vmatpush1.msra.mxu0 0.0
      %1804 = vmatprep.subr.mxu0 0.0
      %1805 = vmatpush1.msra.mxu0 0.0
      %1806 = vmatprep.subr.mxu0 0.0
      %1807 = vmatpush1.msra.mxu0 0.0
      %1808 = vmatprep.subr.mxu0 0.0
      %1809 = vmatpush1.msra.mxu0 0.0
      %1810 = vmatprep.subr.mxu0 0.0
      %1811 = vmatpush1.msra.mxu0 0.0
      %1812 = vmatprep.subr.mxu0 0.0
      %1813 = vmatpush1.msra.mxu0 0.0
      %1814 = vmatprep.subr.mxu0 0.0
      %1815 = vmatpush1.msra.mxu0 0.0
      %1816 = vmatprep.subr.mxu0 0.0
      %1817 = vmatpush1.msra.mxu0 0.0
      %1818 = vmatprep.subr.mxu0 0.0
      %1819 = vmatpush1.msra.mxu0 0.0
      %1820 = vmatprep.subr.mxu0 0.0
      %1821 = vmatpush1.msra.mxu0 0.0
      %1822 = vmatprep.subr.mxu0 0.0
      %1823 = vmatpush1.msra.mxu0 0.0
      %1824 = vmatprep.subr.mxu0 0.0
      %1825 = vmatpush1.msra.mxu0 0.0
      %1826 = vmatprep.mubr.f32.mxu0 0.0
      %1827 = vmatmul.mubr.f32.gmra.mrb[0].mxu0 %v1757
      %v1828 = vpop.f32.mrb[0].mxu0
      %v1829 = vadd.f32 0.0, %v1828
      %v1830 = vpop.f32.mrb[0].mxu0
      %v1831 = vadd.f32 0.0, %v1830
      %1832 = vmatprep.mubr.f32.mxu0 0.0
      %1833 = vmatmul.mubr.f32.gmra.mrb[0].mxu0 %v1760
      %v1834 = vpop.f32.mrb[0].mxu0
      %v1835 = vadd.f32 0.0, %v1834
      %v1836 = vpop.f32.mrb[0].mxu0
      %v1837 = vadd.f32 0.0, %v1836
      %1838 = vdwg.mxu0
      %1839 = vmatprep.subr.mxu0 %v1732
      %1840 = vmatpush1.msra.mxu0 %v1744
      %1841 = vmatprep.subr.mxu0 %v1740
      %1842 = vmatpush1.msra.mxu0 %v1747
      %1843 = vmatprep.subr.mxu0 0.0
      %1844 = vmatpush1.msra.mxu0 0.0
      %1845 = vmatprep.subr.mxu0 0.0
      %1846 = vmatpush1.msra.mxu0 0.0
      %1847 = vmatprep.subr.mxu0 0.0
      %1848 = vmatpush1.msra.mxu0 0.0
      %1849 = vmatprep.subr.mxu0 0.0
      %1850 = vmatpush1.msra.mxu0 0.0
      %1851 = vmatprep.subr.mxu0 0.0
      %1852 = vmatpush1.msra.mxu0 0.0
      %1853 = vmatprep.subr.mxu0 0.0
      %1854 = vmatpush1.msra.mxu0 0.0
      %1855 = vmatprep.subr.mxu0 0.0
      %1856 = vmatpush1.msra.mxu0 0.0
      %1857 = vmatprep.subr.mxu0 0.0
      %1858 = vmatpush1.msra.mxu0 0.0
      %1859 = vmatprep.subr.mxu0 0.0
      %1860 = vmatpush1.msra.mxu0 0.0
      %1861 = vmatprep.subr.mxu0 0.0
      %1862 = vmatpush1.msra.mxu0 0.0
      %1863 = vmatprep.subr.mxu0 0.0
      %1864 = vmatpush1.msra.mxu0 0.0
      %1865 = vmatprep.subr.mxu0 0.0
      %1866 = vmatpush1.msra.mxu0 0.0
      %1867 = vmatprep.subr.mxu0 0.0
      %1868 = vmatpush1.msra.mxu0 0.0
      %1869 = vmatprep.subr.mxu0 0.0
      %1870 = vmatpush1.msra.mxu0 0.0
      %1871 = vmatprep.subr.mxu0 0.0
      %1872 = vmatpush1.msra.mxu0 0.0
      %1873 = vmatprep.subr.mxu0 0.0
      %1874 = vmatpush1.msra.mxu0 0.0
      %1875 = vmatprep.subr.mxu0 0.0
      %1876 = vmatpush1.msra.mxu0 0.0
      %1877 = vmatprep.subr.mxu0 0.0
      %1878 = vmatpush1.msra.mxu0 0.0
      %1879 = vmatprep.subr.mxu0 0.0
      %1880 = vmatpush1.msra.mxu0 0.0
      %1881 = vmatprep.subr.mxu0 0.0
      %1882 = vmatpush1.msra.mxu0 0.0
      %1883 = vmatprep.subr.mxu0 0.0
      %1884 = vmatpush1.msra.mxu0 0.0
      %1885 = vmatprep.subr.mxu0 0.0
      %1886 = vmatpush1.msra.mxu0 0.0
      %1887 = vmatprep.subr.mxu0 0.0
      %1888 = vmatpush1.msra.mxu0 0.0
      %1889 = vmatprep.subr.mxu0 0.0
      %1890 = vmatpush1.msra.mxu0 0.0
      %1891 = vmatprep.subr.mxu0 0.0
      %1892 = vmatpush1.msra.mxu0 0.0
      %1893 = vmatprep.subr.mxu0 0.0
      %1894 = vmatpush1.msra.mxu0 0.0
      %1895 = vmatprep.subr.mxu0 0.0
      %1896 = vmatpush1.msra.mxu0 0.0
      %1897 = vmatprep.subr.mxu0 0.0
      %1898 = vmatpush1.msra.mxu0 0.0
      %1899 = vmatprep.subr.mxu0 0.0
      %1900 = vmatpush1.msra.mxu0 0.0
      %1901 = vmatprep.subr.mxu0 0.0
      %1902 = vmatpush1.msra.mxu0 0.0
      %1903 = vmatprep.mubr.f32.mxu0 0.0
      %1904 = vmatmul.mubr.f32.gmra.mrb[0].mxu0 %v1757
      %v1905 = vpop.f32.mrb[0].mxu0
      %v1906 = vadd.f32 0.0, %v1905
      %v1907 = vpop.f32.mrb[0].mxu0
      %v1908 = vadd.f32 0.0, %v1907
      %1909 = vmatprep.mubr.f32.mxu0 0.0
      %1910 = vmatmul.mubr.f32.gmra.mrb[0].mxu0 %v1760
      %v1911 = vpop.f32.mrb[0].mxu0
      %v1912 = vadd.f32 0.0, %v1911
      %v1913 = vpop.f32.mrb[0].mxu0
      %v1914 = vadd.f32 0.0, %v1913
      %1915 = vdwg.mxu0
      %v1916 = vadd.f32 %v1635, %v1829
      %v1917 = vadd.f32 %v1637, %v1831
      %v1918 = vadd.f32 %v1712, %v1906
      %v1919 = vadd.f32 %v1714, %v1908
      %v1920 = vadd.f32 %v1641, %v1835
      %v1921 = vadd.f32 %v1643, %v1837
      %v1922 = vadd.f32 %v1718, %v1912
      %v1923 = vadd.f32 %v1720, %v1914
      %s1924 = scalar_lea.vmem %s3, 48
      %v1925 = vld [vmem:[%s1924] sm:$0xff]
      %v1926 = vld [vmem:[%s1924 + $0x8] sm:$0xff]
      %1927 = vrot.lane.b32.xlu0 %v1319, 75
      %v1928 = vpop.permute.xlu0 %1927
      %1929 = vrot.lane.b32.xlu0 %v1320, 75
      %v1930 = vpop.permute.xlu0 %1929
      %1931 = vrot.lane.b32.xlu0 %v1321, 75
      %v1932 = vpop.permute.xlu0 %1931
      %1933 = vrot.lane.b32.xlu0 %v1322, 75
      %v1934 = vpop.permute.xlu0 %1933
      %1935 = vrot.lane.b32.xlu0 %v1323, 75
      %v1936 = vpop.permute.xlu0 %1935
      %1937 = vrot.lane.b32.xlu0 %v1324, 75
      %v1938 = vpop.permute.xlu0 %1937
      %1939 = vrot.lane.b32.xlu0 %v1325, 75
      %v1940 = vpop.permute.xlu0 %1939
      %1941 = vrot.lane.b32.xlu0 %v1326, 75
      %v1942 = vpop.permute.xlu0 %1941
      %vm1943 = vcmask 613376
      %v1944 = vsel %vm1943, %v1928, %v1930
      %v1945 = vsel %vm1943, %v1930, %v1932
      %v1946 = vsel %vm1943, %v1932, %v1934
      %v1947 = vsel %vm1943, %v1936, %v1938
      %v1948 = vsel %vm1943, %v1938, %v1940
      %v1949 = vsel %vm1943, %v1940, %v1942
      %v1959 = vsel %vm1371, %v1925, 0
      %v1962 = vsel %vm1371, %v1926, 0
      %1964 = vmatprep.subr.mxu0 %v1945
      %1965 = vmatpush1.msra.mxu0 %v1944
      %1966 = vmatprep.subr.mxu0 %v1948
      %1967 = vmatpush1.msra.mxu0 %v1947
      %1968 = vmatprep.subr.mxu0 0.0
      %1969 = vmatpush1.msra.mxu0 0.0
      %1970 = vmatprep.subr.mxu0 0.0
      %1971 = vmatpush1.msra.mxu0 0.0
      %1972 = vmatprep.subr.mxu0 0.0
      %1973 = vmatpush1.msra.mxu0 0.0
      %1974 = vmatprep.subr.mxu0 0.0
      %1975 = vmatpush1.msra.mxu0 0.0
      %1976 = vmatprep.subr.mxu0 0.0
      %1977 = vmatpush1.msra.mxu0 0.0
      %1978 = vmatprep.subr.mxu0 0.0
      %1979 = vmatpush1.msra.mxu0 0.0
      %1980 = vmatprep.subr.mxu0 0.0
      %1981 = vmatpush1.msra.mxu0 0.0
      %1982 = vmatprep.subr.mxu0 0.0
      %1983 = vmatpush1.msra.mxu0 0.0
      %1984 = vmatprep.subr.mxu0 0.0
      %1985 = vmatpush1.msra.mxu0 0.0
      %1986 = vmatprep.subr.mxu0 0.0
      %1987 = vmatpush1.msra.mxu0 0.0
      %1988 = vmatprep.subr.mxu0 0.0
      %1989 = vmatpush1.msra.mxu0 0.0
      %1990 = vmatprep.subr.mxu0 0.0
      %1991 = vmatpush1.msra.mxu0 0.0
      %1992 = vmatprep.subr.mxu0 0.0
      %1993 = vmatpush1.msra.mxu0 0.0
      %1994 = vmatprep.subr.mxu0 0.0
      %1995 = vmatpush1.msra.mxu0 0.0
      %1996 = vmatprep.subr.mxu0 0.0
      %1997 = vmatpush1.msra.mxu0 0.0
      %1998 = vmatprep.subr.mxu0 0.0
      %1999 = vmatpush1.msra.mxu0 0.0
      %2000 = vmatprep.subr.mxu0 0.0
      %2001 = vmatpush1.msra.mxu0 0.0
      %2002 = vmatprep.subr.mxu0 0.0
      %2003 = vmatpush1.msra.mxu0 0.0
      %2004 = vmatprep.subr.mxu0 0.0
      %2005 = vmatpush1.msra.mxu0 0.0
      %2006 = vmatprep.subr.mxu0 0.0
      %2007 = vmatpush1.msra.mxu0 0.0
      %2008 = vmatprep.subr.mxu0 0.0
      %2009 = vmatpush1.msra.mxu0 0.0
      %2010 = vmatprep.subr.mxu0 0.0
      %2011 = vmatpush1.msra.mxu0 0.0
      %2012 = vmatprep.subr.mxu0 0.0
      %2013 = vmatpush1.msra.mxu0 0.0
      %2014 = vmatprep.subr.mxu0 0.0
      %2015 = vmatpush1.msra.mxu0 0.0
      %2016 = vmatprep.subr.mxu0 0.0
      %2017 = vmatpush1.msra.mxu0 0.0
      %2018 = vmatprep.subr.mxu0 0.0
      %2019 = vmatpush1.msra.mxu0 0.0
      %2020 = vmatprep.subr.mxu0 0.0
      %2021 = vmatpush1.msra.mxu0 0.0
      %2022 = vmatprep.subr.mxu0 0.0
      %2023 = vmatpush1.msra.mxu0 0.0
      %2024 = vmatprep.subr.mxu0 0.0
      %2025 = vmatpush1.msra.mxu0 0.0
      %2026 = vmatprep.subr.mxu0 0.0
      %2027 = vmatpush1.msra.mxu0 0.0
      %2028 = vmatprep.mubr.f32.mxu0 0.0
      %2029 = vmatmul.mubr.f32.gmra.mrb[0].mxu0 %v1959
      %v2030 = vpop.f32.mrb[0].mxu0
      %v2031 = vadd.f32 0.0, %v2030
      %v2032 = vpop.f32.mrb[0].mxu0
      %v2033 = vadd.f32 0.0, %v2032
      %2034 = vmatprep.mubr.f32.mxu0 0.0
      %2035 = vmatmul.mubr.f32.gmra.mrb[0].mxu0 %v1962
      %v2036 = vpop.f32.mrb[0].mxu0
      %v2037 = vadd.f32 0.0, %v2036
      %v2038 = vpop.f32.mrb[0].mxu0
      %v2039 = vadd.f32 0.0, %v2038
      %2040 = vdwg.mxu0
      %2041 = vmatprep.subr.mxu0 %v1934
      %2042 = vmatpush1.msra.mxu0 %v1946
      %2043 = vmatprep.subr.mxu0 %v1942
      %2044 = vmatpush1.msra.mxu0 %v1949
      %2045 = vmatprep.subr.mxu0 0.0
      %2046 = vmatpush1.msra.mxu0 0.0
      %2047 = vmatprep.subr.mxu0 0.0
      %2048 = vmatpush1.msra.mxu0 0.0
      %2049 = vmatprep.subr.mxu0 0.0
      %2050 = vmatpush1.msra.mxu0 0.0
      %2051 = vmatprep.subr.mxu0 0.0
      %2052 = vmatpush1.msra.mxu0 0.0
      %2053 = vmatprep.subr.mxu0 0.0
      %2054 = vmatpush1.msra.mxu0 0.0
      %2055 = vmatprep.subr.mxu0 0.0
      %2056 = vmatpush1.msra.mxu0 0.0
      %2057 = vmatprep.subr.mxu0 0.0
      %2058 = vmatpush1.msra.mxu0 0.0
      %2059 = vmatprep.subr.mxu0 0.0
      %2060 = vmatpush1.msra.mxu0 0.0
      %2061 = vmatprep.subr.mxu0 0.0
      %2062 = vmatpush1.msra.mxu0 0.0
      %2063 = vmatprep.subr.mxu0 0.0
      %2064 = vmatpush1.msra.mxu0 0.0
      %2065 = vmatprep.subr.mxu0 0.0
      %2066 = vmatpush1.msra.mxu0 0.0
      %2067 = vmatprep.subr.mxu0 0.0
      %2068 = vmatpush1.msra.mxu0 0.0
      %2069 = vmatprep.subr.mxu0 0.0
      %2070 = vmatpush1.msra.mxu0 0.0
      %2071 = vmatprep.subr.mxu0 0.0
      %2072 = vmatpush1.msra.mxu0 0.0
      %2073 = vmatprep.subr.mxu0 0.0
      %2074 = vmatpush1.msra.mxu0 0.0
      %2075 = vmatprep.subr.mxu0 0.0
      %2076 = vmatpush1.msra.mxu0 0.0
      %2077 = vmatprep.subr.mxu0 0.0
      %2078 = vmatpush1.msra.mxu0 0.0
      %2079 = vmatprep.subr.mxu0 0.0
      %2080 = vmatpush1.msra.mxu0 0.0
      %2081 = vmatprep.subr.mxu0 0.0
      %2082 = vmatpush1.msra.mxu0 0.0
      %2083 = vmatprep.subr.mxu0 0.0
      %2084 = vmatpush1.msra.mxu0 0.0
      %2085 = vmatprep.subr.mxu0 0.0
      %2086 = vmatpush1.msra.mxu0 0.0
      %2087 = vmatprep.subr.mxu0 0.0
      %2088 = vmatpush1.msra.mxu0 0.0
      %2089 = vmatprep.subr.mxu0 0.0
      %2090 = vmatpush1.msra.mxu0 0.0
      %2091 = vmatprep.subr.mxu0 0.0
      %2092 = vmatpush1.msra.mxu0 0.0
      %2093 = vmatprep.subr.mxu0 0.0
      %2094 = vmatpush1.msra.mxu0 0.0
      %2095 = vmatprep.subr.mxu0 0.0
      %2096 = vmatpush1.msra.mxu0 0.0
      %2097 = vmatprep.subr.mxu0 0.0
      %2098 = vmatpush1.msra.mxu0 0.0
      %2099 = vmatprep.subr.mxu0 0.0
      %2100 = vmatpush1.msra.mxu0 0.0
      %2101 = vmatprep.subr.mxu0 0.0
      %2102 = vmatpush1.msra.mxu0 0.0
      %2103 = vmatprep.subr.mxu0 0.0
      %2104 = vmatpush1.msra.mxu0 0.0
      %2105 = vmatprep.mubr.f32.mxu0 0.0
      %2106 = vmatmul.mubr.f32.gmra.mrb[0].mxu0 %v1959
      %v2107 = vpop.f32.mrb[0].mxu0
      %v2108 = vadd.f32 0.0, %v2107
      %v2109 = vpop.f32.mrb[0].mxu0
      %v2110 = vadd.f32 0.0, %v2109
      %2111 = vmatprep.mubr.f32.mxu0 0.0
      %2112 = vmatmul.mubr.f32.gmra.mrb[0].mxu0 %v1962
      %v2113 = vpop.f32.mrb[0].mxu0
      %v2114 = vadd.f32 0.0, %v2113
      %v2115 = vpop.f32.mrb[0].mxu0
      %v2116 = vadd.f32 0.0, %v2115
      %2117 = vdwg.mxu0
      %v2118 = vadd.f32 %v1916, %v2031
      %v2119 = vadd.f32 %v1917, %v2033
      %v2120 = vadd.f32 %v1918, %v2108
      %v2121 = vadd.f32 %v1919, %v2110
      %v2122 = vadd.f32 %v1920, %v2037
      %v2123 = vadd.f32 %v1921, %v2039
      %v2124 = vadd.f32 %v1922, %v2114
      %v2125 = vadd.f32 %v1923, %v2116
      %v2126 = vld [vmem:[%s4] sm:$0xff]
      %v2127 = vld [vmem:[%s4 + $0x8] sm:$0xff]
      %2129 = vset.pattern.permute.xlu0 0
      %2130 = vperm.xlu0 %2129, %v2126
      %v2131 = vpop.permute.xlu0 %2130
      %2134 = vset.pattern.permute.xlu0 0
      %2135 = vperm.xlu0 %2134, %v2127
      %v2136 = vpop.permute.xlu0 %2135
      %v2138 = vadd.f32 %v2118, %v2131
      %v2139 = vadd.f32 %v2119, %v2131
      %v2140 = vadd.f32 %v2120, %v2131
      %v2141 = vadd.f32 %v2121, %v2131
      %v2142 = vadd.f32 %v2122, %v2136
      %v2143 = vadd.f32 %v2123, %v2136
      %v2144 = vadd.f32 %v2124, %v2136
      %v2145 = vadd.f32 %v2125, %v2136
      %v2146 = vmax.f32 %v2138, 0.0
      %v2147 = vmax.f32 %v2139, 0.0
      %v2148 = vmax.f32 %v2140, 0.0
      %v2149 = vmax.f32 %v2141, 0.0
      %v2150 = vmax.f32 %v2142, 0.0
      %v2151 = vmax.f32 %v2143, 0.0
      %v2152 = vmax.f32 %v2144, 0.0
      %v2153 = vmax.f32 %v2145, 0.0
      %v2155 = vlaneseq
      %v2156 = vshrl.u32 %v2155, 7
      %v2157 = vsub.s32 0, %v2156
      %v2158 = vrot.slane %v1318, %v2157
      %v2159 = vlaneseq
      %v2160 = vshrl.u32 %v2159, 7
      %v2161 = vsub.s32 1, %v2160
      %v2162 = vrot.slane %v1318, %v2161
      %v2163 = vlaneseq
      %v2164 = vshrl.u32 %v2163, 7
      %v2165 = vsub.s32 2, %v2164
      %v2166 = vrot.slane %v1318, %v2165
      %v2167 = vlaneseq
      %v2168 = vshrl.u32 %v2167, 7
      %v2169 = vsub.s32 3, %v2168
      %v2170 = vrot.slane %v1318, %v2169
      %v2175 = vmul.f32 %v2146, %v2158
      %v2176 = vmul.f32 %v2147, %v2162
      %v2177 = vmul.f32 %v2148, %v2166
      %v2178 = vmul.f32 %v2149, %v2170
      %v2179 = vmul.f32 %v2150, %v2158
      %v2180 = vmul.f32 %v2151, %v2162
      %v2181 = vmul.f32 %v2152, %v2166
      %v2182 = vmul.f32 %v2153, %v2170
      %2191 = vrot.lane.b32.xlu0 %v2175, 32
      %v2192 = vpop.permute.xlu0 %2191
      %2193 = vrot.lane.b32.xlu0 %v2176, 32
      %v2194 = vpop.permute.xlu0 %2193
      %2195 = vrot.lane.b32.xlu0 %v2177, 32
      %v2196 = vpop.permute.xlu0 %2195
      %2197 = vrot.lane.b32.xlu0 %v2178, 32
      %v2198 = vpop.permute.xlu0 %2197
      %2199 = vrot.lane.b32.xlu0 %v2179, 32
      %v2200 = vpop.permute.xlu0 %2199
      %2201 = vrot.lane.b32.xlu0 %v2180, 32
      %v2202 = vpop.permute.xlu0 %2201
      %2203 = vrot.lane.b32.xlu0 %v2181, 32
      %v2204 = vpop.permute.xlu0 %2203
      %2205 = vrot.lane.b32.xlu0 %v2182, 32
      %v2206 = vpop.permute.xlu0 %2205
      %v2207 = vsel %vm392, %v2192, %v2194
      %v2208 = vsel %vm392, %v2194, %v2196
      %v2209 = vsel %vm392, %v2196, %v2198
      %v2210 = vsel %vm392, %v2200, %v2202
      %v2211 = vsel %vm392, %v2202, %v2204
      %v2212 = vsel %vm392, %v2204, %v2206
      %2221 = vst.msk [vmem:[#allocation2] sm:$0xff] %vm407, %v2192
      %2222 = vst [vmem:[#allocation2 + $0x8] sm:$0xff] %v2207
      %2223 = vst [vmem:[#allocation2 + $0x10] sm:$0xff] %v2208
      %2224 = vst.msk [vmem:[#allocation2 + $0x18] sm:$0xff] %vm411, %v2209
      %2225 = vst.msk [vmem:[#allocation2 + $0x20] sm:$0xff] %vm407, %v2200
      %2226 = vst [vmem:[#allocation2 + $0x28] sm:$0xff] %v2210
      %2227 = vst [vmem:[#allocation2 + $0x30] sm:$0xff] %v2211
      %2228 = vst.msk [vmem:[#allocation2 + $0x38] sm:$0xff] %vm411, %v2212
      %v2229 = vld [vmem:[#allocation2] sm:$0xff]
      %v2230 = vld [vmem:[#allocation2 + $0x8] sm:$0xff]
      %v2231 = vld [vmem:[#allocation2 + $0x10] sm:$0xff]
      %v2232 = vld [vmem:[#allocation2 + $0x18] sm:$0xff]
      %v2233 = vld [vmem:[#allocation2 + $0x20] sm:$0xff]
      %v2234 = vld [vmem:[#allocation2 + $0x28] sm:$0xff]
      %v2235 = vld [vmem:[#allocation2 + $0x30] sm:$0xff]
      %v2236 = vld [vmem:[#allocation2 + $0x38] sm:$0xff]
      %v2237 = vld [vmem:[%s5] sm:$0xff]
      %v2238 = vld [vmem:[%s5 + $0x8] sm:$0xff]
      %s2239 = scalar_lea.vmem %s5, 16
      %v2240 = vld [vmem:[%s2239] sm:$0xff]
      %v2241 = vld [vmem:[%s2239 + $0x8] sm:$0xff]
      %2250 = vrot.lane.b32.xlu0 %v2229, 116
      %v2251 = vpop.permute.xlu0 %2250
      %2252 = vrot.lane.b32.xlu0 %v2230, 116
      %v2253 = vpop.permute.xlu0 %2252
      %2254 = vrot.lane.b32.xlu0 %v2231, 116
      %v2255 = vpop.permute.xlu0 %2254
      %2256 = vrot.lane.b32.xlu0 %v2232, 116
      %v2257 = vpop.permute.xlu0 %2256
      %2258 = vrot.lane.b32.xlu0 %v2233, 116
      %v2259 = vpop.permute.xlu0 %2258
      %2260 = vrot.lane.b32.xlu0 %v2234, 116
      %v2261 = vpop.permute.xlu0 %2260
      %2262 = vrot.lane.b32.xlu0 %v2235, 116
      %v2263 = vpop.permute.xlu0 %2262
      %2264 = vrot.lane.b32.xlu0 %v2236, 116
      %v2265 = vpop.permute.xlu0 %2264
      %v2266 = vsel %vm456, %v2251, %v2253
      %v2267 = vsel %vm456, %v2253, %v2255
      %v2268 = vsel %vm456, %v2255, %v2257
      %v2269 = vsel %vm456, %v2259, %v2261
      %v2270 = vsel %vm456, %v2261, %v2263
      %v2271 = vsel %vm456, %v2263, %v2265
      %v2281 = vsel %vm1371, %v2240, 0
      %v2284 = vsel %vm1371, %v2241, 0
      %2286 = vmatprep.subr.mxu0 %v2267
      %2287 = vmatpush1.msra.mxu0 %v2266
      %2288 = vmatprep.subr.mxu0 %v2270
      %2289 = vmatpush1.msra.mxu0 %v2269
      %2290 = vmatprep.subr.mxu0 0.0
      %2291 = vmatpush1.msra.mxu0 0.0
      %2292 = vmatprep.subr.mxu0 0.0
      %2293 = vmatpush1.msra.mxu0 0.0
      %2294 = vmatprep.subr.mxu0 0.0
      %2295 = vmatpush1.msra.mxu0 0.0
      %2296 = vmatprep.subr.mxu0 0.0
      %2297 = vmatpush1.msra.mxu0 0.0
      %2298 = vmatprep.subr.mxu0 0.0
      %2299 = vmatpush1.msra.mxu0 0.0
      %2300 = vmatprep.subr.mxu0 0.0
      %2301 = vmatpush1.msra.mxu0 0.0
      %2302 = vmatprep.subr.mxu0 0.0
      %2303 = vmatpush1.msra.mxu0 0.0
      %2304 = vmatprep.subr.mxu0 0.0
      %2305 = vmatpush1.msra.mxu0 0.0
      %2306 = vmatprep.subr.mxu0 0.0
      %2307 = vmatpush1.msra.mxu0 0.0
      %2308 = vmatprep.subr.mxu0 0.0
      %2309 = vmatpush1.msra.mxu0 0.0
      %2310 = vmatprep.subr.mxu0 0.0
      %2311 = vmatpush1.msra.mxu0 0.0
      %2312 = vmatprep.subr.mxu0 0.0
      %2313 = vmatpush1.msra.mxu0 0.0
      %2314 = vmatprep.subr.mxu0 0.0
      %2315 = vmatpush1.msra.mxu0 0.0
      %2316 = vmatprep.subr.mxu0 0.0
      %2317 = vmatpush1.msra.mxu0 0.0
      %2318 = vmatprep.subr.mxu0 0.0
      %2319 = vmatpush1.msra.mxu0 0.0
      %2320 = vmatprep.subr.mxu0 0.0
      %2321 = vmatpush1.msra.mxu0 0.0
      %2322 = vmatprep.subr.mxu0 0.0
      %2323 = vmatpush1.msra.mxu0 0.0
      %2324 = vmatprep.subr.mxu0 0.0
      %2325 = vmatpush1.msra.mxu0 0.0
      %2326 = vmatprep.subr.mxu0 0.0
      %2327 = vmatpush1.msra.mxu0 0.0
      %2328 = vmatprep.subr.mxu0 0.0
      %2329 = vmatpush1.msra.mxu0 0.0
      %2330 = vmatprep.subr.mxu0 0.0
      %2331 = vmatpush1.msra.mxu0 0.0
      %2332 = vmatprep.subr.mxu0 0.0
      %2333 = vmatpush1.msra.mxu0 0.0
      %2334 = vmatprep.subr.mxu0 0.0
      %2335 = vmatpush1.msra.mxu0 0.0
      %2336 = vmatprep.subr.mxu0 0.0
      %2337 = vmatpush1.msra.mxu0 0.0
      %2338 = vmatprep.subr.mxu0 0.0
      %2339 = vmatpush1.msra.mxu0 0.0
      %2340 = vmatprep.subr.mxu0 0.0
      %2341 = vmatpush1.msra.mxu0 0.0
      %2342 = vmatprep.subr.mxu0 0.0
      %2343 = vmatpush1.msra.mxu0 0.0
      %2344 = vmatprep.subr.mxu0 0.0
      %2345 = vmatpush1.msra.mxu0 0.0
      %2346 = vmatprep.subr.mxu0 0.0
      %2347 = vmatpush1.msra.mxu0 0.0
      %2348 = vmatprep.subr.mxu0 0.0
      %2349 = vmatpush1.msra.mxu0 0.0
      %2350 = vmatprep.mubr.f32.mxu0 0.0
      %2351 = vmatmul.mubr.f32.gmra.mrb[0].mxu0 %v2281
      %v2352 = vpop.f32.mrb[0].mxu0
      %v2353 = vadd.f32 0.0, %v2352
      %v2354 = vpop.f32.mrb[0].mxu0
      %v2355 = vadd.f32 0.0, %v2354
      %2356 = vmatprep.mubr.f32.mxu0 0.0
      %2357 = vmatmul.mubr.f32.gmra.mrb[0].mxu0 %v2284
      %v2358 = vpop.f32.mrb[0].mxu0
      %v2359 = vadd.f32 0.0, %v2358
      %v2360 = vpop.f32.mrb[0].mxu0
      %v2361 = vadd.f32 0.0, %v2360
      %2362 = vdwg.mxu0
      %2363 = vmatprep.subr.mxu0 %v2257
      %2364 = vmatpush1.msra.mxu0 %v2268
      %2365 = vmatprep.subr.mxu0 %v2265
      %2366 = vmatpush1.msra.mxu0 %v2271
      %2367 = vmatprep.subr.mxu0 0.0
      %2368 = vmatpush1.msra.mxu0 0.0
      %2369 = vmatprep.subr.mxu0 0.0
      %2370 = vmatpush1.msra.mxu0 0.0
      %2371 = vmatprep.subr.mxu0 0.0
      %2372 = vmatpush1.msra.mxu0 0.0
      %2373 = vmatprep.subr.mxu0 0.0
      %2374 = vmatpush1.msra.mxu0 0.0
      %2375 = vmatprep.subr.mxu0 0.0
      %2376 = vmatpush1.msra.mxu0 0.0
      %2377 = vmatprep.subr.mxu0 0.0
      %2378 = vmatpush1.msra.mxu0 0.0
      %2379 = vmatprep.subr.mxu0 0.0
      %2380 = vmatpush1.msra.mxu0 0.0
      %2381 = vmatprep.subr.mxu0 0.0
      %2382 = vmatpush1.msra.mxu0 0.0
      %2383 = vmatprep.subr.mxu0 0.0
      %2384 = vmatpush1.msra.mxu0 0.0
      %2385 = vmatprep.subr.mxu0 0.0
      %2386 = vmatpush1.msra.mxu0 0.0
      %2387 = vmatprep.subr.mxu0 0.0
      %2388 = vmatpush1.msra.mxu0 0.0
      %2389 = vmatprep.subr.mxu0 0.0
      %2390 = vmatpush1.msra.mxu0 0.0
      %2391 = vmatprep.subr.mxu0 0.0
      %2392 = vmatpush1.msra.mxu0 0.0
      %2393 = vmatprep.subr.mxu0 0.0
      %2394 = vmatpush1.msra.mxu0 0.0
      %2395 = vmatprep.subr.mxu0 0.0
      %2396 = vmatpush1.msra.mxu0 0.0
      %2397 = vmatprep.subr.mxu0 0.0
      %2398 = vmatpush1.msra.mxu0 0.0
      %2399 = vmatprep.subr.mxu0 0.0
      %2400 = vmatpush1.msra.mxu0 0.0
      %2401 = vmatprep.subr.mxu0 0.0
      %2402 = vmatpush1.msra.mxu0 0.0
      %2403 = vmatprep.subr.mxu0 0.0
      %2404 = vmatpush1.msra.mxu0 0.0
      %2405 = vmatprep.subr.mxu0 0.0
      %2406 = vmatpush1.msra.mxu0 0.0
      %2407 = vmatprep.subr.mxu0 0.0
      %2408 = vmatpush1.msra.mxu0 0.0
      %2409 = vmatprep.subr.mxu0 0.0
      %2410 = vmatpush1.msra.mxu0 0.0
      %2411 = vmatprep.subr.mxu0 0.0
      %2412 = vmatpush1.msra.mxu0 0.0
      %2413 = vmatprep.subr.mxu0 0.0
      %2414 = vmatpush1.msra.mxu0 0.0
      %2415 = vmatprep.subr.mxu0 0.0
      %2416 = vmatpush1.msra.mxu0 0.0
      %2417 = vmatprep.subr.mxu0 0.0
      %2418 = vmatpush1.msra.mxu0 0.0
      %2419 = vmatprep.subr.mxu0 0.0
      %2420 = vmatpush1.msra.mxu0 0.0
      %2421 = vmatprep.subr.mxu0 0.0
      %2422 = vmatpush1.msra.mxu0 0.0
      %2423 = vmatprep.subr.mxu0 0.0
      %2424 = vmatpush1.msra.mxu0 0.0
      %2425 = vmatprep.subr.mxu0 0.0
      %2426 = vmatpush1.msra.mxu0 0.0
      %2427 = vmatprep.mubr.f32.mxu0 0.0
      %2428 = vmatmul.mubr.f32.gmra.mrb[0].mxu0 %v2281
      %v2429 = vpop.f32.mrb[0].mxu0
      %v2430 = vadd.f32 0.0, %v2429
      %v2431 = vpop.f32.mrb[0].mxu0
      %v2432 = vadd.f32 0.0, %v2431
      %2433 = vmatprep.mubr.f32.mxu0 0.0
      %2434 = vmatmul.mubr.f32.gmra.mrb[0].mxu0 %v2284
      %v2435 = vpop.f32.mrb[0].mxu0
      %v2436 = vadd.f32 0.0, %v2435
      %v2437 = vpop.f32.mrb[0].mxu0
      %v2438 = vadd.f32 0.0, %v2437
      %2439 = vdwg.mxu0
      %2440 = vrot.lane.b32.xlu0 %v2229, 117
      %v2441 = vpop.permute.xlu0 %2440
      %2442 = vrot.lane.b32.xlu0 %v2230, 117
      %v2443 = vpop.permute.xlu0 %2442
      %2444 = vrot.lane.b32.xlu0 %v2231, 117
      %v2445 = vpop.permute.xlu0 %2444
      %2446 = vrot.lane.b32.xlu0 %v2232, 117
      %v2447 = vpop.permute.xlu0 %2446
      %2448 = vrot.lane.b32.xlu0 %v2233, 117
      %v2449 = vpop.permute.xlu0 %2448
      %2450 = vrot.lane.b32.xlu0 %v2234, 117
      %v2451 = vpop.permute.xlu0 %2450
      %2452 = vrot.lane.b32.xlu0 %v2235, 117
      %v2453 = vpop.permute.xlu0 %2452
      %2454 = vrot.lane.b32.xlu0 %v2236, 117
      %v2455 = vpop.permute.xlu0 %2454
      %v2456 = vsel %vm653, %v2441, %v2443
      %v2457 = vsel %vm653, %v2443, %v2445
      %v2458 = vsel %vm653, %v2445, %v2447
      %v2459 = vsel %vm653, %v2449, %v2451
      %v2460 = vsel %vm653, %v2451, %v2453
      %v2461 = vsel %vm653, %v2453, %v2455
      %v2471 = vsel %vm1371, %v2237, 0
      %v2474 = vsel %vm1371, %v2238, 0
      %2476 = vmatprep.subr.mxu0 %v2457
      %2477 = vmatpush1.msra.mxu0 %v2456
      %2478 = vmatprep.subr.mxu0 %v2460
      %2479 = vmatpush1.msra.mxu0 %v2459
      %2480 = vmatprep.subr.mxu0 0.0
      %2481 = vmatpush1.msra.mxu0 0.0
      %2482 = vmatprep.subr.mxu0 0.0
      %2483 = vmatpush1.msra.mxu0 0.0
      %2484 = vmatprep.subr.mxu0 0.0
      %2485 = vmatpush1.msra.mxu0 0.0
      %2486 = vmatprep.subr.mxu0 0.0
      %2487 = vmatpush1.msra.mxu0 0.0
      %2488 = vmatprep.subr.mxu0 0.0
      %2489 = vmatpush1.msra.mxu0 0.0
      %2490 = vmatprep.subr.mxu0 0.0
      %2491 = vmatpush1.msra.mxu0 0.0
      %2492 = vmatprep.subr.mxu0 0.0
      %2493 = vmatpush1.msra.mxu0 0.0
      %2494 = vmatprep.subr.mxu0 0.0
      %2495 = vmatpush1.msra.mxu0 0.0
      %2496 = vmatprep.subr.mxu0 0.0
      %2497 = vmatpush1.msra.mxu0 0.0
      %2498 = vmatprep.subr.mxu0 0.0
      %2499 = vmatpush1.msra.mxu0 0.0
      %2500 = vmatprep.subr.mxu0 0.0
      %2501 = vmatpush1.msra.mxu0 0.0
      %2502 = vmatprep.subr.mxu0 0.0
      %2503 = vmatpush1.msra.mxu0 0.0
      %2504 = vmatprep.subr.mxu0 0.0
      %2505 = vmatpush1.msra.mxu0 0.0
      %2506 = vmatprep.subr.mxu0 0.0
      %2507 = vmatpush1.msra.mxu0 0.0
      %2508 = vmatprep.subr.mxu0 0.0
      %2509 = vmatpush1.msra.mxu0 0.0
      %2510 = vmatprep.subr.mxu0 0.0
      %2511 = vmatpush1.msra.mxu0 0.0
      %2512 = vmatprep.subr.mxu0 0.0
      %2513 = vmatpush1.msra.mxu0 0.0
      %2514 = vmatprep.subr.mxu0 0.0
      %2515 = vmatpush1.msra.mxu0 0.0
      %2516 = vmatprep.subr.mxu0 0.0
      %2517 = vmatpush1.msra.mxu0 0.0
      %2518 = vmatprep.subr.mxu0 0.0
      %2519 = vmatpush1.msra.mxu0 0.0
      %2520 = vmatprep.subr.mxu0 0.0
      %2521 = vmatpush1.msra.mxu0 0.0
      %2522 = vmatprep.subr.mxu0 0.0
      %2523 = vmatpush1.msra.mxu0 0.0
      %2524 = vmatprep.subr.mxu0 0.0
      %2525 = vmatpush1.msra.mxu0 0.0
      %2526 = vmatprep.subr.mxu0 0.0
      %2527 = vmatpush1.msra.mxu0 0.0
      %2528 = vmatprep.subr.mxu0 0.0
      %2529 = vmatpush1.msra.mxu0 0.0
      %2530 = vmatprep.subr.mxu0 0.0
      %2531 = vmatpush1.msra.mxu0 0.0
      %2532 = vmatprep.subr.mxu0 0.0
      %2533 = vmatpush1.msra.mxu0 0.0
      %2534 = vmatprep.subr.mxu0 0.0
      %2535 = vmatpush1.msra.mxu0 0.0
      %2536 = vmatprep.subr.mxu0 0.0
      %2537 = vmatpush1.msra.mxu0 0.0
      %2538 = vmatprep.subr.mxu0 0.0
      %2539 = vmatpush1.msra.mxu0 0.0
      %2540 = vmatprep.mubr.f32.mxu0 0.0
      %2541 = vmatmul.mubr.f32.gmra.mrb[0].mxu0 %v2471
      %v2542 = vpop.f32.mrb[0].mxu0
      %v2543 = vadd.f32 %v2353, %v2542
      %v2544 = vpop.f32.mrb[0].mxu0
      %v2545 = vadd.f32 %v2355, %v2544
      %2546 = vmatprep.mubr.f32.mxu0 0.0
      %2547 = vmatmul.mubr.f32.gmra.mrb[0].mxu0 %v2474
      %v2548 = vpop.f32.mrb[0].mxu0
      %v2549 = vadd.f32 %v2359, %v2548
      %v2550 = vpop.f32.mrb[0].mxu0
      %v2551 = vadd.f32 %v2361, %v2550
      %2552 = vdwg.mxu0
      %2553 = vmatprep.subr.mxu0 %v2447
      %2554 = vmatpush1.msra.mxu0 %v2458
      %2555 = vmatprep.subr.mxu0 %v2455
      %2556 = vmatpush1.msra.mxu0 %v2461
      %2557 = vmatprep.subr.mxu0 0.0
      %2558 = vmatpush1.msra.mxu0 0.0
      %2559 = vmatprep.subr.mxu0 0.0
      %2560 = vmatpush1.msra.mxu0 0.0
      %2561 = vmatprep.subr.mxu0 0.0
      %2562 = vmatpush1.msra.mxu0 0.0
      %2563 = vmatprep.subr.mxu0 0.0
      %2564 = vmatpush1.msra.mxu0 0.0
      %2565 = vmatprep.subr.mxu0 0.0
      %2566 = vmatpush1.msra.mxu0 0.0
      %2567 = vmatprep.subr.mxu0 0.0
      %2568 = vmatpush1.msra.mxu0 0.0
      %2569 = vmatprep.subr.mxu0 0.0
      %2570 = vmatpush1.msra.mxu0 0.0
      %2571 = vmatprep.subr.mxu0 0.0
      %2572 = vmatpush1.msra.mxu0 0.0
      %2573 = vmatprep.subr.mxu0 0.0
      %2574 = vmatpush1.msra.mxu0 0.0
      %2575 = vmatprep.subr.mxu0 0.0
      %2576 = vmatpush1.msra.mxu0 0.0
      %2577 = vmatprep.subr.mxu0 0.0
      %2578 = vmatpush1.msra.mxu0 0.0
      %2579 = vmatprep.subr.mxu0 0.0
      %2580 = vmatpush1.msra.mxu0 0.0
      %2581 = vmatprep.subr.mxu0 0.0
      %2582 = vmatpush1.msra.mxu0 0.0
      %2583 = vmatprep.subr.mxu0 0.0
      %2584 = vmatpush1.msra.mxu0 0.0
      %2585 = vmatprep.subr.mxu0 0.0
      %2586 = vmatpush1.msra.mxu0 0.0
      %2587 = vmatprep.subr.mxu0 0.0
      %2588 = vmatpush1.msra.mxu0 0.0
      %2589 = vmatprep.subr.mxu0 0.0
      %2590 = vmatpush1.msra.mxu0 0.0
      %2591 = vmatprep.subr.mxu0 0.0
      %2592 = vmatpush1.msra.mxu0 0.0
      %2593 = vmatprep.subr.mxu0 0.0
      %2594 = vmatpush1.msra.mxu0 0.0
      %2595 = vmatprep.subr.mxu0 0.0
      %2596 = vmatpush1.msra.mxu0 0.0
      %2597 = vmatprep.subr.mxu0 0.0
      %2598 = vmatpush1.msra.mxu0 0.0
      %2599 = vmatprep.subr.mxu0 0.0
      %2600 = vmatpush1.msra.mxu0 0.0
      %2601 = vmatprep.subr.mxu0 0.0
      %2602 = vmatpush1.msra.mxu0 0.0
      %2603 = vmatprep.subr.mxu0 0.0
      %2604 = vmatpush1.msra.mxu0 0.0
      %2605 = vmatprep.subr.mxu0 0.0
      %2606 = vmatpush1.msra.mxu0 0.0
      %2607 = vmatprep.subr.mxu0 0.0
      %2608 = vmatpush1.msra.mxu0 0.0
      %2609 = vmatprep.subr.mxu0 0.0
      %2610 = vmatpush1.msra.mxu0 0.0
      %2611 = vmatprep.subr.mxu0 0.0
      %2612 = vmatpush1.msra.mxu0 0.0
      %2613 = vmatprep.subr.mxu0 0.0
      %2614 = vmatpush1.msra.mxu0 0.0
      %2615 = vmatprep.subr.mxu0 0.0
      %2616 = vmatpush1.msra.mxu0 0.0
      %2617 = vmatprep.mubr.f32.mxu0 0.0
      %2618 = vmatmul.mubr.f32.gmra.mrb[0].mxu0 %v2471
      %v2619 = vpop.f32.mrb[0].mxu0
      %v2620 = vadd.f32 %v2430, %v2619
      %v2621 = vpop.f32.mrb[0].mxu0
      %v2622 = vadd.f32 %v2432, %v2621
      %2623 = vmatprep.mubr.f32.mxu0 0.0
      %2624 = vmatmul.mubr.f32.gmra.mrb[0].mxu0 %v2474
      %v2625 = vpop.f32.mrb[0].mxu0
      %v2626 = vadd.f32 %v2436, %v2625
      %v2627 = vpop.f32.mrb[0].mxu0
      %v2628 = vadd.f32 %v2438, %v2627
      %2629 = vdwg.mxu0
      %s2630 = scalar_lea.vmem %s5, 32
      %v2631 = vld [vmem:[%s2630] sm:$0xff]
      %v2632 = vld [vmem:[%s2630 + $0x8] sm:$0xff]
      %2633 = vrot.lane.b32.xlu0 %v2229, 115
      %v2634 = vpop.permute.xlu0 %2633
      %2635 = vrot.lane.b32.xlu0 %v2230, 115
      %v2636 = vpop.permute.xlu0 %2635
      %2637 = vrot.lane.b32.xlu0 %v2231, 115
      %v2638 = vpop.permute.xlu0 %2637
      %2639 = vrot.lane.b32.xlu0 %v2232, 115
      %v2640 = vpop.permute.xlu0 %2639
      %2641 = vrot.lane.b32.xlu0 %v2233, 115
      %v2642 = vpop.permute.xlu0 %2641
      %2643 = vrot.lane.b32.xlu0 %v2234, 115
      %v2644 = vpop.permute.xlu0 %2643
      %2645 = vrot.lane.b32.xlu0 %v2235, 115
      %v2646 = vpop.permute.xlu0 %2645
      %2647 = vrot.lane.b32.xlu0 %v2236, 115
      %v2648 = vpop.permute.xlu0 %2647
      %vm2649 = vcmask 941056
      %v2650 = vsel %vm2649, %v2634, %v2636
      %v2651 = vsel %vm2649, %v2636, %v2638
      %v2652 = vsel %vm2649, %v2638, %v2640
      %v2653 = vsel %vm2649, %v2642, %v2644
      %v2654 = vsel %vm2649, %v2644, %v2646
      %v2655 = vsel %vm2649, %v2646, %v2648
      %v2665 = vsel %vm1371, %v2631, 0
      %v2668 = vsel %vm1371, %v2632, 0
      %2670 = vmatprep.subr.mxu0 %v2651
      %2671 = vmatpush1.msra.mxu0 %v2650
      %2672 = vmatprep.subr.mxu0 %v2654
      %2673 = vmatpush1.msra.mxu0 %v2653
      %2674 = vmatprep.subr.mxu0 0.0
      %2675 = vmatpush1.msra.mxu0 0.0
      %2676 = vmatprep.subr.mxu0 0.0
      %2677 = vmatpush1.msra.mxu0 0.0
      %2678 = vmatprep.subr.mxu0 0.0
      %2679 = vmatpush1.msra.mxu0 0.0
      %2680 = vmatprep.subr.mxu0 0.0
      %2681 = vmatpush1.msra.mxu0 0.0
      %2682 = vmatprep.subr.mxu0 0.0
      %2683 = vmatpush1.msra.mxu0 0.0
      %2684 = vmatprep.subr.mxu0 0.0
      %2685 = vmatpush1.msra.mxu0 0.0
      %2686 = vmatprep.subr.mxu0 0.0
      %2687 = vmatpush1.msra.mxu0 0.0
      %2688 = vmatprep.subr.mxu0 0.0
      %2689 = vmatpush1.msra.mxu0 0.0
      %2690 = vmatprep.subr.mxu0 0.0
      %2691 = vmatpush1.msra.mxu0 0.0
      %2692 = vmatprep.subr.mxu0 0.0
      %2693 = vmatpush1.msra.mxu0 0.0
      %2694 = vmatprep.subr.mxu0 0.0
      %2695 = vmatpush1.msra.mxu0 0.0
      %2696 = vmatprep.subr.mxu0 0.0
      %2697 = vmatpush1.msra.mxu0 0.0
      %2698 = vmatprep.subr.mxu0 0.0
      %2699 = vmatpush1.msra.mxu0 0.0
      %2700 = vmatprep.subr.mxu0 0.0
      %2701 = vmatpush1.msra.mxu0 0.0
      %2702 = vmatprep.subr.mxu0 0.0
      %2703 = vmatpush1.msra.mxu0 0.0
      %2704 = vmatprep.subr.mxu0 0.0
      %2705 = vmatpush1.msra.mxu0 0.0
      %2706 = vmatprep.subr.mxu0 0.0
      %2707 = vmatpush1.msra.mxu0 0.0
      %2708 = vmatprep.subr.mxu0 0.0
      %2709 = vmatpush1.msra.mxu0 0.0
      %2710 = vmatprep.subr.mxu0 0.0
      %2711 = vmatpush1.msra.mxu0 0.0
      %2712 = vmatprep.subr.mxu0 0.0
      %2713 = vmatpush1.msra.mxu0 0.0
      %2714 = vmatprep.subr.mxu0 0.0
      %2715 = vmatpush1.msra.mxu0 0.0
      %2716 = vmatprep.subr.mxu0 0.0
      %2717 = vmatpush1.msra.mxu0 0.0
      %2718 = vmatprep.subr.mxu0 0.0
      %2719 = vmatpush1.msra.mxu0 0.0
      %2720 = vmatprep.subr.mxu0 0.0
      %2721 = vmatpush1.msra.mxu0 0.0
      %2722 = vmatprep.subr.mxu0 0.0
      %2723 = vmatpush1.msra.mxu0 0.0
      %2724 = vmatprep.subr.mxu0 0.0
      %2725 = vmatpush1.msra.mxu0 0.0
      %2726 = vmatprep.subr.mxu0 0.0
      %2727 = vmatpush1.msra.mxu0 0.0
      %2728 = vmatprep.subr.mxu0 0.0
      %2729 = vmatpush1.msra.mxu0 0.0
      %2730 = vmatprep.subr.mxu0 0.0
      %2731 = vmatpush1.msra.mxu0 0.0
      %2732 = vmatprep.subr.mxu0 0.0
      %2733 = vmatpush1.msra.mxu0 0.0
      %2734 = vmatprep.mubr.f32.mxu0 0.0
      %2735 = vmatmul.mubr.f32.gmra.mrb[0].mxu0 %v2665
      %v2736 = vpop.f32.mrb[0].mxu0
      %v2737 = vadd.f32 0.0, %v2736
      %v2738 = vpop.f32.mrb[0].mxu0
      %v2739 = vadd.f32 0.0, %v2738
      %2740 = vmatprep.mubr.f32.mxu0 0.0
      %2741 = vmatmul.mubr.f32.gmra.mrb[0].mxu0 %v2668
      %v2742 = vpop.f32.mrb[0].mxu0
      %v2743 = vadd.f32 0.0, %v2742
      %v2744 = vpop.f32.mrb[0].mxu0
      %v2745 = vadd.f32 0.0, %v2744
      %2746 = vdwg.mxu0
      %2747 = vmatprep.subr.mxu0 %v2640
      %2748 = vmatpush1.msra.mxu0 %v2652
      %2749 = vmatprep.subr.mxu0 %v2648
      %2750 = vmatpush1.msra.mxu0 %v2655
      %2751 = vmatprep.subr.mxu0 0.0
      %2752 = vmatpush1.msra.mxu0 0.0
      %2753 = vmatprep.subr.mxu0 0.0
      %2754 = vmatpush1.msra.mxu0 0.0
      %2755 = vmatprep.subr.mxu0 0.0
      %2756 = vmatpush1.msra.mxu0 0.0
      %2757 = vmatprep.subr.mxu0 0.0
      %2758 = vmatpush1.msra.mxu0 0.0
      %2759 = vmatprep.subr.mxu0 0.0
      %2760 = vmatpush1.msra.mxu0 0.0
      %2761 = vmatprep.subr.mxu0 0.0
      %2762 = vmatpush1.msra.mxu0 0.0
      %2763 = vmatprep.subr.mxu0 0.0
      %2764 = vmatpush1.msra.mxu0 0.0
      %2765 = vmatprep.subr.mxu0 0.0
      %2766 = vmatpush1.msra.mxu0 0.0
      %2767 = vmatprep.subr.mxu0 0.0
      %2768 = vmatpush1.msra.mxu0 0.0
      %2769 = vmatprep.subr.mxu0 0.0
      %2770 = vmatpush1.msra.mxu0 0.0
      %2771 = vmatprep.subr.mxu0 0.0
      %2772 = vmatpush1.msra.mxu0 0.0
      %2773 = vmatprep.subr.mxu0 0.0
      %2774 = vmatpush1.msra.mxu0 0.0
      %2775 = vmatprep.subr.mxu0 0.0
      %2776 = vmatpush1.msra.mxu0 0.0
      %2777 = vmatprep.subr.mxu0 0.0
      %2778 = vmatpush1.msra.mxu0 0.0
      %2779 = vmatprep.subr.mxu0 0.0
      %2780 = vmatpush1.msra.mxu0 0.0
      %2781 = vmatprep.subr.mxu0 0.0
      %2782 = vmatpush1.msra.mxu0 0.0
      %2783 = vmatprep.subr.mxu0 0.0
      %2784 = vmatpush1.msra.mxu0 0.0
      %2785 = vmatprep.subr.mxu0 0.0
      %2786 = vmatpush1.msra.mxu0 0.0
      %2787 = vmatprep.subr.mxu0 0.0
      %2788 = vmatpush1.msra.mxu0 0.0
      %2789 = vmatprep.subr.mxu0 0.0
      %2790 = vmatpush1.msra.mxu0 0.0
      %2791 = vmatprep.subr.mxu0 0.0
      %2792 = vmatpush1.msra.mxu0 0.0
      %2793 = vmatprep.subr.mxu0 0.0
      %2794 = vmatpush1.msra.mxu0 0.0
      %2795 = vmatprep.subr.mxu0 0.0
      %2796 = vmatpush1.msra.mxu0 0.0
      %2797 = vmatprep.subr.mxu0 0.0
      %2798 = vmatpush1.msra.mxu0 0.0
      %2799 = vmatprep.subr.mxu0 0.0
      %2800 = vmatpush1.msra.mxu0 0.0
      %2801 = vmatprep.subr.mxu0 0.0
      %2802 = vmatpush1.msra.mxu0 0.0
      %2803 = vmatprep.subr.mxu0 0.0
      %2804 = vmatpush1.msra.mxu0 0.0
      %2805 = vmatprep.subr.mxu0 0.0
      %2806 = vmatpush1.msra.mxu0 0.0
      %2807 = vmatprep.subr.mxu0 0.0
      %2808 = vmatpush1.msra.mxu0 0.0
      %2809 = vmatprep.subr.mxu0 0.0
      %2810 = vmatpush1.msra.mxu0 0.0
      %2811 = vmatprep.mubr.f32.mxu0 0.0
      %2812 = vmatmul.mubr.f32.gmra.mrb[0].mxu0 %v2665
      %v2813 = vpop.f32.mrb[0].mxu0
      %v2814 = vadd.f32 0.0, %v2813
      %v2815 = vpop.f32.mrb[0].mxu0
      %v2816 = vadd.f32 0.0, %v2815
      %2817 = vmatprep.mubr.f32.mxu0 0.0
      %2818 = vmatmul.mubr.f32.gmra.mrb[0].mxu0 %v2668
      %v2819 = vpop.f32.mrb[0].mxu0
      %v2820 = vadd.f32 0.0, %v2819
      %v2821 = vpop.f32.mrb[0].mxu0
      %v2822 = vadd.f32 0.0, %v2821
      %2823 = vdwg.mxu0
      %v2824 = vadd.f32 %v2543, %v2737
      %v2825 = vadd.f32 %v2545, %v2739
      %v2826 = vadd.f32 %v2620, %v2814
      %v2827 = vadd.f32 %v2622, %v2816
      %v2828 = vadd.f32 %v2549, %v2743
      %v2829 = vadd.f32 %v2551, %v2745
      %v2830 = vadd.f32 %v2626, %v2820
      %v2831 = vadd.f32 %v2628, %v2822
      %s2832 = scalar_lea.vmem %s5, 48
      %v2833 = vld [vmem:[%s2832] sm:$0xff]
      %v2834 = vld [vmem:[%s2832 + $0x8] sm:$0xff]
      %2835 = vrot.lane.b32.xlu0 %v2229, 97
      %v2836 = vpop.permute.xlu0 %2835
      %2837 = vrot.lane.b32.xlu0 %v2230, 97
      %v2838 = vpop.permute.xlu0 %2837
      %2839 = vrot.lane.b32.xlu0 %v2231, 97
      %v2840 = vpop.permute.xlu0 %2839
      %2841 = vrot.lane.b32.xlu0 %v2232, 97
      %v2842 = vpop.permute.xlu0 %2841
      %2843 = vrot.lane.b32.xlu0 %v2233, 97
      %v2844 = vpop.permute.xlu0 %2843
      %2845 = vrot.lane.b32.xlu0 %v2234, 97
      %v2846 = vpop.permute.xlu0 %2845
      %2847 = vrot.lane.b32.xlu0 %v2235, 97
      %v2848 = vpop.permute.xlu0 %2847
      %2849 = vrot.lane.b32.xlu0 %v2236, 97
      %v2850 = vpop.permute.xlu0 %2849
      %v2851 = vsel %vm851, %v2836, %v2838
      %v2852 = vsel %vm851, %v2838, %v2840
      %v2853 = vsel %vm851, %v2840, %v2842
      %v2854 = vsel %vm851, %v2844, %v2846
      %v2855 = vsel %vm851, %v2846, %v2848
      %v2856 = vsel %vm851, %v2848, %v2850
      %v2866 = vsel %vm1371, %v2833, 0
      %v2869 = vsel %vm1371, %v2834, 0
      %2871 = vmatprep.subr.mxu0 %v2852
      %2872 = vmatpush1.msra.mxu0 %v2851
      %2873 = vmatprep.subr.mxu0 %v2855
      %2874 = vmatpush1.msra.mxu0 %v2854
      %2875 = vmatprep.subr.mxu0 0.0
      %2876 = vmatpush1.msra.mxu0 0.0
      %2877 = vmatprep.subr.mxu0 0.0
      %2878 = vmatpush1.msra.mxu0 0.0
      %2879 = vmatprep.subr.mxu0 0.0
      %2880 = vmatpush1.msra.mxu0 0.0
      %2881 = vmatprep.subr.mxu0 0.0
      %2882 = vmatpush1.msra.mxu0 0.0
      %2883 = vmatprep.subr.mxu0 0.0
      %2884 = vmatpush1.msra.mxu0 0.0
      %2885 = vmatprep.subr.mxu0 0.0
      %2886 = vmatpush1.msra.mxu0 0.0
      %2887 = vmatprep.subr.mxu0 0.0
      %2888 = vmatpush1.msra.mxu0 0.0
      %2889 = vmatprep.subr.mxu0 0.0
      %2890 = vmatpush1.msra.mxu0 0.0
      %2891 = vmatprep.subr.mxu0 0.0
      %2892 = vmatpush1.msra.mxu0 0.0
      %2893 = vmatprep.subr.mxu0 0.0
      %2894 = vmatpush1.msra.mxu0 0.0
      %2895 = vmatprep.subr.mxu0 0.0
      %2896 = vmatpush1.msra.mxu0 0.0
      %2897 = vmatprep.subr.mxu0 0.0
      %2898 = vmatpush1.msra.mxu0 0.0
      %2899 = vmatprep.subr.mxu0 0.0
      %2900 = vmatpush1.msra.mxu0 0.0
      %2901 = vmatprep.subr.mxu0 0.0
      %2902 = vmatpush1.msra.mxu0 0.0
      %2903 = vmatprep.subr.mxu0 0.0
      %2904 = vmatpush1.msra.mxu0 0.0
      %2905 = vmatprep.subr.mxu0 0.0
      %2906 = vmatpush1.msra.mxu0 0.0
      %2907 = vmatprep.subr.mxu0 0.0
      %2908 = vmatpush1.msra.mxu0 0.0
      %2909 = vmatprep.subr.mxu0 0.0
      %2910 = vmatpush1.msra.mxu0 0.0
      %2911 = vmatprep.subr.mxu0 0.0
      %2912 = vmatpush1.msra.mxu0 0.0
      %2913 = vmatprep.subr.mxu0 0.0
      %2914 = vmatpush1.msra.mxu0 0.0
      %2915 = vmatprep.subr.mxu0 0.0
      %2916 = vmatpush1.msra.mxu0 0.0
      %2917 = vmatprep.subr.mxu0 0.0
      %2918 = vmatpush1.msra.mxu0 0.0
      %2919 = vmatprep.subr.mxu0 0.0
      %2920 = vmatpush1.msra.mxu0 0.0
      %2921 = vmatprep.subr.mxu0 0.0
      %2922 = vmatpush1.msra.mxu0 0.0
      %2923 = vmatprep.subr.mxu0 0.0
      %2924 = vmatpush1.msra.mxu0 0.0
      %2925 = vmatprep.subr.mxu0 0.0
      %2926 = vmatpush1.msra.mxu0 0.0
      %2927 = vmatprep.subr.mxu0 0.0
      %2928 = vmatpush1.msra.mxu0 0.0
      %2929 = vmatprep.subr.mxu0 0.0
      %2930 = vmatpush1.msra.mxu0 0.0
      %2931 = vmatprep.subr.mxu0 0.0
      %2932 = vmatpush1.msra.mxu0 0.0
      %2933 = vmatprep.subr.mxu0 0.0
      %2934 = vmatpush1.msra.mxu0 0.0
      %2935 = vmatprep.mubr.f32.mxu0 0.0
      %2936 = vmatmul.mubr.f32.gmra.mrb[0].mxu0 %v2866
      %v2937 = vpop.f32.mrb[0].mxu0
      %v2938 = vadd.f32 0.0, %v2937
      %v2939 = vpop.f32.mrb[0].mxu0
      %v2940 = vadd.f32 0.0, %v2939
      %2941 = vmatprep.mubr.f32.mxu0 0.0
      %2942 = vmatmul.mubr.f32.gmra.mrb[0].mxu0 %v2869
      %v2943 = vpop.f32.mrb[0].mxu0
      %v2944 = vadd.f32 0.0, %v2943
      %v2945 = vpop.f32.mrb[0].mxu0
      %v2946 = vadd.f32 0.0, %v2945
      %2947 = vdwg.mxu0
      %2948 = vmatprep.subr.mxu0 %v2842
      %2949 = vmatpush1.msra.mxu0 %v2853
      %2950 = vmatprep.subr.mxu0 %v2850
      %2951 = vmatpush1.msra.mxu0 %v2856
      %2952 = vmatprep.subr.mxu0 0.0
      %2953 = vmatpush1.msra.mxu0 0.0
      %2954 = vmatprep.subr.mxu0 0.0
      %2955 = vmatpush1.msra.mxu0 0.0
      %2956 = vmatprep.subr.mxu0 0.0
      %2957 = vmatpush1.msra.mxu0 0.0
      %2958 = vmatprep.subr.mxu0 0.0
      %2959 = vmatpush1.msra.mxu0 0.0
      %2960 = vmatprep.subr.mxu0 0.0
      %2961 = vmatpush1.msra.mxu0 0.0
      %2962 = vmatprep.subr.mxu0 0.0
      %2963 = vmatpush1.msra.mxu0 0.0
      %2964 = vmatprep.subr.mxu0 0.0
      %2965 = vmatpush1.msra.mxu0 0.0
      %2966 = vmatprep.subr.mxu0 0.0
      %2967 = vmatpush1.msra.mxu0 0.0
      %2968 = vmatprep.subr.mxu0 0.0
      %2969 = vmatpush1.msra.mxu0 0.0
      %2970 = vmatprep.subr.mxu0 0.0
      %2971 = vmatpush1.msra.mxu0 0.0
      %2972 = vmatprep.subr.mxu0 0.0
      %2973 = vmatpush1.msra.mxu0 0.0
      %2974 = vmatprep.subr.mxu0 0.0
      %2975 = vmatpush1.msra.mxu0 0.0
      %2976 = vmatprep.subr.mxu0 0.0
      %2977 = vmatpush1.msra.mxu0 0.0
      %2978 = vmatprep.subr.mxu0 0.0
      %2979 = vmatpush1.msra.mxu0 0.0
      %2980 = vmatprep.subr.mxu0 0.0
      %2981 = vmatpush1.msra.mxu0 0.0
      %2982 = vmatprep.subr.mxu0 0.0
      %2983 = vmatpush1.msra.mxu0 0.0
      %2984 = vmatprep.subr.mxu0 0.0
      %2985 = vmatpush1.msra.mxu0 0.0
      %2986 = vmatprep.subr.mxu0 0.0
      %2987 = vmatpush1.msra.mxu0 0.0
      %2988 = vmatprep.subr.mxu0 0.0
      %2989 = vmatpush1.msra.mxu0 0.0
      %2990 = vmatprep.subr.mxu0 0.0
      %2991 = vmatpush1.msra.mxu0 0.0
      %2992 = vmatprep.subr.mxu0 0.0
      %2993 = vmatpush1.msra.mxu0 0.0
      %2994 = vmatprep.subr.mxu0 0.0
      %2995 = vmatpush1.msra.mxu0 0.0
      %2996 = vmatprep.subr.mxu0 0.0
      %2997 = vmatpush1.msra.mxu0 0.0
      %2998 = vmatprep.subr.mxu0 0.0
      %2999 = vmatpush1.msra.mxu0 0.0
      %3000 = vmatprep.subr.mxu0 0.0
      %3001 = vmatpush1.msra.mxu0 0.0
      %3002 = vmatprep.subr.mxu0 0.0
      %3003 = vmatpush1.msra.mxu0 0.0
      %3004 = vmatprep.subr.mxu0 0.0
      %3005 = vmatpush1.msra.mxu0 0.0
      %3006 = vmatprep.subr.mxu0 0.0
      %3007 = vmatpush1.msra.mxu0 0.0
      %3008 = vmatprep.subr.mxu0 0.0
      %3009 = vmatpush1.msra.mxu0 0.0
      %3010 = vmatprep.subr.mxu0 0.0
      %3011 = vmatpush1.msra.mxu0 0.0
      %3012 = vmatprep.mubr.f32.mxu0 0.0
      %3013 = vmatmul.mubr.f32.gmra.mrb[0].mxu0 %v2866
      %v3014 = vpop.f32.mrb[0].mxu0
      %v3015 = vadd.f32 0.0, %v3014
      %v3016 = vpop.f32.mrb[0].mxu0
      %v3017 = vadd.f32 0.0, %v3016
      %3018 = vmatprep.mubr.f32.mxu0 0.0
      %3019 = vmatmul.mubr.f32.gmra.mrb[0].mxu0 %v2869
      %v3020 = vpop.f32.mrb[0].mxu0
      %v3021 = vadd.f32 0.0, %v3020
      %v3022 = vpop.f32.mrb[0].mxu0
      %v3023 = vadd.f32 0.0, %v3022
      %3024 = vdwg.mxu0
      %v3025 = vadd.f32 %v2824, %v2938
      %v3026 = vadd.f32 %v2825, %v2940
      %v3027 = vadd.f32 %v2826, %v3015
      %v3028 = vadd.f32 %v2827, %v3017
      %v3029 = vadd.f32 %v2828, %v2944
      %v3030 = vadd.f32 %v2829, %v2946
      %v3031 = vadd.f32 %v2830, %v3021
      %v3032 = vadd.f32 %v2831, %v3023
      %s3033 = scalar_lea.vmem %s5, 64
      %v3034 = vld [vmem:[%s3033] sm:$0xff]
      %v3035 = vld [vmem:[%s3033 + $0x8] sm:$0xff]
      %3036 = vrot.lane.b32.xlu0 %v2229, 96
      %v3037 = vpop.permute.xlu0 %3036
      %3038 = vrot.lane.b32.xlu0 %v2230, 96
      %v3039 = vpop.permute.xlu0 %3038
      %3040 = vrot.lane.b32.xlu0 %v2231, 96
      %v3041 = vpop.permute.xlu0 %3040
      %3042 = vrot.lane.b32.xlu0 %v2232, 96
      %v3043 = vpop.permute.xlu0 %3042
      %3044 = vrot.lane.b32.xlu0 %v2233, 96
      %v3045 = vpop.permute.xlu0 %3044
      %3046 = vrot.lane.b32.xlu0 %v2234, 96
      %v3047 = vpop.permute.xlu0 %3046
      %3048 = vrot.lane.b32.xlu0 %v2235, 96
      %v3049 = vpop.permute.xlu0 %3048
      %3050 = vrot.lane.b32.xlu0 %v2236, 96
      %v3051 = vpop.permute.xlu0 %3050
      %v3052 = vsel %vm1057, %v3037, %v3039
      %v3053 = vsel %vm1057, %v3039, %v3041
      %v3054 = vsel %vm1057, %v3041, %v3043
      %v3055 = vsel %vm1057, %v3045, %v3047
      %v3056 = vsel %vm1057, %v3047, %v3049
      %v3057 = vsel %vm1057, %v3049, %v3051
      %v3067 = vsel %vm1371, %v3034, 0
      %v3070 = vsel %vm1371, %v3035, 0
      %3072 = vmatprep.subr.mxu0 %v3053
      %3073 = vmatpush1.msra.mxu0 %v3052
      %3074 = vmatprep.subr.mxu0 %v3056
      %3075 = vmatpush1.msra.mxu0 %v3055
      %3076 = vmatprep.subr.mxu0 0.0
      %3077 = vmatpush1.msra.mxu0 0.0
      %3078 = vmatprep.subr.mxu0 0.0
      %3079 = vmatpush1.msra.mxu0 0.0
      %3080 = vmatprep.subr.mxu0 0.0
      %3081 = vmatpush1.msra.mxu0 0.0
      %3082 = vmatprep.subr.mxu0 0.0
      %3083 = vmatpush1.msra.mxu0 0.0
      %3084 = vmatprep.subr.mxu0 0.0
      %3085 = vmatpush1.msra.mxu0 0.0
      %3086 = vmatprep.subr.mxu0 0.0
      %3087 = vmatpush1.msra.mxu0 0.0
      %3088 = vmatprep.subr.mxu0 0.0
      %3089 = vmatpush1.msra.mxu0 0.0
      %3090 = vmatprep.subr.mxu0 0.0
      %3091 = vmatpush1.msra.mxu0 0.0
      %3092 = vmatprep.subr.mxu0 0.0
      %3093 = vmatpush1.msra.mxu0 0.0
      %3094 = vmatprep.subr.mxu0 0.0
      %3095 = vmatpush1.msra.mxu0 0.0
      %3096 = vmatprep.subr.mxu0 0.0
      %3097 = vmatpush1.msra.mxu0 0.0
      %3098 = vmatprep.subr.mxu0 0.0
      %3099 = vmatpush1.msra.mxu0 0.0
      %3100 = vmatprep.subr.mxu0 0.0
      %3101 = vmatpush1.msra.mxu0 0.0
      %3102 = vmatprep.subr.mxu0 0.0
      %3103 = vmatpush1.msra.mxu0 0.0
      %3104 = vmatprep.subr.mxu0 0.0
      %3105 = vmatpush1.msra.mxu0 0.0
      %3106 = vmatprep.subr.mxu0 0.0
      %3107 = vmatpush1.msra.mxu0 0.0
      %3108 = vmatprep.subr.mxu0 0.0
      %3109 = vmatpush1.msra.mxu0 0.0
      %3110 = vmatprep.subr.mxu0 0.0
      %3111 = vmatpush1.msra.mxu0 0.0
      %3112 = vmatprep.subr.mxu0 0.0
      %3113 = vmatpush1.msra.mxu0 0.0
      %3114 = vmatprep.subr.mxu0 0.0
      %3115 = vmatpush1.msra.mxu0 0.0
      %3116 = vmatprep.subr.mxu0 0.0
      %3117 = vmatpush1.msra.mxu0 0.0
      %3118 = vmatprep.subr.mxu0 0.0
      %3119 = vmatpush1.msra.mxu0 0.0
      %3120 = vmatprep.subr.mxu0 0.0
      %3121 = vmatpush1.msra.mxu0 0.0
      %3122 = vmatprep.subr.mxu0 0.0
      %3123 = vmatpush1.msra.mxu0 0.0
      %3124 = vmatprep.subr.mxu0 0.0
      %3125 = vmatpush1.msra.mxu0 0.0
      %3126 = vmatprep.subr.mxu0 0.0
      %3127 = vmatpush1.msra.mxu0 0.0
      %3128 = vmatprep.subr.mxu0 0.0
      %3129 = vmatpush1.msra.mxu0 0.0
      %3130 = vmatprep.subr.mxu0 0.0
      %3131 = vmatpush1.msra.mxu0 0.0
      %3132 = vmatprep.subr.mxu0 0.0
      %3133 = vmatpush1.msra.mxu0 0.0
      %3134 = vmatprep.subr.mxu0 0.0
      %3135 = vmatpush1.msra.mxu0 0.0
      %3136 = vmatprep.mubr.f32.mxu0 0.0
      %3137 = vmatmul.mubr.f32.gmra.mrb[0].mxu0 %v3067
      %v3138 = vpop.f32.mrb[0].mxu0
      %v3139 = vadd.f32 0.0, %v3138
      %v3140 = vpop.f32.mrb[0].mxu0
      %v3141 = vadd.f32 0.0, %v3140
      %3142 = vmatprep.mubr.f32.mxu0 0.0
      %3143 = vmatmul.mubr.f32.gmra.mrb[0].mxu0 %v3070
      %v3144 = vpop.f32.mrb[0].mxu0
      %v3145 = vadd.f32 0.0, %v3144
      %v3146 = vpop.f32.mrb[0].mxu0
      %v3147 = vadd.f32 0.0, %v3146
      %3148 = vdwg.mxu0
      %3149 = vmatprep.subr.mxu0 %v3043
      %3150 = vmatpush1.msra.mxu0 %v3054
      %3151 = vmatprep.subr.mxu0 %v3051
      %3152 = vmatpush1.msra.mxu0 %v3057
      %3153 = vmatprep.subr.mxu0 0.0
      %3154 = vmatpush1.msra.mxu0 0.0
      %3155 = vmatprep.subr.mxu0 0.0
      %3156 = vmatpush1.msra.mxu0 0.0
      %3157 = vmatprep.subr.mxu0 0.0
      %3158 = vmatpush1.msra.mxu0 0.0
      %3159 = vmatprep.subr.mxu0 0.0
      %3160 = vmatpush1.msra.mxu0 0.0
      %3161 = vmatprep.subr.mxu0 0.0
      %3162 = vmatpush1.msra.mxu0 0.0
      %3163 = vmatprep.subr.mxu0 0.0
      %3164 = vmatpush1.msra.mxu0 0.0
      %3165 = vmatprep.subr.mxu0 0.0
      %3166 = vmatpush1.msra.mxu0 0.0
      %3167 = vmatprep.subr.mxu0 0.0
      %3168 = vmatpush1.msra.mxu0 0.0
      %3169 = vmatprep.subr.mxu0 0.0
      %3170 = vmatpush1.msra.mxu0 0.0
      %3171 = vmatprep.subr.mxu0 0.0
      %3172 = vmatpush1.msra.mxu0 0.0
      %3173 = vmatprep.subr.mxu0 0.0
      %3174 = vmatpush1.msra.mxu0 0.0
      %3175 = vmatprep.subr.mxu0 0.0
      %3176 = vmatpush1.msra.mxu0 0.0
      %3177 = vmatprep.subr.mxu0 0.0
      %3178 = vmatpush1.msra.mxu0 0.0
      %3179 = vmatprep.subr.mxu0 0.0
      %3180 = vmatpush1.msra.mxu0 0.0
      %3181 = vmatprep.subr.mxu0 0.0
      %3182 = vmatpush1.msra.mxu0 0.0
      %3183 = vmatprep.subr.mxu0 0.0
      %3184 = vmatpush1.msra.mxu0 0.0
      %3185 = vmatprep.subr.mxu0 0.0
      %3186 = vmatpush1.msra.mxu0 0.0
      %3187 = vmatprep.subr.mxu0 0.0
      %3188 = vmatpush1.msra.mxu0 0.0
      %3189 = vmatprep.subr.mxu0 0.0
      %3190 = vmatpush1.msra.mxu0 0.0
      %3191 = vmatprep.subr.mxu0 0.0
      %3192 = vmatpush1.msra.mxu0 0.0
      %3193 = vmatprep.subr.mxu0 0.0
      %3194 = vmatpush1.msra.mxu0 0.0
      %3195 = vmatprep.subr.mxu0 0.0
      %3196 = vmatpush1.msra.mxu0 0.0
      %3197 = vmatprep.subr.mxu0 0.0
      %3198 = vmatpush1.msra.mxu0 0.0
      %3199 = vmatprep.subr.mxu0 0.0
      %3200 = vmatpush1.msra.mxu0 0.0
      %3201 = vmatprep.subr.mxu0 0.0
      %3202 = vmatpush1.msra.mxu0 0.0
      %3203 = vmatprep.subr.mxu0 0.0
      %3204 = vmatpush1.msra.mxu0 0.0
      %3205 = vmatprep.subr.mxu0 0.0
      %3206 = vmatpush1.msra.mxu0 0.0
      %3207 = vmatprep.subr.mxu0 0.0
      %3208 = vmatpush1.msra.mxu0 0.0
      %3209 = vmatprep.subr.mxu0 0.0
      %3210 = vmatpush1.msra.mxu0 0.0
      %3211 = vmatprep.subr.mxu0 0.0
      %3212 = vmatpush1.msra.mxu0 0.0
      %3213 = vmatprep.mubr.f32.mxu0 0.0
      %3214 = vmatmul.mubr.f32.gmra.mrb[0].mxu0 %v3067
      %v3215 = vpop.f32.mrb[0].mxu0
      %v3216 = vadd.f32 0.0, %v3215
      %v3217 = vpop.f32.mrb[0].mxu0
      %v3218 = vadd.f32 0.0, %v3217
      %3219 = vmatprep.mubr.f32.mxu0 0.0
      %3220 = vmatmul.mubr.f32.gmra.mrb[0].mxu0 %v3070
      %v3221 = vpop.f32.mrb[0].mxu0
      %v3222 = vadd.f32 0.0, %v3221
      %v3223 = vpop.f32.mrb[0].mxu0
      %v3224 = vadd.f32 0.0, %v3223
      %3225 = vdwg.mxu0
      %v3226 = vadd.f32 %v3025, %v3139
      %v3227 = vadd.f32 %v3026, %v3141
      %v3228 = vadd.f32 %v3027, %v3216
      %v3229 = vadd.f32 %v3028, %v3218
      %v3230 = vadd.f32 %v3029, %v3145
      %v3231 = vadd.f32 %v3030, %v3147
      %v3232 = vadd.f32 %v3031, %v3222
      %v3233 = vadd.f32 %v3032, %v3224
      %s3234 = scalar_lea.vmem %s5, 80
      %v3235 = vld [vmem:[%s3234] sm:$0xff]
      %v3236 = vld [vmem:[%s3234 + $0x8] sm:$0xff]
      %3237 = vrot.lane.b32.xlu0 %v2229, 95
      %v3238 = vpop.permute.xlu0 %3237
      %3239 = vrot.lane.b32.xlu0 %v2230, 95
      %v3240 = vpop.permute.xlu0 %3239
      %3241 = vrot.lane.b32.xlu0 %v2231, 95
      %v3242 = vpop.permute.xlu0 %3241
      %3243 = vrot.lane.b32.xlu0 %v2232, 95
      %v3244 = vpop.permute.xlu0 %3243
      %3245 = vrot.lane.b32.xlu0 %v2233, 95
      %v3246 = vpop.permute.xlu0 %3245
      %3247 = vrot.lane.b32.xlu0 %v2234, 95
      %v3248 = vpop.permute.xlu0 %3247
      %3249 = vrot.lane.b32.xlu0 %v2235, 95
      %v3250 = vpop.permute.xlu0 %3249
      %3251 = vrot.lane.b32.xlu0 %v2236, 95
      %v3252 = vpop.permute.xlu0 %3251
      %v3253 = vsel %vm1356, %v3238, %v3240
      %v3254 = vsel %vm1356, %v3240, %v3242
      %v3255 = vsel %vm1356, %v3242, %v3244
      %v3256 = vsel %vm1356, %v3246, %v3248
      %v3257 = vsel %vm1356, %v3248, %v3250
      %v3258 = vsel %vm1356, %v3250, %v3252
      %v3268 = vsel %vm1371, %v3235, 0
      %v3271 = vsel %vm1371, %v3236, 0
      %3273 = vmatprep.subr.mxu0 %v3254
      %3274 = vmatpush1.msra.mxu0 %v3253
      %3275 = vmatprep.subr.mxu0 %v3257
      %3276 = vmatpush1.msra.mxu0 %v3256
      %3277 = vmatprep.subr.mxu0 0.0
      %3278 = vmatpush1.msra.mxu0 0.0
      %3279 = vmatprep.subr.mxu0 0.0
      %3280 = vmatpush1.msra.mxu0 0.0
      %3281 = vmatprep.subr.mxu0 0.0
      %3282 = vmatpush1.msra.mxu0 0.0
      %3283 = vmatprep.subr.mxu0 0.0
      %3284 = vmatpush1.msra.mxu0 0.0
      %3285 = vmatprep.subr.mxu0 0.0
      %3286 = vmatpush1.msra.mxu0 0.0
      %3287 = vmatprep.subr.mxu0 0.0
      %3288 = vmatpush1.msra.mxu0 0.0
      %3289 = vmatprep.subr.mxu0 0.0
      %3290 = vmatpush1.msra.mxu0 0.0
      %3291 = vmatprep.subr.mxu0 0.0
      %3292 = vmatpush1.msra.mxu0 0.0
      %3293 = vmatprep.subr.mxu0 0.0
      %3294 = vmatpush1.msra.mxu0 0.0
      %3295 = vmatprep.subr.mxu0 0.0
      %3296 = vmatpush1.msra.mxu0 0.0
      %3297 = vmatprep.subr.mxu0 0.0
      %3298 = vmatpush1.msra.mxu0 0.0
      %3299 = vmatprep.subr.mxu0 0.0
      %3300 = vmatpush1.msra.mxu0 0.0
      %3301 = vmatprep.subr.mxu0 0.0
      %3302 = vmatpush1.msra.mxu0 0.0
      %3303 = vmatprep.subr.mxu0 0.0
      %3304 = vmatpush1.msra.mxu0 0.0
      %3305 = vmatprep.subr.mxu0 0.0
      %3306 = vmatpush1.msra.mxu0 0.0
      %3307 = vmatprep.subr.mxu0 0.0
      %3308 = vmatpush1.msra.mxu0 0.0
      %3309 = vmatprep.subr.mxu0 0.0
      %3310 = vmatpush1.msra.mxu0 0.0
      %3311 = vmatprep.subr.mxu0 0.0
      %3312 = vmatpush1.msra.mxu0 0.0
      %3313 = vmatprep.subr.mxu0 0.0
      %3314 = vmatpush1.msra.mxu0 0.0
      %3315 = vmatprep.subr.mxu0 0.0
      %3316 = vmatpush1.msra.mxu0 0.0
      %3317 = vmatprep.subr.mxu0 0.0
      %3318 = vmatpush1.msra.mxu0 0.0
      %3319 = vmatprep.subr.mxu0 0.0
      %3320 = vmatpush1.msra.mxu0 0.0
      %3321 = vmatprep.subr.mxu0 0.0
      %3322 = vmatpush1.msra.mxu0 0.0
      %3323 = vmatprep.subr.mxu0 0.0
      %3324 = vmatpush1.msra.mxu0 0.0
      %3325 = vmatprep.subr.mxu0 0.0
      %3326 = vmatpush1.msra.mxu0 0.0
      %3327 = vmatprep.subr.mxu0 0.0
      %3328 = vmatpush1.msra.mxu0 0.0
      %3329 = vmatprep.subr.mxu0 0.0
      %3330 = vmatpush1.msra.mxu0 0.0
      %3331 = vmatprep.subr.mxu0 0.0
      %3332 = vmatpush1.msra.mxu0 0.0
      %3333 = vmatprep.subr.mxu0 0.0
      %3334 = vmatpush1.msra.mxu0 0.0
      %3335 = vmatprep.subr.mxu0 0.0
      %3336 = vmatpush1.msra.mxu0 0.0
      %3337 = vmatprep.mubr.f32.mxu0 0.0
      %3338 = vmatmul.mubr.f32.gmra.mrb[0].mxu0 %v3268
      %v3339 = vpop.f32.mrb[0].mxu0
      %v3340 = vadd.f32 0.0, %v3339
      %v3341 = vpop.f32.mrb[0].mxu0
      %v3342 = vadd.f32 0.0, %v3341
      %3343 = vmatprep.mubr.f32.mxu0 0.0
      %3344 = vmatmul.mubr.f32.gmra.mrb[0].mxu0 %v3271
      %v3345 = vpop.f32.mrb[0].mxu0
      %v3346 = vadd.f32 0.0, %v3345
      %v3347 = vpop.f32.mrb[0].mxu0
      %v3348 = vadd.f32 0.0, %v3347
      %3349 = vdwg.mxu0
      %3350 = vmatprep.subr.mxu0 %v3244
      %3351 = vmatpush1.msra.mxu0 %v3255
      %3352 = vmatprep.subr.mxu0 %v3252
      %3353 = vmatpush1.msra.mxu0 %v3258
      %3354 = vmatprep.subr.mxu0 0.0
      %3355 = vmatpush1.msra.mxu0 0.0
      %3356 = vmatprep.subr.mxu0 0.0
      %3357 = vmatpush1.msra.mxu0 0.0
      %3358 = vmatprep.subr.mxu0 0.0
      %3359 = vmatpush1.msra.mxu0 0.0
      %3360 = vmatprep.subr.mxu0 0.0
      %3361 = vmatpush1.msra.mxu0 0.0
      %3362 = vmatprep.subr.mxu0 0.0
      %3363 = vmatpush1.msra.mxu0 0.0
      %3364 = vmatprep.subr.mxu0 0.0
      %3365 = vmatpush1.msra.mxu0 0.0
      %3366 = vmatprep.subr.mxu0 0.0
      %3367 = vmatpush1.msra.mxu0 0.0
      %3368 = vmatprep.subr.mxu0 0.0
      %3369 = vmatpush1.msra.mxu0 0.0
      %3370 = vmatprep.subr.mxu0 0.0
      %3371 = vmatpush1.msra.mxu0 0.0
      %3372 = vmatprep.subr.mxu0 0.0
      %3373 = vmatpush1.msra.mxu0 0.0
      %3374 = vmatprep.subr.mxu0 0.0
      %3375 = vmatpush1.msra.mxu0 0.0
      %3376 = vmatprep.subr.mxu0 0.0
      %3377 = vmatpush1.msra.mxu0 0.0
      %3378 = vmatprep.subr.mxu0 0.0
      %3379 = vmatpush1.msra.mxu0 0.0
      %3380 = vmatprep.subr.mxu0 0.0
      %3381 = vmatpush1.msra.mxu0 0.0
      %3382 = vmatprep.subr.mxu0 0.0
      %3383 = vmatpush1.msra.mxu0 0.0
      %3384 = vmatprep.subr.mxu0 0.0
      %3385 = vmatpush1.msra.mxu0 0.0
      %3386 = vmatprep.subr.mxu0 0.0
      %3387 = vmatpush1.msra.mxu0 0.0
      %3388 = vmatprep.subr.mxu0 0.0
      %3389 = vmatpush1.msra.mxu0 0.0
      %3390 = vmatprep.subr.mxu0 0.0
      %3391 = vmatpush1.msra.mxu0 0.0
      %3392 = vmatprep.subr.mxu0 0.0
      %3393 = vmatpush1.msra.mxu0 0.0
      %3394 = vmatprep.subr.mxu0 0.0
      %3395 = vmatpush1.msra.mxu0 0.0
      %3396 = vmatprep.subr.mxu0 0.0
      %3397 = vmatpush1.msra.mxu0 0.0
      %3398 = vmatprep.subr.mxu0 0.0
      %3399 = vmatpush1.msra.mxu0 0.0
      %3400 = vmatprep.subr.mxu0 0.0
      %3401 = vmatpush1.msra.mxu0 0.0
      %3402 = vmatprep.subr.mxu0 0.0
      %3403 = vmatpush1.msra.mxu0 0.0
      %3404 = vmatprep.subr.mxu0 0.0
      %3405 = vmatpush1.msra.mxu0 0.0
      %3406 = vmatprep.subr.mxu0 0.0
      %3407 = vmatpush1.msra.mxu0 0.0
      %3408 = vmatprep.subr.mxu0 0.0
      %3409 = vmatpush1.msra.mxu0 0.0
      %3410 = vmatprep.subr.mxu0 0.0
      %3411 = vmatpush1.msra.mxu0 0.0
      %3412 = vmatprep.subr.mxu0 0.0
      %3413 = vmatpush1.msra.mxu0 0.0
      %3414 = vmatprep.mubr.f32.mxu0 0.0
      %3415 = vmatmul.mubr.f32.gmra.mrb[0].mxu0 %v3268
      %v3416 = vpop.f32.mrb[0].mxu0
      %v3417 = vadd.f32 0.0, %v3416
      %v3418 = vpop.f32.mrb[0].mxu0
      %v3419 = vadd.f32 0.0, %v3418
      %3420 = vmatprep.mubr.f32.mxu0 0.0
      %3421 = vmatmul.mubr.f32.gmra.mrb[0].mxu0 %v3271
      %v3422 = vpop.f32.mrb[0].mxu0
      %v3423 = vadd.f32 0.0, %v3422
      %v3424 = vpop.f32.mrb[0].mxu0
      %v3425 = vadd.f32 0.0, %v3424
      %3426 = vdwg.mxu0
      %v3427 = vadd.f32 %v3226, %v3340
      %v3428 = vadd.f32 %v3227, %v3342
      %v3429 = vadd.f32 %v3228, %v3417
      %v3430 = vadd.f32 %v3229, %v3419
      %v3431 = vadd.f32 %v3230, %v3346
      %v3432 = vadd.f32 %v3231, %v3348
      %v3433 = vadd.f32 %v3232, %v3423
      %v3434 = vadd.f32 %v3233, %v3425
      %s3435 = scalar_lea.vmem %s5, 96
      %v3436 = vld [vmem:[%s3435] sm:$0xff]
      %v3437 = vld [vmem:[%s3435 + $0x8] sm:$0xff]
      %3438 = vrot.lane.b32.xlu0 %v2229, 77
      %v3439 = vpop.permute.xlu0 %3438
      %3440 = vrot.lane.b32.xlu0 %v2230, 77
      %v3441 = vpop.permute.xlu0 %3440
      %3442 = vrot.lane.b32.xlu0 %v2231, 77
      %v3443 = vpop.permute.xlu0 %3442
      %3444 = vrot.lane.b32.xlu0 %v2232, 77
      %v3445 = vpop.permute.xlu0 %3444
      %3446 = vrot.lane.b32.xlu0 %v2233, 77
      %v3447 = vpop.permute.xlu0 %3446
      %3448 = vrot.lane.b32.xlu0 %v2234, 77
      %v3449 = vpop.permute.xlu0 %3448
      %3450 = vrot.lane.b32.xlu0 %v2235, 77
      %v3451 = vpop.permute.xlu0 %3450
      %3452 = vrot.lane.b32.xlu0 %v2236, 77
      %v3453 = vpop.permute.xlu0 %3452
      %vm3454 = vcmask 629760
      %v3455 = vsel %vm3454, %v3439, %v3441
      %v3456 = vsel %vm3454, %v3441, %v3443
      %v3457 = vsel %vm3454, %v3443, %v3445
      %v3458 = vsel %vm3454, %v3447, %v3449
      %v3459 = vsel %vm3454, %v3449, %v3451
      %v3460 = vsel %vm3454, %v3451, %v3453
      %v3470 = vsel %vm1371, %v3436, 0
      %v3473 = vsel %vm1371, %v3437, 0
      %3475 = vmatprep.subr.mxu0 %v3456
      %3476 = vmatpush1.msra.mxu0 %v3455
      %3477 = vmatprep.subr.mxu0 %v3459
      %3478 = vmatpush1.msra.mxu0 %v3458
      %3479 = vmatprep.subr.mxu0 0.0
      %3480 = vmatpush1.msra.mxu0 0.0
      %3481 = vmatprep.subr.mxu0 0.0
      %3482 = vmatpush1.msra.mxu0 0.0
      %3483 = vmatprep.subr.mxu0 0.0
      %3484 = vmatpush1.msra.mxu0 0.0
      %3485 = vmatprep.subr.mxu0 0.0
      %3486 = vmatpush1.msra.mxu0 0.0
      %3487 = vmatprep.subr.mxu0 0.0
      %3488 = vmatpush1.msra.mxu0 0.0
      %3489 = vmatprep.subr.mxu0 0.0
      %3490 = vmatpush1.msra.mxu0 0.0
      %3491 = vmatprep.subr.mxu0 0.0
      %3492 = vmatpush1.msra.mxu0 0.0
      %3493 = vmatprep.subr.mxu0 0.0
      %3494 = vmatpush1.msra.mxu0 0.0
      %3495 = vmatprep.subr.mxu0 0.0
      %3496 = vmatpush1.msra.mxu0 0.0
      %3497 = vmatprep.subr.mxu0 0.0
      %3498 = vmatpush1.msra.mxu0 0.0
      %3499 = vmatprep.subr.mxu0 0.0
      %3500 = vmatpush1.msra.mxu0 0.0
      %3501 = vmatprep.subr.mxu0 0.0
      %3502 = vmatpush1.msra.mxu0 0.0
      %3503 = vmatprep.subr.mxu0 0.0
      %3504 = vmatpush1.msra.mxu0 0.0
      %3505 = vmatprep.subr.mxu0 0.0
      %3506 = vmatpush1.msra.mxu0 0.0
      %3507 = vmatprep.subr.mxu0 0.0
      %3508 = vmatpush1.msra.mxu0 0.0
      %3509 = vmatprep.subr.mxu0 0.0
      %3510 = vmatpush1.msra.mxu0 0.0
      %3511 = vmatprep.subr.mxu0 0.0
      %3512 = vmatpush1.msra.mxu0 0.0
      %3513 = vmatprep.subr.mxu0 0.0
      %3514 = vmatpush1.msra.mxu0 0.0
      %3515 = vmatprep.subr.mxu0 0.0
      %3516 = vmatpush1.msra.mxu0 0.0
      %3517 = vmatprep.subr.mxu0 0.0
      %3518 = vmatpush1.msra.mxu0 0.0
      %3519 = vmatprep.subr.mxu0 0.0
      %3520 = vmatpush1.msra.mxu0 0.0
      %3521 = vmatprep.subr.mxu0 0.0
      %3522 = vmatpush1.msra.mxu0 0.0
      %3523 = vmatprep.subr.mxu0 0.0
      %3524 = vmatpush1.msra.mxu0 0.0
      %3525 = vmatprep.subr.mxu0 0.0
      %3526 = vmatpush1.msra.mxu0 0.0
      %3527 = vmatprep.subr.mxu0 0.0
      %3528 = vmatpush1.msra.mxu0 0.0
      %3529 = vmatprep.subr.mxu0 0.0
      %3530 = vmatpush1.msra.mxu0 0.0
      %3531 = vmatprep.subr.mxu0 0.0
      %3532 = vmatpush1.msra.mxu0 0.0
      %3533 = vmatprep.subr.mxu0 0.0
      %3534 = vmatpush1.msra.mxu0 0.0
      %3535 = vmatprep.subr.mxu0 0.0
      %3536 = vmatpush1.msra.mxu0 0.0
      %3537 = vmatprep.subr.mxu0 0.0
      %3538 = vmatpush1.msra.mxu0 0.0
      %3539 = vmatprep.mubr.f32.mxu0 0.0
      %3540 = vmatmul.mubr.f32.gmra.mrb[0].mxu0 %v3470
      %v3541 = vpop.f32.mrb[0].mxu0
      %v3542 = vadd.f32 0.0, %v3541
      %v3543 = vpop.f32.mrb[0].mxu0
      %v3544 = vadd.f32 0.0, %v3543
      %3545 = vmatprep.mubr.f32.mxu0 0.0
      %3546 = vmatmul.mubr.f32.gmra.mrb[0].mxu0 %v3473
      %v3547 = vpop.f32.mrb[0].mxu0
      %v3548 = vadd.f32 0.0, %v3547
      %v3549 = vpop.f32.mrb[0].mxu0
      %v3550 = vadd.f32 0.0, %v3549
      %3551 = vdwg.mxu0
      %3552 = vmatprep.subr.mxu0 %v3445
      %3553 = vmatpush1.msra.mxu0 %v3457
      %3554 = vmatprep.subr.mxu0 %v3453
      %3555 = vmatpush1.msra.mxu0 %v3460
      %3556 = vmatprep.subr.mxu0 0.0
      %3557 = vmatpush1.msra.mxu0 0.0
      %3558 = vmatprep.subr.mxu0 0.0
      %3559 = vmatpush1.msra.mxu0 0.0
      %3560 = vmatprep.subr.mxu0 0.0
      %3561 = vmatpush1.msra.mxu0 0.0
      %3562 = vmatprep.subr.mxu0 0.0
      %3563 = vmatpush1.msra.mxu0 0.0
      %3564 = vmatprep.subr.mxu0 0.0
      %3565 = vmatpush1.msra.mxu0 0.0
      %3566 = vmatprep.subr.mxu0 0.0
      %3567 = vmatpush1.msra.mxu0 0.0
      %3568 = vmatprep.subr.mxu0 0.0
      %3569 = vmatpush1.msra.mxu0 0.0
      %3570 = vmatprep.subr.mxu0 0.0
      %3571 = vmatpush1.msra.mxu0 0.0
      %3572 = vmatprep.subr.mxu0 0.0
      %3573 = vmatpush1.msra.mxu0 0.0
      %3574 = vmatprep.subr.mxu0 0.0
      %3575 = vmatpush1.msra.mxu0 0.0
      %3576 = vmatprep.subr.mxu0 0.0
      %3577 = vmatpush1.msra.mxu0 0.0
      %3578 = vmatprep.subr.mxu0 0.0
      %3579 = vmatpush1.msra.mxu0 0.0
      %3580 = vmatprep.subr.mxu0 0.0
      %3581 = vmatpush1.msra.mxu0 0.0
      %3582 = vmatprep.subr.mxu0 0.0
      %3583 = vmatpush1.msra.mxu0 0.0
      %3584 = vmatprep.subr.mxu0 0.0
      %3585 = vmatpush1.msra.mxu0 0.0
      %3586 = vmatprep.subr.mxu0 0.0
      %3587 = vmatpush1.msra.mxu0 0.0
      %3588 = vmatprep.subr.mxu0 0.0
      %3589 = vmatpush1.msra.mxu0 0.0
      %3590 = vmatprep.subr.mxu0 0.0
      %3591 = vmatpush1.msra.mxu0 0.0
      %3592 = vmatprep.subr.mxu0 0.0
      %3593 = vmatpush1.msra.mxu0 0.0
      %3594 = vmatprep.subr.mxu0 0.0
      %3595 = vmatpush1.msra.mxu0 0.0
      %3596 = vmatprep.subr.mxu0 0.0
      %3597 = vmatpush1.msra.mxu0 0.0
      %3598 = vmatprep.subr.mxu0 0.0
      %3599 = vmatpush1.msra.mxu0 0.0
      %3600 = vmatprep.subr.mxu0 0.0
      %3601 = vmatpush1.msra.mxu0 0.0
      %3602 = vmatprep.subr.mxu0 0.0
      %3603 = vmatpush1.msra.mxu0 0.0
      %3604 = vmatprep.subr.mxu0 0.0
      %3605 = vmatpush1.msra.mxu0 0.0
      %3606 = vmatprep.subr.mxu0 0.0
      %3607 = vmatpush1.msra.mxu0 0.0
      %3608 = vmatprep.subr.mxu0 0.0
      %3609 = vmatpush1.msra.mxu0 0.0
      %3610 = vmatprep.subr.mxu0 0.0
      %3611 = vmatpush1.msra.mxu0 0.0
      %3612 = vmatprep.subr.mxu0 0.0
      %3613 = vmatpush1.msra.mxu0 0.0
      %3614 = vmatprep.subr.mxu0 0.0
      %3615 = vmatpush1.msra.mxu0 0.0
      %3616 = vmatprep.mubr.f32.mxu0 0.0
      %3617 = vmatmul.mubr.f32.gmra.mrb[0].mxu0 %v3470
      %v3618 = vpop.f32.mrb[0].mxu0
      %v3619 = vadd.f32 0.0, %v3618
      %v3620 = vpop.f32.mrb[0].mxu0
      %v3621 = vadd.f32 0.0, %v3620
      %3622 = vmatprep.mubr.f32.mxu0 0.0
      %3623 = vmatmul.mubr.f32.gmra.mrb[0].mxu0 %v3473
      %v3624 = vpop.f32.mrb[0].mxu0
      %v3625 = vadd.f32 0.0, %v3624
      %v3626 = vpop.f32.mrb[0].mxu0
      %v3627 = vadd.f32 0.0, %v3626
      %3628 = vdwg.mxu0
      %v3629 = vadd.f32 %v3427, %v3542
      %v3630 = vadd.f32 %v3428, %v3544
      %v3631 = vadd.f32 %v3429, %v3619
      %v3632 = vadd.f32 %v3430, %v3621
      %v3633 = vadd.f32 %v3431, %v3548
      %v3634 = vadd.f32 %v3432, %v3550
      %v3635 = vadd.f32 %v3433, %v3625
      %v3636 = vadd.f32 %v3434, %v3627
      %s3637 = scalar_lea.vmem %s5, 112
      %v3638 = vld [vmem:[%s3637] sm:$0xff]
      %v3639 = vld [vmem:[%s3637 + $0x8] sm:$0xff]
      %3640 = vrot.lane.b32.xlu0 %v2229, 76
      %v3641 = vpop.permute.xlu0 %3640
      %3642 = vrot.lane.b32.xlu0 %v2230, 76
      %v3643 = vpop.permute.xlu0 %3642
      %3644 = vrot.lane.b32.xlu0 %v2231, 76
      %v3645 = vpop.permute.xlu0 %3644
      %3646 = vrot.lane.b32.xlu0 %v2232, 76
      %v3647 = vpop.permute.xlu0 %3646
      %3648 = vrot.lane.b32.xlu0 %v2233, 76
      %v3649 = vpop.permute.xlu0 %3648
      %3650 = vrot.lane.b32.xlu0 %v2234, 76
      %v3651 = vpop.permute.xlu0 %3650
      %3652 = vrot.lane.b32.xlu0 %v2235, 76
      %v3653 = vpop.permute.xlu0 %3652
      %3654 = vrot.lane.b32.xlu0 %v2236, 76
      %v3655 = vpop.permute.xlu0 %3654
      %v3656 = vsel %vm1741, %v3641, %v3643
      %v3657 = vsel %vm1741, %v3643, %v3645
      %v3658 = vsel %vm1741, %v3645, %v3647
      %v3659 = vsel %vm1741, %v3649, %v3651
      %v3660 = vsel %vm1741, %v3651, %v3653
      %v3661 = vsel %vm1741, %v3653, %v3655
      %v3671 = vsel %vm1371, %v3638, 0
      %v3674 = vsel %vm1371, %v3639, 0
      %3676 = vmatprep.subr.mxu0 %v3657
      %3677 = vmatpush1.msra.mxu0 %v3656
      %3678 = vmatprep.subr.mxu0 %v3660
      %3679 = vmatpush1.msra.mxu0 %v3659
      %3680 = vmatprep.subr.mxu0 0.0
      %3681 = vmatpush1.msra.mxu0 0.0
      %3682 = vmatprep.subr.mxu0 0.0
      %3683 = vmatpush1.msra.mxu0 0.0
      %3684 = vmatprep.subr.mxu0 0.0
      %3685 = vmatpush1.msra.mxu0 0.0
      %3686 = vmatprep.subr.mxu0 0.0
      %3687 = vmatpush1.msra.mxu0 0.0
      %3688 = vmatprep.subr.mxu0 0.0
      %3689 = vmatpush1.msra.mxu0 0.0
      %3690 = vmatprep.subr.mxu0 0.0
      %3691 = vmatpush1.msra.mxu0 0.0
      %3692 = vmatprep.subr.mxu0 0.0
      %3693 = vmatpush1.msra.mxu0 0.0
      %3694 = vmatprep.subr.mxu0 0.0
      %3695 = vmatpush1.msra.mxu0 0.0
      %3696 = vmatprep.subr.mxu0 0.0
      %3697 = vmatpush1.msra.mxu0 0.0
      %3698 = vmatprep.subr.mxu0 0.0
      %3699 = vmatpush1.msra.mxu0 0.0
      %3700 = vmatprep.subr.mxu0 0.0
      %3701 = vmatpush1.msra.mxu0 0.0
      %3702 = vmatprep.subr.mxu0 0.0
      %3703 = vmatpush1.msra.mxu0 0.0
      %3704 = vmatprep.subr.mxu0 0.0
      %3705 = vmatpush1.msra.mxu0 0.0
      %3706 = vmatprep.subr.mxu0 0.0
      %3707 = vmatpush1.msra.mxu0 0.0
      %3708 = vmatprep.subr.mxu0 0.0
      %3709 = vmatpush1.msra.mxu0 0.0
      %3710 = vmatprep.subr.mxu0 0.0
      %3711 = vmatpush1.msra.mxu0 0.0
      %3712 = vmatprep.subr.mxu0 0.0
      %3713 = vmatpush1.msra.mxu0 0.0
      %3714 = vmatprep.subr.mxu0 0.0
      %3715 = vmatpush1.msra.mxu0 0.0
      %3716 = vmatprep.subr.mxu0 0.0
      %3717 = vmatpush1.msra.mxu0 0.0
      %3718 = vmatprep.subr.mxu0 0.0
      %3719 = vmatpush1.msra.mxu0 0.0
      %3720 = vmatprep.subr.mxu0 0.0
      %3721 = vmatpush1.msra.mxu0 0.0
      %3722 = vmatprep.subr.mxu0 0.0
      %3723 = vmatpush1.msra.mxu0 0.0
      %3724 = vmatprep.subr.mxu0 0.0
      %3725 = vmatpush1.msra.mxu0 0.0
      %3726 = vmatprep.subr.mxu0 0.0
      %3727 = vmatpush1.msra.mxu0 0.0
      %3728 = vmatprep.subr.mxu0 0.0
      %3729 = vmatpush1.msra.mxu0 0.0
      %3730 = vmatprep.subr.mxu0 0.0
      %3731 = vmatpush1.msra.mxu0 0.0
      %3732 = vmatprep.subr.mxu0 0.0
      %3733 = vmatpush1.msra.mxu0 0.0
      %3734 = vmatprep.subr.mxu0 0.0
      %3735 = vmatpush1.msra.mxu0 0.0
      %3736 = vmatprep.subr.mxu0 0.0
      %3737 = vmatpush1.msra.mxu0 0.0
      %3738 = vmatprep.subr.mxu0 0.0
      %3739 = vmatpush1.msra.mxu0 0.0
      %3740 = vmatprep.mubr.f32.mxu0 0.0
      %3741 = vmatmul.mubr.f32.gmra.mrb[0].mxu0 %v3671
      %v3742 = vpop.f32.mrb[0].mxu0
      %v3743 = vadd.f32 0.0, %v3742
      %v3744 = vpop.f32.mrb[0].mxu0
      %v3745 = vadd.f32 0.0, %v3744
      %3746 = vmatprep.mubr.f32.mxu0 0.0
      %3747 = vmatmul.mubr.f32.gmra.mrb[0].mxu0 %v3674
      %v3748 = vpop.f32.mrb[0].mxu0
      %v3749 = vadd.f32 0.0, %v3748
      %v3750 = vpop.f32.mrb[0].mxu0
      %v3751 = vadd.f32 0.0, %v3750
      %3752 = vdwg.mxu0
      %3753 = vmatprep.subr.mxu0 %v3647
      %3754 = vmatpush1.msra.mxu0 %v3658
      %3755 = vmatprep.subr.mxu0 %v3655
      %3756 = vmatpush1.msra.mxu0 %v3661
      %3757 = vmatprep.subr.mxu0 0.0
      %3758 = vmatpush1.msra.mxu0 0.0
      %3759 = vmatprep.subr.mxu0 0.0
      %3760 = vmatpush1.msra.mxu0 0.0
      %3761 = vmatprep.subr.mxu0 0.0
      %3762 = vmatpush1.msra.mxu0 0.0
      %3763 = vmatprep.subr.mxu0 0.0
      %3764 = vmatpush1.msra.mxu0 0.0
      %3765 = vmatprep.subr.mxu0 0.0
      %3766 = vmatpush1.msra.mxu0 0.0
      %3767 = vmatprep.subr.mxu0 0.0
      %3768 = vmatpush1.msra.mxu0 0.0
      %3769 = vmatprep.subr.mxu0 0.0
      %3770 = vmatpush1.msra.mxu0 0.0
      %3771 = vmatprep.subr.mxu0 0.0
      %3772 = vmatpush1.msra.mxu0 0.0
      %3773 = vmatprep.subr.mxu0 0.0
      %3774 = vmatpush1.msra.mxu0 0.0
      %3775 = vmatprep.subr.mxu0 0.0
      %3776 = vmatpush1.msra.mxu0 0.0
      %3777 = vmatprep.subr.mxu0 0.0
      %3778 = vmatpush1.msra.mxu0 0.0
      %3779 = vmatprep.subr.mxu0 0.0
      %3780 = vmatpush1.msra.mxu0 0.0
      %3781 = vmatprep.subr.mxu0 0.0
      %3782 = vmatpush1.msra.mxu0 0.0
      %3783 = vmatprep.subr.mxu0 0.0
      %3784 = vmatpush1.msra.mxu0 0.0
      %3785 = vmatprep.subr.mxu0 0.0
      %3786 = vmatpush1.msra.mxu0 0.0
      %3787 = vmatprep.subr.mxu0 0.0
      %3788 = vmatpush1.msra.mxu0 0.0
      %3789 = vmatprep.subr.mxu0 0.0
      %3790 = vmatpush1.msra.mxu0 0.0
      %3791 = vmatprep.subr.mxu0 0.0
      %3792 = vmatpush1.msra.mxu0 0.0
      %3793 = vmatprep.subr.mxu0 0.0
      %3794 = vmatpush1.msra.mxu0 0.0
      %3795 = vmatprep.subr.mxu0 0.0
      %3796 = vmatpush1.msra.mxu0 0.0
      %3797 = vmatprep.subr.mxu0 0.0
      %3798 = vmatpush1.msra.mxu0 0.0
      %3799 = vmatprep.subr.mxu0 0.0
      %3800 = vmatpush1.msra.mxu0 0.0
      %3801 = vmatprep.subr.mxu0 0.0
      %3802 = vmatpush1.msra.mxu0 0.0
      %3803 = vmatprep.subr.mxu0 0.0
      %3804 = vmatpush1.msra.mxu0 0.0
      %3805 = vmatprep.subr.mxu0 0.0
      %3806 = vmatpush1.msra.mxu0 0.0
      %3807 = vmatprep.subr.mxu0 0.0
      %3808 = vmatpush1.msra.mxu0 0.0
      %3809 = vmatprep.subr.mxu0 0.0
      %3810 = vmatpush1.msra.mxu0 0.0
      %3811 = vmatprep.subr.mxu0 0.0
      %3812 = vmatpush1.msra.mxu0 0.0
      %3813 = vmatprep.subr.mxu0 0.0
      %3814 = vmatpush1.msra.mxu0 0.0
      %3815 = vmatprep.subr.mxu0 0.0
      %3816 = vmatpush1.msra.mxu0 0.0
      %3817 = vmatprep.mubr.f32.mxu0 0.0
      %3818 = vmatmul.mubr.f32.gmra.mrb[0].mxu0 %v3671
      %v3819 = vpop.f32.mrb[0].mxu0
      %v3820 = vadd.f32 0.0, %v3819
      %v3821 = vpop.f32.mrb[0].mxu0
      %v3822 = vadd.f32 0.0, %v3821
      %3823 = vmatprep.mubr.f32.mxu0 0.0
      %3824 = vmatmul.mubr.f32.gmra.mrb[0].mxu0 %v3674
      %v3825 = vpop.f32.mrb[0].mxu0
      %v3826 = vadd.f32 0.0, %v3825
      %v3827 = vpop.f32.mrb[0].mxu0
      %v3828 = vadd.f32 0.0, %v3827
      %3829 = vdwg.mxu0
      %v3830 = vadd.f32 %v3629, %v3743
      %v3831 = vadd.f32 %v3630, %v3745
      %v3832 = vadd.f32 %v3631, %v3820
      %v3833 = vadd.f32 %v3632, %v3822
      %v3834 = vadd.f32 %v3633, %v3749
      %v3835 = vadd.f32 %v3634, %v3751
      %v3836 = vadd.f32 %v3635, %v3826
      %v3837 = vadd.f32 %v3636, %v3828
      %s3838 = scalar_lea.vmem %s5, 128
      %v3839 = vld [vmem:[%s3838] sm:$0xff]
      %v3840 = vld [vmem:[%s3838 + $0x8] sm:$0xff]
      %3841 = vrot.lane.b32.xlu0 %v2229, 75
      %v3842 = vpop.permute.xlu0 %3841
      %3843 = vrot.lane.b32.xlu0 %v2230, 75
      %v3844 = vpop.permute.xlu0 %3843
      %3845 = vrot.lane.b32.xlu0 %v2231, 75
      %v3846 = vpop.permute.xlu0 %3845
      %3847 = vrot.lane.b32.xlu0 %v2232, 75
      %v3848 = vpop.permute.xlu0 %3847
      %3849 = vrot.lane.b32.xlu0 %v2233, 75
      %v3850 = vpop.permute.xlu0 %3849
      %3851 = vrot.lane.b32.xlu0 %v2234, 75
      %v3852 = vpop.permute.xlu0 %3851
      %3853 = vrot.lane.b32.xlu0 %v2235, 75
      %v3854 = vpop.permute.xlu0 %3853
      %3855 = vrot.lane.b32.xlu0 %v2236, 75
      %v3856 = vpop.permute.xlu0 %3855
      %v3857 = vsel %vm1943, %v3842, %v3844
      %v3858 = vsel %vm1943, %v3844, %v3846
      %v3859 = vsel %vm1943, %v3846, %v3848
      %v3860 = vsel %vm1943, %v3850, %v3852
      %v3861 = vsel %vm1943, %v3852, %v3854
      %v3862 = vsel %vm1943, %v3854, %v3856
      %v3872 = vsel %vm1371, %v3839, 0
      %v3875 = vsel %vm1371, %v3840, 0
      %3877 = vmatprep.subr.mxu0 %v3858
      %3878 = vmatpush1.msra.mxu0 %v3857
      %3879 = vmatprep.subr.mxu0 %v3861
      %3880 = vmatpush1.msra.mxu0 %v3860
      %3881 = vmatprep.subr.mxu0 0.0
      %3882 = vmatpush1.msra.mxu0 0.0
      %3883 = vmatprep.subr.mxu0 0.0
      %3884 = vmatpush1.msra.mxu0 0.0
      %3885 = vmatprep.subr.mxu0 0.0
      %3886 = vmatpush1.msra.mxu0 0.0
      %3887 = vmatprep.subr.mxu0 0.0
      %3888 = vmatpush1.msra.mxu0 0.0
      %3889 = vmatprep.subr.mxu0 0.0
      %3890 = vmatpush1.msra.mxu0 0.0
      %3891 = vmatprep.subr.mxu0 0.0
      %3892 = vmatpush1.msra.mxu0 0.0
      %3893 = vmatprep.subr.mxu0 0.0
      %3894 = vmatpush1.msra.mxu0 0.0
      %3895 = vmatprep.subr.mxu0 0.0
      %3896 = vmatpush1.msra.mxu0 0.0
      %3897 = vmatprep.subr.mxu0 0.0
      %3898 = vmatpush1.msra.mxu0 0.0
      %3899 = vmatprep.subr.mxu0 0.0
      %3900 = vmatpush1.msra.mxu0 0.0
      %3901 = vmatprep.subr.mxu0 0.0
      %3902 = vmatpush1.msra.mxu0 0.0
      %3903 = vmatprep.subr.mxu0 0.0
      %3904 = vmatpush1.msra.mxu0 0.0
      %3905 = vmatprep.subr.mxu0 0.0
      %3906 = vmatpush1.msra.mxu0 0.0
      %3907 = vmatprep.subr.mxu0 0.0
      %3908 = vmatpush1.msra.mxu0 0.0
      %3909 = vmatprep.subr.mxu0 0.0
      %3910 = vmatpush1.msra.mxu0 0.0
      %3911 = vmatprep.subr.mxu0 0.0
      %3912 = vmatpush1.msra.mxu0 0.0
      %3913 = vmatprep.subr.mxu0 0.0
      %3914 = vmatpush1.msra.mxu0 0.0
      %3915 = vmatprep.subr.mxu0 0.0
      %3916 = vmatpush1.msra.mxu0 0.0
      %3917 = vmatprep.subr.mxu0 0.0
      %3918 = vmatpush1.msra.mxu0 0.0
      %3919 = vmatprep.subr.mxu0 0.0
      %3920 = vmatpush1.msra.mxu0 0.0
      %3921 = vmatprep.subr.mxu0 0.0
      %3922 = vmatpush1.msra.mxu0 0.0
      %3923 = vmatprep.subr.mxu0 0.0
      %3924 = vmatpush1.msra.mxu0 0.0
      %3925 = vmatprep.subr.mxu0 0.0
      %3926 = vmatpush1.msra.mxu0 0.0
      %3927 = vmatprep.subr.mxu0 0.0
      %3928 = vmatpush1.msra.mxu0 0.0
      %3929 = vmatprep.subr.mxu0 0.0
      %3930 = vmatpush1.msra.mxu0 0.0
      %3931 = vmatprep.subr.mxu0 0.0
      %3932 = vmatpush1.msra.mxu0 0.0
      %3933 = vmatprep.subr.mxu0 0.0
      %3934 = vmatpush1.msra.mxu0 0.0
      %3935 = vmatprep.subr.mxu0 0.0
      %3936 = vmatpush1.msra.mxu0 0.0
      %3937 = vmatprep.subr.mxu0 0.0
      %3938 = vmatpush1.msra.mxu0 0.0
      %3939 = vmatprep.subr.mxu0 0.0
      %3940 = vmatpush1.msra.mxu0 0.0
      %3941 = vmatprep.mubr.f32.mxu0 0.0
      %3942 = vmatmul.mubr.f32.gmra.mrb[0].mxu0 %v3872
      %v3943 = vpop.f32.mrb[0].mxu0
      %v3944 = vadd.f32 0.0, %v3943
      %v3945 = vpop.f32.mrb[0].mxu0
      %v3946 = vadd.f32 0.0, %v3945
      %3947 = vmatprep.mubr.f32.mxu0 0.0
      %3948 = vmatmul.mubr.f32.gmra.mrb[0].mxu0 %v3875
      %v3949 = vpop.f32.mrb[0].mxu0
      %v3950 = vadd.f32 0.0, %v3949
      %v3951 = vpop.f32.mrb[0].mxu0
      %v3952 = vadd.f32 0.0, %v3951
      %3953 = vdwg.mxu0
      %3954 = vmatprep.subr.mxu0 %v3848
      %3955 = vmatpush1.msra.mxu0 %v3859
      %3956 = vmatprep.subr.mxu0 %v3856
      %3957 = vmatpush1.msra.mxu0 %v3862
      %3958 = vmatprep.subr.mxu0 0.0
      %3959 = vmatpush1.msra.mxu0 0.0
      %3960 = vmatprep.subr.mxu0 0.0
      %3961 = vmatpush1.msra.mxu0 0.0
      %3962 = vmatprep.subr.mxu0 0.0
      %3963 = vmatpush1.msra.mxu0 0.0
      %3964 = vmatprep.subr.mxu0 0.0
      %3965 = vmatpush1.msra.mxu0 0.0
      %3966 = vmatprep.subr.mxu0 0.0
      %3967 = vmatpush1.msra.mxu0 0.0
      %3968 = vmatprep.subr.mxu0 0.0
      %3969 = vmatpush1.msra.mxu0 0.0
      %3970 = vmatprep.subr.mxu0 0.0
      %3971 = vmatpush1.msra.mxu0 0.0
      %3972 = vmatprep.subr.mxu0 0.0
      %3973 = vmatpush1.msra.mxu0 0.0
      %3974 = vmatprep.subr.mxu0 0.0
      %3975 = vmatpush1.msra.mxu0 0.0
      %3976 = vmatprep.subr.mxu0 0.0
      %3977 = vmatpush1.msra.mxu0 0.0
      %3978 = vmatprep.subr.mxu0 0.0
      %3979 = vmatpush1.msra.mxu0 0.0
      %3980 = vmatprep.subr.mxu0 0.0
      %3981 = vmatpush1.msra.mxu0 0.0
      %3982 = vmatprep.subr.mxu0 0.0
      %3983 = vmatpush1.msra.mxu0 0.0
      %3984 = vmatprep.subr.mxu0 0.0
      %3985 = vmatpush1.msra.mxu0 0.0
      %3986 = vmatprep.subr.mxu0 0.0
      %3987 = vmatpush1.msra.mxu0 0.0
      %3988 = vmatprep.subr.mxu0 0.0
      %3989 = vmatpush1.msra.mxu0 0.0
      %3990 = vmatprep.subr.mxu0 0.0
      %3991 = vmatpush1.msra.mxu0 0.0
      %3992 = vmatprep.subr.mxu0 0.0
      %3993 = vmatpush1.msra.mxu0 0.0
      %3994 = vmatprep.subr.mxu0 0.0
      %3995 = vmatpush1.msra.mxu0 0.0
      %3996 = vmatprep.subr.mxu0 0.0
      %3997 = vmatpush1.msra.mxu0 0.0
      %3998 = vmatprep.subr.mxu0 0.0
      %3999 = vmatpush1.msra.mxu0 0.0
      %4000 = vmatprep.subr.mxu0 0.0
      %4001 = vmatpush1.msra.mxu0 0.0
      %4002 = vmatprep.subr.mxu0 0.0
      %4003 = vmatpush1.msra.mxu0 0.0
      %4004 = vmatprep.subr.mxu0 0.0
      %4005 = vmatpush1.msra.mxu0 0.0
      %4006 = vmatprep.subr.mxu0 0.0
      %4007 = vmatpush1.msra.mxu0 0.0
      %4008 = vmatprep.subr.mxu0 0.0
      %4009 = vmatpush1.msra.mxu0 0.0
      %4010 = vmatprep.subr.mxu0 0.0
      %4011 = vmatpush1.msra.mxu0 0.0
      %4012 = vmatprep.subr.mxu0 0.0
      %4013 = vmatpush1.msra.mxu0 0.0
      %4014 = vmatprep.subr.mxu0 0.0
      %4015 = vmatpush1.msra.mxu0 0.0
      %4016 = vmatprep.subr.mxu0 0.0
      %4017 = vmatpush1.msra.mxu0 0.0
      %4018 = vmatprep.mubr.f32.mxu0 0.0
      %4019 = vmatmul.mubr.f32.gmra.mrb[0].mxu0 %v3872
      %v4020 = vpop.f32.mrb[0].mxu0
      %v4021 = vadd.f32 0.0, %v4020
      %v4022 = vpop.f32.mrb[0].mxu0
      %v4023 = vadd.f32 0.0, %v4022
      %4024 = vmatprep.mubr.f32.mxu0 0.0
      %4025 = vmatmul.mubr.f32.gmra.mrb[0].mxu0 %v3875
      %v4026 = vpop.f32.mrb[0].mxu0
      %v4027 = vadd.f32 0.0, %v4026
      %v4028 = vpop.f32.mrb[0].mxu0
      %v4029 = vadd.f32 0.0, %v4028
      %4030 = vdwg.mxu0
      %v4031 = vadd.f32 %v3830, %v3944
      %v4032 = vadd.f32 %v3831, %v3946
      %v4033 = vadd.f32 %v3832, %v4021
      %v4034 = vadd.f32 %v3833, %v4023
      %v4035 = vadd.f32 %v3834, %v3950
      %v4036 = vadd.f32 %v3835, %v3952
      %v4037 = vadd.f32 %v3836, %v4027
      %v4038 = vadd.f32 %v3837, %v4029
      %v4039 = vld [vmem:[%s6] sm:$0xff]
      %v4040 = vld [vmem:[%s6 + $0x8] sm:$0xff]
      %4042 = vset.pattern.permute.xlu0 0
      %4043 = vperm.xlu0 %4042, %v4039
      %v4044 = vpop.permute.xlu0 %4043
      %4047 = vset.pattern.permute.xlu0 0
      %4048 = vperm.xlu0 %4047, %v4040
      %v4049 = vpop.permute.xlu0 %4048
      %v4051 = vadd.f32 %v4031, %v4044
      %v4052 = vadd.f32 %v4032, %v4044
      %v4053 = vadd.f32 %v4033, %v4044
      %v4054 = vadd.f32 %v4034, %v4044
      %v4055 = vadd.f32 %v4035, %v4049
      %v4056 = vadd.f32 %v4036, %v4049
      %v4057 = vadd.f32 %v4037, %v4049
      %v4058 = vadd.f32 %v4038, %v4049
      %v4059 = vmax.f32 %v4051, 0.0
      %v4060 = vmax.f32 %v4052, 0.0
      %v4061 = vmax.f32 %v4053, 0.0
      %v4062 = vmax.f32 %v4054, 0.0
      %v4063 = vmax.f32 %v4055, 0.0
      %v4064 = vmax.f32 %v4056, 0.0
      %v4065 = vmax.f32 %v4057, 0.0
      %v4066 = vmax.f32 %v4058, 0.0
      %v4067 = vld [vmem:[%s7] sm:$0xff]
      %v4068 = vld [vmem:[%s7 + $0x8] sm:$0x3]
      %v4069 = vld [vmem:[%s8] sm:$0xff]
      %v4070 = vld [vmem:[%s8 + $0x8] sm:$0x3]
      %4072 = vset.pattern.permute.xlu0 0
      %4073 = vperm.xlu0 %4072, %v4069
      %v4074 = vpop.permute.xlu0 %4073
      %4077 = vset.pattern.permute.xlu0 0
      %4078 = vperm.xlu0 %4077, %v4070
      %v4079 = vpop.permute.xlu0 %4078
      %v4082 = vsel %vm1371, %v4067, 0
      %v4085 = vsel %vm1371, %v4068, 0
      %4087 = vmatprep.subr.mxu0 %v4060
      %4088 = vmatpush1.msra.mxu0 %v4059
      %4089 = vmatprep.subr.mxu0 %v4064
      %4090 = vmatpush1.msra.mxu0 %v4063
      %4091 = vmatprep.subr.mxu0 0.0
      %4092 = vmatpush1.msra.mxu0 0.0
      %4093 = vmatprep.subr.mxu0 0.0
      %4094 = vmatpush1.msra.mxu0 0.0
      %4095 = vmatprep.subr.mxu0 0.0
      %4096 = vmatpush1.msra.mxu0 0.0
      %4097 = vmatprep.subr.mxu0 0.0
      %4098 = vmatpush1.msra.mxu0 0.0
      %4099 = vmatprep.subr.mxu0 0.0
      %4100 = vmatpush1.msra.mxu0 0.0
      %4101 = vmatprep.subr.mxu0 0.0
      %4102 = vmatpush1.msra.mxu0 0.0
      %4103 = vmatprep.subr.mxu0 0.0
      %4104 = vmatpush1.msra.mxu0 0.0
      %4105 = vmatprep.subr.mxu0 0.0
      %4106 = vmatpush1.msra.mxu0 0.0
      %4107 = vmatprep.subr.mxu0 0.0
      %4108 = vmatpush1.msra.mxu0 0.0
      %4109 = vmatprep.subr.mxu0 0.0
      %4110 = vmatpush1.msra.mxu0 0.0
      %4111 = vmatprep.subr.mxu0 0.0
      %4112 = vmatpush1.msra.mxu0 0.0
      %4113 = vmatprep.subr.mxu0 0.0
      %4114 = vmatpush1.msra.mxu0 0.0
      %4115 = vmatprep.subr.mxu0 0.0
      %4116 = vmatpush1.msra.mxu0 0.0
      %4117 = vmatprep.subr.mxu0 0.0
      %4118 = vmatpush1.msra.mxu0 0.0
      %4119 = vmatprep.subr.mxu0 0.0
      %4120 = vmatpush1.msra.mxu0 0.0
      %4121 = vmatprep.subr.mxu0 0.0
      %4122 = vmatpush1.msra.mxu0 0.0
      %4123 = vmatprep.subr.mxu0 0.0
      %4124 = vmatpush1.msra.mxu0 0.0
      %4125 = vmatprep.subr.mxu0 0.0
      %4126 = vmatpush1.msra.mxu0 0.0
      %4127 = vmatprep.subr.mxu0 0.0
      %4128 = vmatpush1.msra.mxu0 0.0
      %4129 = vmatprep.subr.mxu0 0.0
      %4130 = vmatpush1.msra.mxu0 0.0
      %4131 = vmatprep.subr.mxu0 0.0
      %4132 = vmatpush1.msra.mxu0 0.0
      %4133 = vmatprep.subr.mxu0 0.0
      %4134 = vmatpush1.msra.mxu0 0.0
      %4135 = vmatprep.subr.mxu0 0.0
      %4136 = vmatpush1.msra.mxu0 0.0
      %4137 = vmatprep.subr.mxu0 0.0
      %4138 = vmatpush1.msra.mxu0 0.0
      %4139 = vmatprep.subr.mxu0 0.0
      %4140 = vmatpush1.msra.mxu0 0.0
      %4141 = vmatprep.subr.mxu0 0.0
      %4142 = vmatpush1.msra.mxu0 0.0
      %4143 = vmatprep.subr.mxu0 0.0
      %4144 = vmatpush1.msra.mxu0 0.0
      %4145 = vmatprep.subr.mxu0 0.0
      %4146 = vmatpush1.msra.mxu0 0.0
      %4147 = vmatprep.subr.mxu0 0.0
      %4148 = vmatpush1.msra.mxu0 0.0
      %4149 = vmatprep.subr.mxu0 0.0
      %4150 = vmatpush1.msra.mxu0 0.0
      %4151 = vmatprep.mubr.f32.mxu0 0.0
      %4152 = vmatmul.mubr.f32.gmra.mrb[0].mxu0 %v4082
      %v4153 = vpop.f32.mrb[0].mxu0
      %v4154 = vadd.f32 %v4074, %v4153
      %v4155 = vpop.f32.mrb[0].mxu0
      %v4156 = vadd.f32 %v4074, %v4155
      %4157 = vmatprep.mubr.f32.mxu0 0.0
      %4158 = vmatmul.mubr.f32.gmra.mrb[0].mxu0 %v4085
      %v4159 = vpop.f32.mrb[0].mxu0
      %v4160 = vadd.f32 %v4079, %v4159
      %v4161 = vpop.f32.mrb[0].mxu0
      %v4162 = vadd.f32 %v4079, %v4161
      %4163 = vdwg.mxu0
      %4164 = vmatprep.subr.mxu0 %v4062
      %4165 = vmatpush1.msra.mxu0 %v4061
      %4166 = vmatprep.subr.mxu0 %v4066
      %4167 = vmatpush1.msra.mxu0 %v4065
      %4168 = vmatprep.subr.mxu0 0.0
      %4169 = vmatpush1.msra.mxu0 0.0
      %4170 = vmatprep.subr.mxu0 0.0
      %4171 = vmatpush1.msra.mxu0 0.0
      %4172 = vmatprep.subr.mxu0 0.0
      %4173 = vmatpush1.msra.mxu0 0.0
      %4174 = vmatprep.subr.mxu0 0.0
      %4175 = vmatpush1.msra.mxu0 0.0
      %4176 = vmatprep.subr.mxu0 0.0
      %4177 = vmatpush1.msra.mxu0 0.0
      %4178 = vmatprep.subr.mxu0 0.0
      %4179 = vmatpush1.msra.mxu0 0.0
      %4180 = vmatprep.subr.mxu0 0.0
      %4181 = vmatpush1.msra.mxu0 0.0
      %4182 = vmatprep.subr.mxu0 0.0
      %4183 = vmatpush1.msra.mxu0 0.0
      %4184 = vmatprep.subr.mxu0 0.0
      %4185 = vmatpush1.msra.mxu0 0.0
      %4186 = vmatprep.subr.mxu0 0.0
      %4187 = vmatpush1.msra.mxu0 0.0
      %4188 = vmatprep.subr.mxu0 0.0
      %4189 = vmatpush1.msra.mxu0 0.0
      %4190 = vmatprep.subr.mxu0 0.0
      %4191 = vmatpush1.msra.mxu0 0.0
      %4192 = vmatprep.subr.mxu0 0.0
      %4193 = vmatpush1.msra.mxu0 0.0
      %4194 = vmatprep.subr.mxu0 0.0
      %4195 = vmatpush1.msra.mxu0 0.0
      %4196 = vmatprep.subr.mxu0 0.0
      %4197 = vmatpush1.msra.mxu0 0.0
      %4198 = vmatprep.subr.mxu0 0.0
      %4199 = vmatpush1.msra.mxu0 0.0
      %4200 = vmatprep.subr.mxu0 0.0
      %4201 = vmatpush1.msra.mxu0 0.0
      %4202 = vmatprep.subr.mxu0 0.0
      %4203 = vmatpush1.msra.mxu0 0.0
      %4204 = vmatprep.subr.mxu0 0.0
      %4205 = vmatpush1.msra.mxu0 0.0
      %4206 = vmatprep.subr.mxu0 0.0
      %4207 = vmatpush1.msra.mxu0 0.0
      %4208 = vmatprep.subr.mxu0 0.0
      %4209 = vmatpush1.msra.mxu0 0.0
      %4210 = vmatprep.subr.mxu0 0.0
      %4211 = vmatpush1.msra.mxu0 0.0
      %4212 = vmatprep.subr.mxu0 0.0
      %4213 = vmatpush1.msra.mxu0 0.0
      %4214 = vmatprep.subr.mxu0 0.0
      %4215 = vmatpush1.msra.mxu0 0.0
      %4216 = vmatprep.subr.mxu0 0.0
      %4217 = vmatpush1.msra.mxu0 0.0
      %4218 = vmatprep.subr.mxu0 0.0
      %4219 = vmatpush1.msra.mxu0 0.0
      %4220 = vmatprep.subr.mxu0 0.0
      %4221 = vmatpush1.msra.mxu0 0.0
      %4222 = vmatprep.subr.mxu0 0.0
      %4223 = vmatpush1.msra.mxu0 0.0
      %4224 = vmatprep.subr.mxu0 0.0
      %4225 = vmatpush1.msra.mxu0 0.0
      %4226 = vmatprep.subr.mxu0 0.0
      %4227 = vmatpush1.msra.mxu0 0.0
      %4228 = vmatprep.mubr.f32.mxu0 0.0
      %4229 = vmatmul.mubr.f32.gmra.mrb[0].mxu0 %v4082
      %v4230 = vpop.f32.mrb[0].mxu0
      %v4231 = vadd.f32 %v4074, %v4230
      %v4232 = vpop.f32.mrb[0].mxu0
      %4233 = vmatprep.mubr.f32.mxu0 0.0
      %4234 = vmatmul.mubr.f32.gmra.mrb[0].mxu0 %v4085
      %v4235 = vpop.f32.mrb[0].mxu0
      %v4236 = vadd.f32 %v4079, %v4235
      %v4237 = vpop.f32.mrb[0].mxu0
      %4238 = vdwg.mxu0
      %4241 = vrot.lane.b32.xlu0 %v4154, 86
      %v4242 = vpop.permute.xlu0 %4241
      %4243 = vrot.lane.b32.xlu0 %v4160, 86
      %v4244 = vpop.permute.xlu0 %4243
      %4247 = vst.msk [vmem:[%s359] sm:$0xff] %vm1371, %v4242
      %vm4248 = vcmask 123904
      %4249 = vst.msk [vmem:[%s359 + $0x10] sm:$0x3] %vm4248, %v4244
      %4250 = vrot.lane.b32.xlu0 %v4154, 82
      %v4251 = vpop.permute.xlu0 %4250
      %4252 = vrot.lane.b32.xlu0 %v4160, 82
      %v4253 = vpop.permute.xlu0 %4252
      %vm4256 = vcmask 261248
      %4257 = vst.msk [vmem:[%s359] sm:$0xff] %vm4256, %v4251
      %vm4258 = vcmask 255104
      %4259 = vst.msk [vmem:[%s359 + $0x10] sm:$0x3] %vm4258, %v4253
      %4260 = vrot.lane.b32.xlu0 %v4154, 78
      %v4261 = vpop.permute.xlu0 %4260
      %4262 = vrot.lane.b32.xlu0 %v4160, 78
      %v4263 = vpop.permute.xlu0 %4262
      %vm4266 = vcmask 392448
      %4267 = vst.msk [vmem:[%s359] sm:$0xff] %vm4266, %v4261
      %vm4268 = vcmask 386304
      %4269 = vst.msk [vmem:[%s359 + $0x10] sm:$0x3] %vm4268, %v4263
      %4270 = vrot.lane.b32.xlu0 %v4154, 74
      %v4271 = vpop.permute.xlu0 %4270
      %4272 = vrot.lane.b32.xlu0 %v4160, 74
      %v4273 = vpop.permute.xlu0 %4272
      %vm4276 = vcmask 523648
      %4277 = vst.msk [vmem:[%s359] sm:$0xff] %vm4276, %v4271
      %vm4278 = vcmask 517504
      %4279 = vst.msk [vmem:[%s359 + $0x10] sm:$0x3] %vm4278, %v4273
      %4282 = vrot.lane.b32.xlu0 %v4154, 70
      %v4283 = vpop.permute.xlu0 %4282
      %4284 = vrot.lane.b32.xlu0 %v4156, 70
      %v4285 = vpop.permute.xlu0 %4284
      %4286 = vrot.lane.b32.xlu0 %v4160, 70
      %v4287 = vpop.permute.xlu0 %4286
      %4288 = vrot.lane.b32.xlu0 %v4162, 70
      %v4289 = vpop.permute.xlu0 %4288
      %vm4290 = vcmask 572416
      %v4291 = vsel %vm4290, %v4283, %v4285
      %v4292 = vsel %vm4290, %v4287, %v4289
      %vm4295 = vcmask 654848
      %4296 = vst.msk [vmem:[%s359] sm:$0xff] %vm4295, %v4291
      %vm4297 = vcmask 648704
      %4298 = vst.msk [vmem:[%s359 + $0x10] sm:$0x3] %vm4297, %v4292
      %4299 = vrot.lane.b32.xlu0 %v4156, 66
      %v4300 = vpop.permute.xlu0 %4299
      %4301 = vrot.lane.b32.xlu0 %v4162, 66
      %v4302 = vpop.permute.xlu0 %4301
      %vm4305 = vcmask 786048
      %4306 = vst.msk [vmem:[%s359] sm:$0xff] %vm4305, %v4300
      %vm4307 = vcmask 779904
      %4308 = vst.msk [vmem:[%s359 + $0x10] sm:$0x3] %vm4307, %v4302
      %4309 = vrot.lane.b32.xlu0 %v4156, 62
      %v4310 = vpop.permute.xlu0 %4309
      %4311 = vrot.lane.b32.xlu0 %v4162, 62
      %v4312 = vpop.permute.xlu0 %4311
      %vm4315 = vcmask 917248
      %4316 = vst.msk [vmem:[%s359] sm:$0xff] %vm4315, %v4310
      %vm4317 = vcmask 911104
      %4318 = vst.msk [vmem:[%s359 + $0x10] sm:$0x3] %vm4317, %v4312
      %4319 = vrot.lane.b32.xlu0 %v4156, 58
      %v4320 = vpop.permute.xlu0 %4319
      %4321 = vrot.lane.b32.xlu0 %v4162, 58
      %v4322 = vpop.permute.xlu0 %4321
      %vm4325 = vcmask 1048448
      %4326 = vst.msk [vmem:[%s359] sm:$0xff] %vm4325, %v4320
      %vm4327 = vcmask 1042304
      %4328 = vst.msk [vmem:[%s359 + $0x10] sm:$0x3] %vm4327, %v4322
      %4329 = vrot.lane.b32.xlu0 %v4156, 54
      %v4330 = vpop.permute.xlu0 %4329
      %4331 = vrot.lane.b32.xlu0 %v4162, 54
      %v4332 = vpop.permute.xlu0 %4331
      %4335 = vst.msk [vmem:[%s359 + $0x8] sm:$0xff] %vm1371, %v4330
      %4336 = vst.msk [vmem:[%s359 + $0x18] sm:$0x3] %vm4248, %v4332
      %4337 = vrot.lane.b32.xlu0 %v4156, 50
      %v4338 = vpop.permute.xlu0 %4337
      %4339 = vrot.lane.b32.xlu0 %v4162, 50
      %v4340 = vpop.permute.xlu0 %4339
      %4343 = vst.msk [vmem:[%s359 + $0x8] sm:$0xff] %vm4256, %v4338
      %4344 = vst.msk [vmem:[%s359 + $0x18] sm:$0x3] %vm4258, %v4340
      %4347 = vrot.lane.b32.xlu0 %v4156, 46
      %v4348 = vpop.permute.xlu0 %4347
      %4349 = vrot.lane.b32.xlu0 %v4231, 46
      %v4350 = vpop.permute.xlu0 %4349
      %4351 = vrot.lane.b32.xlu0 %v4162, 46
      %v4352 = vpop.permute.xlu0 %4351
      %4353 = vrot.lane.b32.xlu0 %v4236, 46
      %v4354 = vpop.permute.xlu0 %4353
      %vm4355 = vcmask 375808
      %v4356 = vsel %vm4355, %v4348, %v4350
      %v4357 = vsel %vm4355, %v4352, %v4354
      %4360 = vst.msk [vmem:[%s359 + $0x8] sm:$0xff] %vm4266, %v4356
      %4361 = vst.msk [vmem:[%s359 + $0x18] sm:$0x3] %vm4268, %v4357
      %4362 = vrot.lane.b32.xlu0 %v4231, 42
      %v4363 = vpop.permute.xlu0 %4362
      %4364 = vrot.lane.b32.xlu0 %v4236, 42
      %v4365 = vpop.permute.xlu0 %4364
      %4368 = vst.msk [vmem:[%s359 + $0x8] sm:$0xff] %vm4276, %v4363
      %4369 = vst.msk [vmem:[%s359 + $0x18] sm:$0x3] %vm4278, %v4365
      %4370 = vrot.lane.b32.xlu0 %v4231, 38
      %v4371 = vpop.permute.xlu0 %4370
      %4372 = vrot.lane.b32.xlu0 %v4236, 38
      %v4373 = vpop.permute.xlu0 %4372
      %4376 = vst.msk [vmem:[%s359 + $0x8] sm:$0xff] %vm4295, %v4371
      %4377 = vst.msk [vmem:[%s359 + $0x18] sm:$0x3] %vm4297, %v4373
      %4378 = vrot.lane.b32.xlu0 %v4231, 34
      %v4379 = vpop.permute.xlu0 %4378
      %4380 = vrot.lane.b32.xlu0 %v4236, 34
      %v4381 = vpop.permute.xlu0 %4380
      %4384 = vst.msk [vmem:[%s359 + $0x8] sm:$0xff] %vm4305, %v4379
      %4385 = vst.msk [vmem:[%s359 + $0x18] sm:$0x3] %vm4307, %v4381
      %4386 = vrot.lane.b32.xlu0 %v4231, 30
      %v4387 = vpop.permute.xlu0 %4386
      %4388 = vrot.lane.b32.xlu0 %v4236, 30
      %v4389 = vpop.permute.xlu0 %4388
      %4392 = vst.msk [vmem:[%s359 + $0x8] sm:$0xff] %vm4315, %v4387
      %4393 = vst.msk [vmem:[%s359 + $0x18] sm:$0x3] %vm4317, %v4389
      %4394 = vrot.lane.b32.xlu0 %v4231, 26
      %v4395 = vpop.permute.xlu0 %4394
      %4396 = vrot.lane.b32.xlu0 %v4236, 26
      %v4397 = vpop.permute.xlu0 %4396
      %4400 = vst.msk [vmem:[%s359 + $0x8] sm:$0xff] %vm4325, %v4395
      %4401 = vst.msk [vmem:[%s359 + $0x18] sm:$0x3] %vm4327, %v4397
      %p4402 = scmp.lt.s32.totalorder %s21, 1
      %s4403 = scalar_select %p4402, %s21, 1
      %s4404 = smul.addr %s4403, 4
      %s4405 = smul.addr %s4404, 8
      %s4406 = scalar_lea.vmem %s10, %s4405
      // Predicated region
      $region61: #{task368_forward.1} parent=59 // pred_check
        %p4407 = pneg %p254
      $region62: #{task368_forward.1} parent=59 // pred_check_branch
        %4409 = sbr.rel (%p4407) target = $region64
      $region63: #{task368_forward.1} parent=59 // pred_region
        _
      $region64: #{task368_forward.1} parent=59 // pred_fallthru
        _
    $region60: #{task368_forward.1} parent=5 // pred_fallthru
      _
    %p4410 = scmp.le.s32.totalorder 2, %s16
    // Predicated region
    $region65: #{task368_forward.1} parent=5 // pred_check
      %p4411 = pneg %p4410
    $region66: #{task368_forward.1} parent=5 // pred_check_branch
      %4413 = sbr.rel (%p4411) target = $region68
    $region67: #{task368_forward.1} parent=5 // pred_region
      %s4414 = ssub.s32 %s16, 2
      // Predicated region
      $region69: #{task368_forward.1} parent=67 // pred_check
        %p4415 = pneg %p260
      $region70: #{task368_forward.1} parent=67 // pred_check_branch
        %4417 = sbr.rel (%p4415) target = $region72
      $region71: #{task368_forward.1} parent=67 // pred_region
        %p4418 = scmp.lt.s32.totalorder %s22, 1
        %s4419 = scalar_select %p4418, %s22, 1
        %s4420 = smul.addr %s4419, 4
        %s4421 = smul.addr %s4420, 8
        %s4422 = scalar_lea.vmem %s10, %s4421
      $region72: #{task368_forward.1} parent=67 // pred_fallthru
        _
    $region68: #{task368_forward.1} parent=5 // pred_fallthru
      _
  $region6: #{task368_forward.1} parent=0 // loop_footer
    %s20 = sadd.s32 1, %s16
  $region7: #{task368_forward.1} parent=0 // loop_footer_branch
    %15 = sbr.rel target = $region3
  $region8: #{task368_forward.1} parent=0 // loop_exit
    _

</llo_original>
